<compile_context>
chip_gen: v5e
topology: v5e:2x2
jax: 0.10.0
libtpu: 0.0.40
codegen_flags: <defaults>
</compile_context>

<pallas_src>
import functools
import math

import numpy as np
import jax
import jax.numpy as jnp
from jax import lax
from jax.experimental import pallas as pl
from jax.experimental.pallas import tpu as pltpu

NEG_INF = -1e20  # parlai neginf() for float32 (finite -> fully-masked rows stay finite)

# fused per-layer parameter ordering (stacked with a leading L axis)
_FUSED_KEYS = ("wqkv1", "wo1", "wq2", "wkv2", "wo2", "wf1", "wf2", "vecs_d", "vecs_w")
# row order inside vecs_d (all (1, D) f32 vectors packed into one (10, D) array)
_VEC_D_ORDER = ("bo1", "g1", "be1", "bq2", "bo2", "g2", "be2", "bf2", "g3", "be3")


# ----------------------------------------------------------------------------
# math helpers (pure jnp; shared by the Pallas kernel and the JAX reference)
# ----------------------------------------------------------------------------
def _layer_norm(x, gamma, beta, eps=1e-5):
    mean = jnp.mean(x, axis=-1, keepdims=True)
    var = jnp.mean((x - mean) ** 2, axis=-1, keepdims=True)
    return (x - mean) * lax.rsqrt(var + eps) * gamma + beta


def _attn_core(q, k, v, B, Tq, Tk, bias, wo, bo, n_heads, recip):
    """Scores / softmax / context / output projection on pre-projected q, k, v.

    q: (B*Tq, D) f32 (already scaled via the folded 1/sqrt(dh)); k, v: (B*Tk, D) f32.
    bias: additive mask broadcastable to (B*n_heads, Tq, Tk), batch-major/head-minor.
    """
    D = q.shape[-1]
    H = n_heads
    dh = D // H

    def split_heads(t2, T):
        # (B*T, D) -> (B*H, T, dh), batch-major / head-minor.
        # TODO(synk): replace lane slices + concat with one layout-aware
        #             reshape/transpose (pltpu.einshape) once verified on Mosaic.
        parts = [t2[:, h * dh:(h + 1) * dh].reshape(B, 1, T, dh) for h in range(H)]
        return jnp.concatenate(parts, axis=1).reshape(B * H, T, dh)

    qh = split_heads(q, Tq).astype(jnp.bfloat16)
    kh = split_heads(k, Tk).astype(jnp.bfloat16)
    vh = split_heads(v, Tk).astype(jnp.bfloat16)

    scores = jnp.einsum('nqd,nkd->nqk', qh, kh,
                        preferred_element_type=jnp.float32)        # (B*H, Tq, Tk)
    scores = scores + bias
    scores = scores - jnp.max(scores, axis=-1, keepdims=True)
    p = jnp.exp(scores)
    # NEG_INF is finite, so even a fully-masked row gives a strictly-positive denom.
    p = p * recip(jnp.sum(p, axis=-1, keepdims=True))

    ctx = jnp.einsum('nqk,nkd->nqd', p.astype(jnp.bfloat16), vh,
                     preferred_element_type=jnp.float32)           # (B*H, Tq, dh)

    # merge heads back into the feature (lane) dim, then ONE full-D out projection
    ctx4 = ctx.reshape(B, H, Tq, dh)
    ctx_m = jnp.concatenate([ctx4[:, h] for h in range(H)], axis=-1)   # (B, Tq, D)
    ctx2 = ctx_m.reshape(B * Tq, D).astype(jnp.bfloat16)
    out = jnp.dot(ctx2, wo, preferred_element_type=jnp.float32) + bo
    return out.reshape(B, Tq, D)


def _decoder_layer_math(x, enc, enc_bias, causal_bias, lp, n_heads, ffn_dim, recip):
    """One full decoder layer on a (B, T, D) activation block.

    lp = (wqkv1, wo1, wq2, wkv2, wo2, wf1, wf2, vecs_d, vecs_w) for one layer.
    """
    (wqkv1, wo1, wq2, wkv2, wo2, wf1, wf2, vecs_d, vecs_w) = lp
    B, T, D = x.shape
    S = enc.shape[1]
    H = n_heads
    F = ffn_dim

    # unpack the packed small vectors (static sublane / aligned lane slices)
    bo1, g1, be1 = vecs_d[0:1], vecs_d[1:2], vecs_d[2:3]
    bq2, bo2 = vecs_d[3:4], vecs_d[4:5]
    g2, be2 = vecs_d[5:6], vecs_d[6:7]
    bf2, g3, be3 = vecs_d[7:8], vecs_d[8:9], vecs_d[9:10]
    bqkv1 = vecs_w[0:1, :3 * D]
    bkv2 = vecs_w[1:2, :2 * D]
    bf1 = vecs_w[2:3, :F]

    # --- self attention (fused QKV projection; 1/sqrt(dh) folded into Wq/bq) ---
    x2 = x.reshape(B * T, D).astype(jnp.bfloat16)
    qkv = jnp.dot(x2, wqkv1, preferred_element_type=jnp.float32) + bqkv1   # (B*T, 3D)
    y = _attn_core(qkv[:, 0:D], qkv[:, D:2 * D], qkv[:, 2 * D:3 * D],
                   B, T, T, causal_bias, wo1, bo1, H, recip)
    x = _layer_norm(x + y, g1, be1)

    # --- encoder attention (fused KV projection on the bf16 encoder output) ---
    x2 = x.reshape(B * T, D).astype(jnp.bfloat16)
    q = jnp.dot(x2, wq2, preferred_element_type=jnp.float32) + bq2
    enc2 = enc.reshape(B * S, D).astype(jnp.bfloat16)
    kv = jnp.dot(enc2, wkv2, preferred_element_type=jnp.float32) + bkv2    # (B*S, 2D)
    y = _attn_core(q, kv[:, 0:D], kv[:, D:2 * D],
                   B, T, S, enc_bias, wo2, bo2, H, recip)
    x = _layer_norm(x + y, g2, be2)

    # --- FFN + add & norm ---
    x2 = x.reshape(B * T, D).astype(jnp.bfloat16)
    h = jnp.maximum(jnp.dot(x2, wf1, preferred_element_type=jnp.float32) + bf1, 0.0)
    y = jnp.dot(h.astype(jnp.bfloat16), wf2, preferred_element_type=jnp.float32) + bf2
    x = _layer_norm(x + y.reshape(B, T, D), g3, be3)
    return x


# ----------------------------------------------------------------------------
# Pallas kernel: whole decoder stack; grid = (batch_tiles, n_layers)
# ----------------------------------------------------------------------------
def decoder_stack_kernel(x_ref, enc_ref, encb_ref, causal_ref, *rest,
                         n_heads, ffn_dim):
    weight_refs = rest[:-1]
    out_ref = rest[-1]
    layer = pl.program_id(1)

    # initialize the VMEM-resident carry at the first layer of each batch tile
    @pl.when(layer == 0)
    def _():
        out_ref[...] = x_ref[...]

    x = out_ref[...]                         # (bt, T, D) carried activation
    lp = tuple(r[0] for r in weight_refs)    # drop the size-1 layer-block dim
    out_ref[...] = _decoder_layer_math(
        x, enc_ref[...], encb_ref[...], causal_ref[...], lp, n_heads, ffn_dim,
        recip=lambda d: pl.reciprocal(d, approx=True))


def decoder_stack_pallas(x, enc_out, enc_bias_bh, causal_bias, layer_params,
                         n_heads, ffn_dim, batch_block=None):
    B, T, D = x.shape
    S = enc_out.shape[1]
    H = n_heads
    L = layer_params[_FUSED_KEYS[0]].shape[0]
    bt = B if batch_block is None else batch_block
    assert B % bt == 0

    weights = [layer_params[k] for k in _FUSED_KEYS]   # each stacked as (L, a, b)

    # TODO(synk): on v7x, add pipeline_mode=pl.Buffered(1) for the layer-invariant
    #             inputs (x, enc, biases) to save VMEM under the 64 MiB budget.
    in_specs = [
        pl.BlockSpec((bt, T, D), lambda b, l: (b, 0, 0)),          # activation
        pl.BlockSpec((bt, S, D), lambda b, l: (b, 0, 0)),          # encoder out (bf16)
        pl.BlockSpec((bt * H, 1, S), lambda b, l: (b, 0, 0)),      # enc mask bias
        pl.BlockSpec((T, T), lambda b, l: (0, 0)),                 # causal bias
    ] + [pl.BlockSpec((1,) + w.shape[1:], lambda b, l: (l, 0, 0)) for w in weights]

    out_spec = pl.BlockSpec((bt, T, D), lambda b, l: (b, 0, 0))

    # rough cost hint for XLA scheduling of the surrounding gather / mask prep
    dh = D // H
    mm_flops = (2 * B * T * D * 3 * D + 3 * (2 * B * T * D * D)
                + 2 * B * S * D * 2 * D + 4 * B * T * D * ffn_dim
                + 4 * B * H * T * dh * (T + S))
    flops = int(L * mm_flops)
    transcendentals = int(L * (B * H * T * (T + S) + 3 * B * T))
    weight_bytes = sum(int(np.prod(w.shape)) * w.dtype.itemsize for w in weights)
    bytes_accessed = int(weight_bytes * (B // bt)
                         + 2 * x.size * x.dtype.itemsize
                         + enc_out.size * enc_out.dtype.itemsize
                         + enc_bias_bh.size * 4 + causal_bias.size * 4)

    kernel = functools.partial(decoder_stack_kernel, n_heads=H, ffn_dim=ffn_dim)
    return pl.pallas_call(
        kernel,
        out_shape=jax.ShapeDtypeStruct((B, T, D), jnp.float32),
        grid=(B // bt, L),
        in_specs=in_specs,
        out_specs=out_spec,
        # activation input is donated to (aliased with) the output buffer
        input_output_aliases={0: 0},
        compiler_params=pltpu.CompilerParams(
            # batch tiles shard across TensorCores; the layer axis is a sequential
            # carry so it must be "arbitrary" and iterate innermost.
            dimension_semantics=("parallel", "arbitrary"),
            vmem_limit_bytes=48 * 1024 * 1024),
        cost_estimate=pl.CostEstimate(flops=flops, transcendentals=transcendentals,
                                      bytes_accessed=bytes_accessed),
    )(x, enc_out, enc_bias_bh, causal_bias, *weights)


# ----------------------------------------------------------------------------
# parameter construction (deterministic, mirrors the PyTorch __init__ shapes)
# ----------------------------------------------------------------------------
def create_position_codes(n_pos, dim):
    position_enc = np.array(
        [[pos / np.power(10000, 2 * j / dim) for j in range(dim // 2)]
         for pos in range(n_pos)], dtype=np.float64)
    out = np.zeros((n_pos, dim), dtype=np.float32)
    out[:, 0::2] = np.sin(position_enc).astype(np.float32)
    out[:, 1::2] = np.cos(position_enc).astype(np.float32)
    return jnp.asarray(out)


def init_params(key, n_heads, n_layers, D, F, vocab, n_positions):
    dh = D // n_heads
    inv_scale = 1.0 / math.sqrt(dh)   # folded into Wq / bq at construction time
    w_max = max(3 * D, 2 * D, F)

    def next_key():
        nonlocal key
        key, sub = jax.random.split(key)
        return sub

    def xavier_normal(in_f, out_f):
        std = math.sqrt(2.0 / (in_f + out_f))
        return std * jax.random.normal(next_key(), (in_f, out_f), jnp.float32)

    def xavier_uniform(in_f, out_f):
        a = math.sqrt(6.0 / (in_f + out_f))
        return jax.random.uniform(next_key(), (in_f, out_f), jnp.float32, -a, a)

    def bias(n):
        return 0.01 * jax.random.normal(next_key(), (1, n), jnp.float32)

    def pad_w(v):
        return jnp.pad(v, ((0, 0), (0, w_max - v.shape[1])))

    layers = []
    for _ in range(n_layers):
        # self attention (weights stored pre-transposed (in, out); bf16 MXU operands)
        wq1, wk1, wv1, wo1 = (xavier_normal(D, D) for _ in range(4))
        bq1, bk1, bv1, bo1 = bias(D), bias(D), bias(D), bias(D)
        # encoder attention
        wq2, wk2, wv2, wo2 = (xavier_normal(D, D) for _ in range(4))
        bq2, bk2, bv2, bo2 = bias(D), bias(D), bias(D), bias(D)
        # FFN
        wf1, wf2 = xavier_uniform(D, F), xavier_uniform(F, D)
        bf1, bf2 = bias(F), bias(D)
        # layer norms
        ones = jnp.ones((1, D), jnp.float32)
        zeros = jnp.zeros((1, D), jnp.float32)
        g1, be1, g2, be2, g3, be3 = ones, zeros, ones, zeros, ones, zeros

        # fuse + fold 1/sqrt(dh) into the Q projections
        wqkv1 = jnp.concatenate([wq1 * inv_scale, wk1, wv1], axis=1)      # (D, 3D)
        bqkv1 = jnp.concatenate([bq1 * inv_scale, bk1, bv1], axis=1)      # (1, 3D)
        wkv2 = jnp.concatenate([wk2, wv2], axis=1)                        # (D, 2D)
        bkv2 = jnp.concatenate([bk2, bv2], axis=1)                        # (1, 2D)

        vecs_d = jnp.concatenate(
            [bo1, g1, be1, bq2 * inv_scale, bo2, g2, be2, bf2, g3, be3], axis=0)
        vecs_w = jnp.concatenate([pad_w(bqkv1), pad_w(bkv2), pad_w(bf1)], axis=0)

        layers.append({
            "wqkv1": wqkv1.astype(jnp.bfloat16),
            "wo1": wo1.astype(jnp.bfloat16),
            "wq2": (wq2 * inv_scale).astype(jnp.bfloat16),
            "wkv2": wkv2.astype(jnp.bfloat16),
            "wo2": wo2.astype(jnp.bfloat16),
            "wf1": wf1.astype(jnp.bfloat16),
            "wf2": wf2.astype(jnp.bfloat16),
            "vecs_d": vecs_d,      # (10, D) f32
            "vecs_w": vecs_w,      # (3, w_max) f32
        })

    stacked = {k: jnp.stack([lp[k] for lp in layers], axis=0) for k in _FUSED_KEYS}
    return {
        "emb": jax.random.normal(next_key(), (vocab, D), jnp.float32),
        "pos": create_position_codes(n_positions, D),
        "layers": stacked,
    }


# ----------------------------------------------------------------------------
# full TransformerDecoder forward
# ----------------------------------------------------------------------------
def transformer_decoder_forward(input_ids, encoder_output, encoder_mask,
                                params, n_heads, use_pallas=True):
    B, T = input_ids.shape
    D = params["emb"].shape[1]
    S = encoder_output.shape[1]
    H = n_heads
    layers = params["layers"]
    ffn_dim = int(layers["wf1"].shape[-1])

    # embedding lookup + scale + sinusoidal position embeddings (plain-JAX glue)
    x = params["emb"][input_ids] * math.sqrt(D)
    x = x + params["pos"][:T][None, :, :]
    # dropout(p=0) is identity  # TODO(synk): dropout layers are identity (p=0 / eval)

    # encoder output is only a K/V matmul operand -> pass it bf16 (half the traffic)
    enc_bf16 = encoder_output.astype(jnp.bfloat16)

    # precomputed additive biases, built once and shared by all layers/heads
    enc_bias = jnp.where(encoder_mask > 0,
                         jnp.float32(0.0), jnp.float32(NEG_INF))            # (B, S)
    enc_bias_bh = jnp.broadcast_to(enc_bias[:, None, None, :],
                                   (B, H, 1, S)).reshape(B * H, 1, S)
    rows = lax.broadcasted_iota(jnp.int32, (T, T), 0)
    cols = lax.broadcasted_iota(jnp.int32, (T, T), 1)
    causal_bias = jnp.where(cols <= rows, jnp.float32(0.0), jnp.float32(NEG_INF))

    if use_pallas:
        x = decoder_stack_pallas(x, enc_bf16, enc_bias_bh, causal_bias,
                                 layers, H, ffn_dim)
    else:
        L = layers[_FUSED_KEYS[0]].shape[0]
        for i in range(L):
            lp = tuple(layers[k][i] for k in _FUSED_KEYS)
            x = _decoder_layer_math(x, enc_bf16, enc_bias_bh, causal_bias, lp,
                                    H, ffn_dim, recip=lambda d: 1.0 / d)
    # TODO(synk): incremental decoding (incr_state) not implemented; PyTorch returns
    #             (tensor, None) — the None is dropped here.
    return x


# ----------------------------------------------------------------------------
if __name__ == "__main__":
    # small shapes consistent with the module; D is a multiple of 128 so the
    # activation / output stores are lane-dense, and D % n_heads == 0 as required.
    B, T, S = 2, 8, 8
    D, F, H = 128, 256, 4
    N_LAYERS = 2
    VOCAB = 50
    N_POS = 32

    root = jax.random.PRNGKey(0)
    k_par, k_ids, k_enc, k_mask = jax.random.split(root, 4)

    params = init_params(k_par, H, N_LAYERS, D, F, VOCAB, N_POS)

    input_ids = jax.random.randint(k_ids, (B, T), 0, VOCAB, dtype=jnp.int32)
    encoder_output = jax.random.normal(k_enc, (B, S, D), jnp.float32)
    encoder_mask = (jax.random.uniform(k_mask, (B, S)) > 0.3).astype(jnp.float32)
    encoder_mask = encoder_mask.at[:, 0].set(1.0)  # never a fully-masked row

    run_pallas = jax.jit(functools.partial(
        transformer_decoder_forward, n_heads=H, use_pallas=True))
    run_ref = jax.jit(functools.partial(
        transformer_decoder_forward, n_heads=H, use_pallas=False))

    out = jax.block_until_ready(run_pallas(input_ids, encoder_output, encoder_mask, params))
    ref = jax.block_until_ready(run_ref(input_ids, encoder_output, encoder_mask, params))

    assert out.shape == (B, T, D), out.shape
    assert bool(jnp.all(jnp.isfinite(out)))
    # both paths share the same fused bf16 weights + f32 accumulation; the kernel
    # additionally uses the approximate (EUP) reciprocal in softmax -> loose tolerance.
    np.testing.assert_allclose(np.asarray(out), np.asarray(ref), rtol=2e-2, atol=2e-2)
    print("KERNEL_OK")
</pallas_src>

<mosaic_0001>
module attributes {stable_mosaic.version = 11 : i64} {
  func.func @decoder_stack_kernel(%arg0: i32, %arg1: i32, %arg2: memref<2x8x128xf32, #tpu.memory_space<vmem>>, %arg3: memref<2x8x128xbf16, #tpu.memory_space<vmem>>, %arg4: memref<8x1x8xf32, #tpu.memory_space<vmem>>, %arg5: memref<8x8xf32, #tpu.memory_space<vmem>>, %arg6: memref<1x128x384xbf16, #tpu.memory_space<vmem>>, %arg7: memref<1x128x128xbf16, #tpu.memory_space<vmem>>, %arg8: memref<1x128x128xbf16, #tpu.memory_space<vmem>>, %arg9: memref<1x128x256xbf16, #tpu.memory_space<vmem>>, %arg10: memref<1x128x128xbf16, #tpu.memory_space<vmem>>, %arg11: memref<1x128x256xbf16, #tpu.memory_space<vmem>>, %arg12: memref<1x256x128xbf16, #tpu.memory_space<vmem>>, %arg13: memref<1x10x128xf32, #tpu.memory_space<vmem>>, %arg14: memref<1x3x384xf32, #tpu.memory_space<vmem>>, %arg15: memref<2x8x128xf32, #tpu.memory_space<vmem>>) attributes {dimension_semantics = [#tpu.dimension_semantics<parallel>, #tpu.dimension_semantics<arbitrary>], iteration_bounds = array<i64: 1, 2>, scalar_prefetch = 0 : i64, scratch_operands = 0 : i64, tpu.core_type = #tpu.core_type<tc>, window_params = [{transform_indices = @transform_0, window_bounds = array<i64: 2, 8, 128>}, {transform_indices = @transform_1, window_bounds = array<i64: 2, 8, 128>}, {transform_indices = @transform_2, window_bounds = array<i64: 8, 1, 8>}, {pipeline_mode = #tpu.pipeline_mode<synchronous>, transform_indices = @transform_3, window_bounds = array<i64: 8, 8>}, {transform_indices = @transform_4, window_bounds = array<i64: 1, 128, 384>}, {transform_indices = @transform_5, window_bounds = array<i64: 1, 128, 128>}, {transform_indices = @transform_6, window_bounds = array<i64: 1, 128, 128>}, {transform_indices = @transform_7, window_bounds = array<i64: 1, 128, 256>}, {transform_indices = @transform_8, window_bounds = array<i64: 1, 128, 128>}, {transform_indices = @transform_9, window_bounds = array<i64: 1, 128, 256>}, {transform_indices = @transform_10, window_bounds = array<i64: 1, 256, 128>}, {transform_indices = @transform_11, window_bounds = array<i64: 1, 10, 128>}, {transform_indices = @transform_12, window_bounds = array<i64: 1, 3, 384>}, {transform_indices = @transform_13, window_bounds = array<i64: 2, 8, 128>}]} {
    %c0_i32 = arith.constant 0 : i32
    %0 = arith.cmpi eq, %arg1, %c0_i32 : i32
    %1 = arith.extui %0 : i1 to i32
    %c0_i32_0 = arith.constant 0 : i32
    %2 = arith.cmpi ne, %1, %c0_i32_0 : i32
    scf.if %2 {
      %c0_71 = arith.constant 0 : index
      %c0_72 = arith.constant 0 : index
      %c0_73 = arith.constant 0 : index
      %274 = vector.load %arg2[%c0_71, %c0_72, %c0_73] : memref<2x8x128xf32, #tpu.memory_space<vmem>>, vector<2x8x128xf32>
      %c0_74 = arith.constant 0 : index
      %c0_75 = arith.constant 0 : index
      %c0_76 = arith.constant 0 : index
      %275 = vector.load %arg15[%c0_74, %c0_75, %c0_76] : memref<2x8x128xf32, #tpu.memory_space<vmem>>, vector<2x8x128xf32>
      tpu.vector_store %arg15[%c0_74, %c0_75, %c0_76], %274 {strides = array<i32>} : memref<2x8x128xf32, #tpu.memory_space<vmem>>, vector<2x8x128xf32>,
    } else {
    }
    %c0 = arith.constant 0 : index
    %c0_1 = arith.constant 0 : index
    %c0_2 = arith.constant 0 : index
    %3 = vector.load %arg15[%c0, %c0_1, %c0_2] : memref<2x8x128xf32, #tpu.memory_space<vmem>>, vector<2x8x128xf32>
    %c0_3 = arith.constant 0 : index
    %c0_4 = arith.constant 0 : index
    %c0_5 = arith.constant 0 : index
    %4 = vector.load %arg6[%c0_3, %c0_4, %c0_5] : memref<1x128x384xbf16, #tpu.memory_space<vmem>>, vector<1x128x384xbf16>
    %5 = vector.shape_cast %4 : vector<1x128x384xbf16> to vector<128x384xbf16>
    %c0_6 = arith.constant 0 : index
    %c0_7 = arith.constant 0 : index
    %c0_8 = arith.constant 0 : index
    %6 = vector.load %arg7[%c0_6, %c0_7, %c0_8] : memref<1x128x128xbf16, #tpu.memory_space<vmem>>, vector<1x128x128xbf16>
    %7 = vector.shape_cast %6 : vector<1x128x128xbf16> to vector<128x128xbf16>
    %c0_9 = arith.constant 0 : index
    %c0_10 = arith.constant 0 : index
    %c0_11 = arith.constant 0 : index
    %8 = vector.load %arg8[%c0_9, %c0_10, %c0_11] : memref<1x128x128xbf16, #tpu.memory_space<vmem>>, vector<1x128x128xbf16>
    %9 = vector.shape_cast %8 : vector<1x128x128xbf16> to vector<128x128xbf16>
    %c0_12 = arith.constant 0 : index
    %c0_13 = arith.constant 0 : index
    %c0_14 = arith.constant 0 : index
    %10 = vector.load %arg9[%c0_12, %c0_13, %c0_14] : memref<1x128x256xbf16, #tpu.memory_space<vmem>>, vector<1x128x256xbf16>
    %11 = vector.shape_cast %10 : vector<1x128x256xbf16> to vector<128x256xbf16>
    %c0_15 = arith.constant 0 : index
    %c0_16 = arith.constant 0 : index
    %c0_17 = arith.constant 0 : index
    %12 = vector.load %arg10[%c0_15, %c0_16, %c0_17] : memref<1x128x128xbf16, #tpu.memory_space<vmem>>, vector<1x128x128xbf16>
    %13 = vector.shape_cast %12 : vector<1x128x128xbf16> to vector<128x128xbf16>
    %c0_18 = arith.constant 0 : index
    %c0_19 = arith.constant 0 : index
    %c0_20 = arith.constant 0 : index
    %14 = vector.load %arg11[%c0_18, %c0_19, %c0_20] : memref<1x128x256xbf16, #tpu.memory_space<vmem>>, vector<1x128x256xbf16>
    %15 = vector.shape_cast %14 : vector<1x128x256xbf16> to vector<128x256xbf16>
    %c0_21 = arith.constant 0 : index
    %c0_22 = arith.constant 0 : index
    %c0_23 = arith.constant 0 : index
    %16 = vector.load %arg12[%c0_21, %c0_22, %c0_23] : memref<1x256x128xbf16, #tpu.memory_space<vmem>>, vector<1x256x128xbf16>
    %17 = vector.shape_cast %16 : vector<1x256x128xbf16> to vector<256x128xbf16>
    %c0_24 = arith.constant 0 : index
    %c0_25 = arith.constant 0 : index
    %c0_26 = arith.constant 0 : index
    %18 = vector.load %arg13[%c0_24, %c0_25, %c0_26] : memref<1x10x128xf32, #tpu.memory_space<vmem>>, vector<1x10x128xf32>
    %19 = vector.shape_cast %18 : vector<1x10x128xf32> to vector<10x128xf32>
    %c0_27 = arith.constant 0 : index
    %c0_28 = arith.constant 0 : index
    %c0_29 = arith.constant 0 : index
    %20 = vector.load %arg14[%c0_27, %c0_28, %c0_29] : memref<1x3x384xf32, #tpu.memory_space<vmem>>, vector<1x3x384xf32>
    %21 = vector.shape_cast %20 : vector<1x3x384xf32> to vector<3x384xf32>
    %c0_30 = arith.constant 0 : index
    %c0_31 = arith.constant 0 : index
    %c0_32 = arith.constant 0 : index
    %22 = vector.load %arg3[%c0_30, %c0_31, %c0_32] : memref<2x8x128xbf16, #tpu.memory_space<vmem>>, vector<2x8x128xbf16>
    %c0_33 = arith.constant 0 : index
    %c0_34 = arith.constant 0 : index
    %c0_35 = arith.constant 0 : index
    %23 = vector.load %arg4[%c0_33, %c0_34, %c0_35] : memref<8x1x8xf32, #tpu.memory_space<vmem>>, vector<8x1x8xf32>
    %c0_36 = arith.constant 0 : index
    %c0_37 = arith.constant 0 : index
    %24 = vector.load %arg5[%c0_36, %c0_37] : memref<8x8xf32, #tpu.memory_space<vmem>>, vector<8x8xf32>
    %25 = vector.extract_strided_slice %19 {offsets = [0, 0], sizes = [1, 128], strides = [1, 1]} : vector<10x128xf32> to vector<1x128xf32>
    %26 = vector.extract_strided_slice %19 {offsets = [1, 0], sizes = [1, 128], strides = [1, 1]} : vector<10x128xf32> to vector<1x128xf32>
    %27 = vector.extract_strided_slice %19 {offsets = [2, 0], sizes = [1, 128], strides = [1, 1]} : vector<10x128xf32> to vector<1x128xf32>
    %28 = vector.extract_strided_slice %19 {offsets = [3, 0], sizes = [1, 128], strides = [1, 1]} : vector<10x128xf32> to vector<1x128xf32>
    %29 = vector.extract_strided_slice %19 {offsets = [4, 0], sizes = [1, 128], strides = [1, 1]} : vector<10x128xf32> to vector<1x128xf32>
    %30 = vector.extract_strided_slice %19 {offsets = [5, 0], sizes = [1, 128], strides = [1, 1]} : vector<10x128xf32> to vector<1x128xf32>
    %31 = vector.extract_strided_slice %19 {offsets = [6, 0], sizes = [1, 128], strides = [1, 1]} : vector<10x128xf32> to vector<1x128xf32>
    %32 = vector.extract_strided_slice %19 {offsets = [7, 0], sizes = [1, 128], strides = [1, 1]} : vector<10x128xf32> to vector<1x128xf32>
    %33 = vector.extract_strided_slice %19 {offsets = [8, 0], sizes = [1, 128], strides = [1, 1]} : vector<10x128xf32> to vector<1x128xf32>
    %34 = vector.extract_strided_slice %19 {offsets = [9, 0], sizes = [1, 128], strides = [1, 1]} : vector<10x128xf32> to vector<1x128xf32>
    %35 = vector.extract_strided_slice %21 {offsets = [0, 0], sizes = [1, 384], strides = [1, 1]} : vector<3x384xf32> to vector<1x384xf32>
    %36 = vector.extract_strided_slice %21 {offsets = [1, 0], sizes = [1, 256], strides = [1, 1]} : vector<3x384xf32> to vector<1x256xf32>
    %37 = vector.extract_strided_slice %21 {offsets = [2, 0], sizes = [1, 256], strides = [1, 1]} : vector<3x384xf32> to vector<1x256xf32>
    %38 = vector.shape_cast %3 : vector<2x8x128xf32> to vector<16x128xf32>
    %39 = arith.truncf %38 : vector<16x128xf32> to vector<16x128xbf16>
    %cst = arith.constant dense<0.000000e+00> : vector<16x384xf32>
    %40 = tpu.matmul %39, %5, %cst {dimension_numbers = #tpu.dot_dimension_numbers<[1], [0], [0], [1], [0, 0, 1, 1], [], []>} : vector<16x128xbf16>, vector<128x384xbf16>, vector<16x384xf32> -> vector<16x384xf32>
    %41 = vector.broadcast %35 : vector<1x384xf32> to vector<16x384xf32>
    %42 = arith.addf %40, %41 : vector<16x384xf32>
    %43 = vector.extract_strided_slice %42 {offsets = [0, 0], sizes = [16, 128], strides = [1, 1]} : vector<16x384xf32> to vector<16x128xf32>
    %44 = vector.extract_strided_slice %42 {offsets = [0, 128], sizes = [16, 128], strides = [1, 1]} : vector<16x384xf32> to vector<16x128xf32>
    %45 = vector.extract_strided_slice %42 {offsets = [0, 256], sizes = [16, 128], strides = [1, 1]} : vector<16x384xf32> to vector<16x128xf32>
    %46 = vector.extract_strided_slice %43 {offsets = [0, 0], sizes = [16, 32], strides = [1, 1]} : vector<16x128xf32> to vector<16x32xf32>
    %47 = vector.shape_cast %46 : vector<16x32xf32> to vector<2x1x8x32xf32>
    %48 = vector.extract_strided_slice %43 {offsets = [0, 32], sizes = [16, 32], strides = [1, 1]} : vector<16x128xf32> to vector<16x32xf32>
    %49 = vector.shape_cast %48 : vector<16x32xf32> to vector<2x1x8x32xf32>
    %50 = vector.extract_strided_slice %43 {offsets = [0, 64], sizes = [16, 32], strides = [1, 1]} : vector<16x128xf32> to vector<16x32xf32>
    %51 = vector.shape_cast %50 : vector<16x32xf32> to vector<2x1x8x32xf32>
    %52 = vector.extract_strided_slice %43 {offsets = [0, 96], sizes = [16, 32], strides = [1, 1]} : vector<16x128xf32> to vector<16x32xf32>
    %53 = vector.shape_cast %52 : vector<16x32xf32> to vector<2x1x8x32xf32>
    %54 = tpu.concatenate %47, %49, %51, %53 in 1 : vector<2x1x8x32xf32>, vector<2x1x8x32xf32>, vector<2x1x8x32xf32>, vector<2x1x8x32xf32> -> vector<2x4x8x32xf32>
    %55 = vector.shape_cast %54 : vector<2x4x8x32xf32> to vector<8x8x32xf32>
    %56 = arith.truncf %55 : vector<8x8x32xf32> to vector<8x8x32xbf16>
    %57 = vector.extract_strided_slice %44 {offsets = [0, 0], sizes = [16, 32], strides = [1, 1]} : vector<16x128xf32> to vector<16x32xf32>
    %58 = vector.shape_cast %57 : vector<16x32xf32> to vector<2x1x8x32xf32>
    %59 = vector.extract_strided_slice %44 {offsets = [0, 32], sizes = [16, 32], strides = [1, 1]} : vector<16x128xf32> to vector<16x32xf32>
    %60 = vector.shape_cast %59 : vector<16x32xf32> to vector<2x1x8x32xf32>
    %61 = vector.extract_strided_slice %44 {offsets = [0, 64], sizes = [16, 32], strides = [1, 1]} : vector<16x128xf32> to vector<16x32xf32>
    %62 = vector.shape_cast %61 : vector<16x32xf32> to vector<2x1x8x32xf32>
    %63 = vector.extract_strided_slice %44 {offsets = [0, 96], sizes = [16, 32], strides = [1, 1]} : vector<16x128xf32> to vector<16x32xf32>
    %64 = vector.shape_cast %63 : vector<16x32xf32> to vector<2x1x8x32xf32>
    %65 = tpu.concatenate %58, %60, %62, %64 in 1 : vector<2x1x8x32xf32>, vector<2x1x8x32xf32>, vector<2x1x8x32xf32>, vector<2x1x8x32xf32> -> vector<2x4x8x32xf32>
    %66 = vector.shape_cast %65 : vector<2x4x8x32xf32> to vector<8x8x32xf32>
    %67 = arith.truncf %66 : vector<8x8x32xf32> to vector<8x8x32xbf16>
    %68 = vector.extract_strided_slice %45 {offsets = [0, 0], sizes = [16, 32], strides = [1, 1]} : vector<16x128xf32> to vector<16x32xf32>
    %69 = vector.shape_cast %68 : vector<16x32xf32> to vector<2x1x8x32xf32>
    %70 = vector.extract_strided_slice %45 {offsets = [0, 32], sizes = [16, 32], strides = [1, 1]} : vector<16x128xf32> to vector<16x32xf32>
    %71 = vector.shape_cast %70 : vector<16x32xf32> to vector<2x1x8x32xf32>
    %72 = vector.extract_strided_slice %45 {offsets = [0, 64], sizes = [16, 32], strides = [1, 1]} : vector<16x128xf32> to vector<16x32xf32>
    %73 = vector.shape_cast %72 : vector<16x32xf32> to vector<2x1x8x32xf32>
    %74 = vector.extract_strided_slice %45 {offsets = [0, 96], sizes = [16, 32], strides = [1, 1]} : vector<16x128xf32> to vector<16x32xf32>
    %75 = vector.shape_cast %74 : vector<16x32xf32> to vector<2x1x8x32xf32>
    %76 = tpu.concatenate %69, %71, %73, %75 in 1 : vector<2x1x8x32xf32>, vector<2x1x8x32xf32>, vector<2x1x8x32xf32>, vector<2x1x8x32xf32> -> vector<2x4x8x32xf32>
    %77 = vector.shape_cast %76 : vector<2x4x8x32xf32> to vector<8x8x32xf32>
    %78 = arith.truncf %77 : vector<8x8x32xf32> to vector<8x8x32xbf16>
    "tpu.trace_start"() <{level = 10 : i32, message = "nqd,nkd->nqk"}> : () -> ()
    %cst_38 = arith.constant dense<0.000000e+00> : vector<8x8x8xf32>
    %79 = tpu.matmul %56, %67, %cst_38 {dimension_numbers = #tpu.dot_dimension_numbers<[2], [2], [1], [1], [0, 0, 0, 1, 1, 1], [0], [0]>} : vector<8x8x32xbf16>, vector<8x8x32xbf16>, vector<8x8x8xf32> -> vector<8x8x8xf32>
    "tpu.trace_stop"() : () -> ()
    %80 = vector.shape_cast %24 : vector<8x8xf32> to vector<1x8x8xf32>
    %81 = vector.broadcast %80 : vector<1x8x8xf32> to vector<8x8x8xf32>
    %82 = arith.addf %79, %81 : vector<8x8x8xf32>
    %cst_39 = arith.constant dense<0xFF800000> : vector<8x8xf32>
    %83 = vector.multi_reduction <maximumf>, %82, %cst_39 [2] : vector<8x8x8xf32> to vector<8x8xf32>
    %84 = vector.shape_cast %83 : vector<8x8xf32> to vector<8x8x1xf32>
    %85 = vector.broadcast %84 : vector<8x8x1xf32> to vector<8x8x8xf32>
    %86 = arith.subf %82, %85 : vector<8x8x8xf32>
    %87 = math.exp %86 : vector<8x8x8xf32>
    %cst_40 = arith.constant dense<0.000000e+00> : vector<8x8xf32>
    %88 = vector.multi_reduction <add>, %87, %cst_40 [2] : vector<8x8x8xf32> to vector<8x8xf32>
    %89 = vector.shape_cast %88 : vector<8x8xf32> to vector<8x8x1xf32>
    %90 = tpu.reciprocal %89 {approx = true} : vector<8x8x1xf32> -> vector<8x8x1xf32>
    %91 = vector.broadcast %90 : vector<8x8x1xf32> to vector<8x8x8xf32>
    %92 = arith.mulf %87, %91 : vector<8x8x8xf32>
    %93 = arith.truncf %92 : vector<8x8x8xf32> to vector<8x8x8xbf16>
    "tpu.trace_start"() <{level = 10 : i32, message = "nqk,nkd->nqd"}> : () -> ()
    %cst_41 = arith.constant dense<0.000000e+00> : vector<8x8x32xf32>
    %94 = tpu.matmul %93, %78, %cst_41 {dimension_numbers = #tpu.dot_dimension_numbers<[2], [1], [1], [2], [0, 0, 0, 1, 1, 2], [0], [0]>} : vector<8x8x8xbf16>, vector<8x8x32xbf16>, vector<8x8x32xf32> -> vector<8x8x32xf32>
    "tpu.trace_stop"() : () -> ()
    %95 = vector.shape_cast %94 : vector<8x8x32xf32> to vector<2x4x8x32xf32>
    %96 = vector.extract_strided_slice %95 {offsets = [0, 0, 0, 0], sizes = [2, 1, 8, 32], strides = [1, 1, 1, 1]} : vector<2x4x8x32xf32> to vector<2x1x8x32xf32>
    %97 = vector.shape_cast %96 : vector<2x1x8x32xf32> to vector<2x8x32xf32>
    %98 = vector.extract_strided_slice %95 {offsets = [0, 1, 0, 0], sizes = [2, 1, 8, 32], strides = [1, 1, 1, 1]} : vector<2x4x8x32xf32> to vector<2x1x8x32xf32>
    %99 = vector.shape_cast %98 : vector<2x1x8x32xf32> to vector<2x8x32xf32>
    %100 = vector.extract_strided_slice %95 {offsets = [0, 2, 0, 0], sizes = [2, 1, 8, 32], strides = [1, 1, 1, 1]} : vector<2x4x8x32xf32> to vector<2x1x8x32xf32>
    %101 = vector.shape_cast %100 : vector<2x1x8x32xf32> to vector<2x8x32xf32>
    %102 = vector.extract_strided_slice %95 {offsets = [0, 3, 0, 0], sizes = [2, 1, 8, 32], strides = [1, 1, 1, 1]} : vector<2x4x8x32xf32> to vector<2x1x8x32xf32>
    %103 = vector.shape_cast %102 : vector<2x1x8x32xf32> to vector<2x8x32xf32>
    %104 = tpu.concatenate %97, %99, %101, %103 in 2 : vector<2x8x32xf32>, vector<2x8x32xf32>, vector<2x8x32xf32>, vector<2x8x32xf32> -> vector<2x8x128xf32>
    %105 = vector.shape_cast %104 : vector<2x8x128xf32> to vector<16x128xf32>
    %106 = arith.truncf %105 : vector<16x128xf32> to vector<16x128xbf16>
    %cst_42 = arith.constant dense<0.000000e+00> : vector<16x128xf32>
    %107 = tpu.matmul %106, %7, %cst_42 {dimension_numbers = #tpu.dot_dimension_numbers<[1], [0], [0], [1], [0, 0, 1, 1], [], []>} : vector<16x128xbf16>, vector<128x128xbf16>, vector<16x128xf32> -> vector<16x128xf32>
    %108 = vector.broadcast %25 : vector<1x128xf32> to vector<16x128xf32>
    %109 = arith.addf %107, %108 : vector<16x128xf32>
    %110 = vector.shape_cast %109 : vector<16x128xf32> to vector<2x8x128xf32>
    %111 = arith.addf %3, %110 : vector<2x8x128xf32>
    %cst_43 = arith.constant dense<0.000000e+00> : vector<2x8xf32>
    %112 = vector.multi_reduction <add>, %111, %cst_43 [2] : vector<2x8x128xf32> to vector<2x8xf32>
    %113 = vector.shape_cast %112 : vector<2x8xf32> to vector<2x8x1xf32>
    %cst_44 = arith.constant 1.280000e+02 : f32
    %114 = vector.broadcast %cst_44 : f32 to vector<2x8x1xf32>
    %115 = arith.divf %113, %114 : vector<2x8x1xf32>
    %116 = vector.broadcast %115 : vector<2x8x1xf32> to vector<2x8x128xf32>
    %117 = arith.subf %111, %116 : vector<2x8x128xf32>
    %118 = arith.mulf %117, %117 : vector<2x8x128xf32>
    %cst_45 = arith.constant dense<0.000000e+00> : vector<2x8xf32>
    %119 = vector.multi_reduction <add>, %118, %cst_45 [2] : vector<2x8x128xf32> to vector<2x8xf32>
    %120 = vector.shape_cast %119 : vector<2x8xf32> to vector<2x8x1xf32>
    %cst_46 = arith.constant 1.280000e+02 : f32
    %121 = vector.broadcast %cst_46 : f32 to vector<2x8x1xf32>
    %122 = arith.divf %120, %121 : vector<2x8x1xf32>
    %123 = vector.broadcast %115 : vector<2x8x1xf32> to vector<2x8x128xf32>
    %124 = arith.subf %111, %123 : vector<2x8x128xf32>
    %cst_47 = arith.constant 9.99999974E-6 : f32
    %125 = vector.broadcast %cst_47 : f32 to vector<2x8x1xf32>
    %126 = arith.addf %122, %125 : vector<2x8x1xf32>
    %127 = math.rsqrt %126 : vector<2x8x1xf32>
    %128 = vector.broadcast %127 : vector<2x8x1xf32> to vector<2x8x128xf32>
    %129 = arith.mulf %124, %128 : vector<2x8x128xf32>
    %130 = vector.shape_cast %26 : vector<1x128xf32> to vector<1x1x128xf32>
    %131 = vector.broadcast %130 : vector<1x1x128xf32> to vector<2x8x128xf32>
    %132 = arith.mulf %129, %131 : vector<2x8x128xf32>
    %133 = vector.shape_cast %27 : vector<1x128xf32> to vector<1x1x128xf32>
    %134 = vector.broadcast %133 : vector<1x1x128xf32> to vector<2x8x128xf32>
    %135 = arith.addf %132, %134 : vector<2x8x128xf32>
    %136 = vector.shape_cast %135 : vector<2x8x128xf32> to vector<16x128xf32>
    %137 = arith.truncf %136 : vector<16x128xf32> to vector<16x128xbf16>
    %cst_48 = arith.constant dense<0.000000e+00> : vector<16x128xf32>
    %138 = tpu.matmul %137, %9, %cst_48 {dimension_numbers = #tpu.dot_dimension_numbers<[1], [0], [0], [1], [0, 0, 1, 1], [], []>} : vector<16x128xbf16>, vector<128x128xbf16>, vector<16x128xf32> -> vector<16x128xf32>
    %139 = vector.broadcast %28 : vector<1x128xf32> to vector<16x128xf32>
    %140 = arith.addf %138, %139 : vector<16x128xf32>
    %141 = vector.shape_cast %22 : vector<2x8x128xbf16> to vector<16x128xbf16>
    %cst_49 = arith.constant dense<0.000000e+00> : vector<16x256xf32>
    %142 = tpu.matmul %141, %11, %cst_49 {dimension_numbers = #tpu.dot_dimension_numbers<[1], [0], [0], [1], [0, 0, 1, 1], [], []>} : vector<16x128xbf16>, vector<128x256xbf16>, vector<16x256xf32> -> vector<16x256xf32>
    %143 = vector.broadcast %36 : vector<1x256xf32> to vector<16x256xf32>
    %144 = arith.addf %142, %143 : vector<16x256xf32>
    %145 = vector.extract_strided_slice %144 {offsets = [0, 0], sizes = [16, 128], strides = [1, 1]} : vector<16x256xf32> to vector<16x128xf32>
    %146 = vector.extract_strided_slice %144 {offsets = [0, 128], sizes = [16, 128], strides = [1, 1]} : vector<16x256xf32> to vector<16x128xf32>
    %147 = vector.extract_strided_slice %140 {offsets = [0, 0], sizes = [16, 32], strides = [1, 1]} : vector<16x128xf32> to vector<16x32xf32>
    %148 = vector.shape_cast %147 : vector<16x32xf32> to vector<2x1x8x32xf32>
    %149 = vector.extract_strided_slice %140 {offsets = [0, 32], sizes = [16, 32], strides = [1, 1]} : vector<16x128xf32> to vector<16x32xf32>
    %150 = vector.shape_cast %149 : vector<16x32xf32> to vector<2x1x8x32xf32>
    %151 = vector.extract_strided_slice %140 {offsets = [0, 64], sizes = [16, 32], strides = [1, 1]} : vector<16x128xf32> to vector<16x32xf32>
    %152 = vector.shape_cast %151 : vector<16x32xf32> to vector<2x1x8x32xf32>
    %153 = vector.extract_strided_slice %140 {offsets = [0, 96], sizes = [16, 32], strides = [1, 1]} : vector<16x128xf32> to vector<16x32xf32>
    %154 = vector.shape_cast %153 : vector<16x32xf32> to vector<2x1x8x32xf32>
    %155 = tpu.concatenate %148, %150, %152, %154 in 1 : vector<2x1x8x32xf32>, vector<2x1x8x32xf32>, vector<2x1x8x32xf32>, vector<2x1x8x32xf32> -> vector<2x4x8x32xf32>
    %156 = vector.shape_cast %155 : vector<2x4x8x32xf32> to vector<8x8x32xf32>
    %157 = arith.truncf %156 : vector<8x8x32xf32> to vector<8x8x32xbf16>
    %158 = vector.extract_strided_slice %145 {offsets = [0, 0], sizes = [16, 32], strides = [1, 1]} : vector<16x128xf32> to vector<16x32xf32>
    %159 = vector.shape_cast %158 : vector<16x32xf32> to vector<2x1x8x32xf32>
    %160 = vector.extract_strided_slice %145 {offsets = [0, 32], sizes = [16, 32], strides = [1, 1]} : vector<16x128xf32> to vector<16x32xf32>
    %161 = vector.shape_cast %160 : vector<16x32xf32> to vector<2x1x8x32xf32>
    %162 = vector.extract_strided_slice %145 {offsets = [0, 64], sizes = [16, 32], strides = [1, 1]} : vector<16x128xf32> to vector<16x32xf32>
    %163 = vector.shape_cast %162 : vector<16x32xf32> to vector<2x1x8x32xf32>
    %164 = vector.extract_strided_slice %145 {offsets = [0, 96], sizes = [16, 32], strides = [1, 1]} : vector<16x128xf32> to vector<16x32xf32>
    %165 = vector.shape_cast %164 : vector<16x32xf32> to vector<2x1x8x32xf32>
    %166 = tpu.concatenate %159, %161, %163, %165 in 1 : vector<2x1x8x32xf32>, vector<2x1x8x32xf32>, vector<2x1x8x32xf32>, vector<2x1x8x32xf32> -> vector<2x4x8x32xf32>
    %167 = vector.shape_cast %166 : vector<2x4x8x32xf32> to vector<8x8x32xf32>
    %168 = arith.truncf %167 : vector<8x8x32xf32> to vector<8x8x32xbf16>
    %169 = vector.extract_strided_slice %146 {offsets = [0, 0], sizes = [16, 32], strides = [1, 1]} : vector<16x128xf32> to vector<16x32xf32>
    %170 = vector.shape_cast %169 : vector<16x32xf32> to vector<2x1x8x32xf32>
    %171 = vector.extract_strided_slice %146 {offsets = [0, 32], sizes = [16, 32], strides = [1, 1]} : vector<16x128xf32> to vector<16x32xf32>
    %172 = vector.shape_cast %171 : vector<16x32xf32> to vector<2x1x8x32xf32>
    %173 = vector.extract_strided_slice %146 {offsets = [0, 64], sizes = [16, 32], strides = [1, 1]} : vector<16x128xf32> to vector<16x32xf32>
    %174 = vector.shape_cast %173 : vector<16x32xf32> to vector<2x1x8x32xf32>
    %175 = vector.extract_strided_slice %146 {offsets = [0, 96], sizes = [16, 32], strides = [1, 1]} : vector<16x128xf32> to vector<16x32xf32>
    %176 = vector.shape_cast %175 : vector<16x32xf32> to vector<2x1x8x32xf32>
    %177 = tpu.concatenate %170, %172, %174, %176 in 1 : vector<2x1x8x32xf32>, vector<2x1x8x32xf32>, vector<2x1x8x32xf32>, vector<2x1x8x32xf32> -> vector<2x4x8x32xf32>
    %178 = vector.shape_cast %177 : vector<2x4x8x32xf32> to vector<8x8x32xf32>
    %179 = arith.truncf %178 : vector<8x8x32xf32> to vector<8x8x32xbf16>
    "tpu.trace_start"() <{level = 10 : i32, message = "nqd,nkd->nqk"}> : () -> ()
    %cst_50 = arith.constant dense<0.000000e+00> : vector<8x8x8xf32>
    %180 = tpu.matmul %157, %168, %cst_50 {dimension_numbers = #tpu.dot_dimension_numbers<[2], [2], [1], [1], [0, 0, 0, 1, 1, 1], [0], [0]>} : vector<8x8x32xbf16>, vector<8x8x32xbf16>, vector<8x8x8xf32> -> vector<8x8x8xf32>
    "tpu.trace_stop"() : () -> ()
    %181 = vector.broadcast %23 : vector<8x1x8xf32> to vector<8x8x8xf32>
    %182 = arith.addf %180, %181 : vector<8x8x8xf32>
    %cst_51 = arith.constant dense<0xFF800000> : vector<8x8xf32>
    %183 = vector.multi_reduction <maximumf>, %182, %cst_51 [2] : vector<8x8x8xf32> to vector<8x8xf32>
    %184 = vector.shape_cast %183 : vector<8x8xf32> to vector<8x8x1xf32>
    %185 = vector.broadcast %184 : vector<8x8x1xf32> to vector<8x8x8xf32>
    %186 = arith.subf %182, %185 : vector<8x8x8xf32>
    %187 = math.exp %186 : vector<8x8x8xf32>
    %cst_52 = arith.constant dense<0.000000e+00> : vector<8x8xf32>
    %188 = vector.multi_reduction <add>, %187, %cst_52 [2] : vector<8x8x8xf32> to vector<8x8xf32>
    %189 = vector.shape_cast %188 : vector<8x8xf32> to vector<8x8x1xf32>
    %190 = tpu.reciprocal %189 {approx = true} : vector<8x8x1xf32> -> vector<8x8x1xf32>
    %191 = vector.broadcast %190 : vector<8x8x1xf32> to vector<8x8x8xf32>
    %192 = arith.mulf %187, %191 : vector<8x8x8xf32>
    %193 = arith.truncf %192 : vector<8x8x8xf32> to vector<8x8x8xbf16>
    "tpu.trace_start"() <{level = 10 : i32, message = "nqk,nkd->nqd"}> : () -> ()
    %cst_53 = arith.constant dense<0.000000e+00> : vector<8x8x32xf32>
    %194 = tpu.matmul %193, %179, %cst_53 {dimension_numbers = #tpu.dot_dimension_numbers<[2], [1], [1], [2], [0, 0, 0, 1, 1, 2], [0], [0]>} : vector<8x8x8xbf16>, vector<8x8x32xbf16>, vector<8x8x32xf32> -> vector<8x8x32xf32>
    "tpu.trace_stop"() : () -> ()
    %195 = vector.shape_cast %194 : vector<8x8x32xf32> to vector<2x4x8x32xf32>
    %196 = vector.extract_strided_slice %195 {offsets = [0, 0, 0, 0], sizes = [2, 1, 8, 32], strides = [1, 1, 1, 1]} : vector<2x4x8x32xf32> to vector<2x1x8x32xf32>
    %197 = vector.shape_cast %196 : vector<2x1x8x32xf32> to vector<2x8x32xf32>
    %198 = vector.extract_strided_slice %195 {offsets = [0, 1, 0, 0], sizes = [2, 1, 8, 32], strides = [1, 1, 1, 1]} : vector<2x4x8x32xf32> to vector<2x1x8x32xf32>
    %199 = vector.shape_cast %198 : vector<2x1x8x32xf32> to vector<2x8x32xf32>
    %200 = vector.extract_strided_slice %195 {offsets = [0, 2, 0, 0], sizes = [2, 1, 8, 32], strides = [1, 1, 1, 1]} : vector<2x4x8x32xf32> to vector<2x1x8x32xf32>
    %201 = vector.shape_cast %200 : vector<2x1x8x32xf32> to vector<2x8x32xf32>
    %202 = vector.extract_strided_slice %195 {offsets = [0, 3, 0, 0], sizes = [2, 1, 8, 32], strides = [1, 1, 1, 1]} : vector<2x4x8x32xf32> to vector<2x1x8x32xf32>
    %203 = vector.shape_cast %202 : vector<2x1x8x32xf32> to vector<2x8x32xf32>
    %204 = tpu.concatenate %197, %199, %201, %203 in 2 : vector<2x8x32xf32>, vector<2x8x32xf32>, vector<2x8x32xf32>, vector<2x8x32xf32> -> vector<2x8x128xf32>
    %205 = vector.shape_cast %204 : vector<2x8x128xf32> to vector<16x128xf32>
    %206 = arith.truncf %205 : vector<16x128xf32> to vector<16x128xbf16>
    %cst_54 = arith.constant dense<0.000000e+00> : vector<16x128xf32>
    %207 = tpu.matmul %206, %13, %cst_54 {dimension_numbers = #tpu.dot_dimension_numbers<[1], [0], [0], [1], [0, 0, 1, 1], [], []>} : vector<16x128xbf16>, vector<128x128xbf16>, vector<16x128xf32> -> vector<16x128xf32>
    %208 = vector.broadcast %29 : vector<1x128xf32> to vector<16x128xf32>
    %209 = arith.addf %207, %208 : vector<16x128xf32>
    %210 = vector.shape_cast %209 : vector<16x128xf32> to vector<2x8x128xf32>
    %211 = arith.addf %135, %210 : vector<2x8x128xf32>
    %cst_55 = arith.constant dense<0.000000e+00> : vector<2x8xf32>
    %212 = vector.multi_reduction <add>, %211, %cst_55 [2] : vector<2x8x128xf32> to vector<2x8xf32>
    %213 = vector.shape_cast %212 : vector<2x8xf32> to vector<2x8x1xf32>
    %cst_56 = arith.constant 1.280000e+02 : f32
    %214 = vector.broadcast %cst_56 : f32 to vector<2x8x1xf32>
    %215 = arith.divf %213, %214 : vector<2x8x1xf32>
    %216 = vector.broadcast %215 : vector<2x8x1xf32> to vector<2x8x128xf32>
    %217 = arith.subf %211, %216 : vector<2x8x128xf32>
    %218 = arith.mulf %217, %217 : vector<2x8x128xf32>
    %cst_57 = arith.constant dense<0.000000e+00> : vector<2x8xf32>
    %219 = vector.multi_reduction <add>, %218, %cst_57 [2] : vector<2x8x128xf32> to vector<2x8xf32>
    %220 = vector.shape_cast %219 : vector<2x8xf32> to vector<2x8x1xf32>
    %cst_58 = arith.constant 1.280000e+02 : f32
    %221 = vector.broadcast %cst_58 : f32 to vector<2x8x1xf32>
    %222 = arith.divf %220, %221 : vector<2x8x1xf32>
    %223 = vector.broadcast %215 : vector<2x8x1xf32> to vector<2x8x128xf32>
    %224 = arith.subf %211, %223 : vector<2x8x128xf32>
    %cst_59 = arith.constant 9.99999974E-6 : f32
    %225 = vector.broadcast %cst_59 : f32 to vector<2x8x1xf32>
    %226 = arith.addf %222, %225 : vector<2x8x1xf32>
    %227 = math.rsqrt %226 : vector<2x8x1xf32>
    %228 = vector.broadcast %227 : vector<2x8x1xf32> to vector<2x8x128xf32>
    %229 = arith.mulf %224, %228 : vector<2x8x128xf32>
    %230 = vector.shape_cast %30 : vector<1x128xf32> to vector<1x1x128xf32>
    %231 = vector.broadcast %230 : vector<1x1x128xf32> to vector<2x8x128xf32>
    %232 = arith.mulf %229, %231 : vector<2x8x128xf32>
    %233 = vector.shape_cast %31 : vector<1x128xf32> to vector<1x1x128xf32>
    %234 = vector.broadcast %233 : vector<1x1x128xf32> to vector<2x8x128xf32>
    %235 = arith.addf %232, %234 : vector<2x8x128xf32>
    %236 = vector.shape_cast %235 : vector<2x8x128xf32> to vector<16x128xf32>
    %237 = arith.truncf %236 : vector<16x128xf32> to vector<16x128xbf16>
    %cst_60 = arith.constant dense<0.000000e+00> : vector<16x256xf32>
    %238 = tpu.matmul %237, %15, %cst_60 {dimension_numbers = #tpu.dot_dimension_numbers<[1], [0], [0], [1], [0, 0, 1, 1], [], []>} : vector<16x128xbf16>, vector<128x256xbf16>, vector<16x256xf32> -> vector<16x256xf32>
    %239 = vector.broadcast %37 : vector<1x256xf32> to vector<16x256xf32>
    %240 = arith.addf %238, %239 : vector<16x256xf32>
    %cst_61 = arith.constant 0.000000e+00 : f32
    %241 = vector.broadcast %cst_61 : f32 to vector<16x256xf32>
    %242 = arith.maximumf %240, %241 : vector<16x256xf32>
    %243 = arith.truncf %242 : vector<16x256xf32> to vector<16x256xbf16>
    %cst_62 = arith.constant dense<0.000000e+00> : vector<16x128xf32>
    %244 = tpu.matmul %243, %17, %cst_62 {dimension_numbers = #tpu.dot_dimension_numbers<[1], [0], [0], [1], [0, 0, 1, 1], [], []>} : vector<16x256xbf16>, vector<256x128xbf16>, vector<16x128xf32> -> vector<16x128xf32>
    %245 = vector.broadcast %32 : vector<1x128xf32> to vector<16x128xf32>
    %246 = arith.addf %244, %245 : vector<16x128xf32>
    %247 = vector.shape_cast %246 : vector<16x128xf32> to vector<2x8x128xf32>
    %248 = arith.addf %235, %247 : vector<2x8x128xf32>
    %cst_63 = arith.constant dense<0.000000e+00> : vector<2x8xf32>
    %249 = vector.multi_reduction <add>, %248, %cst_63 [2] : vector<2x8x128xf32> to vector<2x8xf32>
    %250 = vector.shape_cast %249 : vector<2x8xf32> to vector<2x8x1xf32>
    %cst_64 = arith.constant 1.280000e+02 : f32
    %251 = vector.broadcast %cst_64 : f32 to vector<2x8x1xf32>
    %252 = arith.divf %250, %251 : vector<2x8x1xf32>
    %253 = vector.broadcast %252 : vector<2x8x1xf32> to vector<2x8x128xf32>
    %254 = arith.subf %248, %253 : vector<2x8x128xf32>
    %255 = arith.mulf %254, %254 : vector<2x8x128xf32>
    %cst_65 = arith.constant dense<0.000000e+00> : vector<2x8xf32>
    %256 = vector.multi_reduction <add>, %255, %cst_65 [2] : vector<2x8x128xf32> to vector<2x8xf32>
    %257 = vector.shape_cast %256 : vector<2x8xf32> to vector<2x8x1xf32>
    %cst_66 = arith.constant 1.280000e+02 : f32
    %258 = vector.broadcast %cst_66 : f32 to vector<2x8x1xf32>
    %259 = arith.divf %257, %258 : vector<2x8x1xf32>
    %260 = vector.broadcast %252 : vector<2x8x1xf32> to vector<2x8x128xf32>
    %261 = arith.subf %248, %260 : vector<2x8x128xf32>
    %cst_67 = arith.constant 9.99999974E-6 : f32
    %262 = vector.broadcast %cst_67 : f32 to vector<2x8x1xf32>
    %263 = arith.addf %259, %262 : vector<2x8x1xf32>
    %264 = math.rsqrt %263 : vector<2x8x1xf32>
    %265 = vector.broadcast %264 : vector<2x8x1xf32> to vector<2x8x128xf32>
    %266 = arith.mulf %261, %265 : vector<2x8x128xf32>
    %267 = vector.shape_cast %33 : vector<1x128xf32> to vector<1x1x128xf32>
    %268 = vector.broadcast %267 : vector<1x1x128xf32> to vector<2x8x128xf32>
    %269 = arith.mulf %266, %268 : vector<2x8x128xf32>
    %270 = vector.shape_cast %34 : vector<1x128xf32> to vector<1x1x128xf32>
    %271 = vector.broadcast %270 : vector<1x1x128xf32> to vector<2x8x128xf32>
    %272 = arith.addf %269, %271 : vector<2x8x128xf32>
    %c0_68 = arith.constant 0 : index
    %c0_69 = arith.constant 0 : index
    %c0_70 = arith.constant 0 : index
    %273 = vector.load %arg15[%c0_68, %c0_69, %c0_70] : memref<2x8x128xf32, #tpu.memory_space<vmem>>, vector<2x8x128xf32>
    tpu.vector_store %arg15[%c0_68, %c0_69, %c0_70], %272 {strides = array<i32>} : memref<2x8x128xf32, #tpu.memory_space<vmem>>, vector<2x8x128xf32>,
    return
  }
  func.func @transform_0(%arg0: i32, %arg1: i32) -> (i32, i32, i32) {
    %c0_i32 = arith.constant 0 : i32
    %c0_i32_0 = arith.constant 0 : i32
    %c0_i32_1 = arith.constant 0 : i32
    return %arg0, %c0_i32, %c0_i32_0 : i32, i32, i32
  }
  func.func @transform_1(%arg0: i32, %arg1: i32) -> (i32, i32, i32) {
    %c0_i32 = arith.constant 0 : i32
    %c0_i32_0 = arith.constant 0 : i32
    %c0_i32_1 = arith.constant 0 : i32
    return %arg0, %c0_i32, %c0_i32_0 : i32, i32, i32
  }
  func.func @transform_2(%arg0: i32, %arg1: i32) -> (i32, i32, i32) {
    %c0_i32 = arith.constant 0 : i32
    %c0_i32_0 = arith.constant 0 : i32
    %c0_i32_1 = arith.constant 0 : i32
    return %arg0, %c0_i32, %c0_i32_0 : i32, i32, i32
  }
  func.func @transform_3(%arg0: i32, %arg1: i32) -> (i32, i32) {
    %c0_i32 = arith.constant 0 : i32
    %c0_i32_0 = arith.constant 0 : i32
    %c0_i32_1 = arith.constant 0 : i32
    return %c0_i32, %c0_i32_0 : i32, i32
  }
  func.func @transform_4(%arg0: i32, %arg1: i32) -> (i32, i32, i32) {
    %c0_i32 = arith.constant 0 : i32
    %c0_i32_0 = arith.constant 0 : i32
    %c0_i32_1 = arith.constant 0 : i32
    return %arg1, %c0_i32, %c0_i32_0 : i32, i32, i32
  }
  func.func @transform_5(%arg0: i32, %arg1: i32) -> (i32, i32, i32) {
    %c0_i32 = arith.constant 0 : i32
    %c0_i32_0 = arith.constant 0 : i32
    %c0_i32_1 = arith.constant 0 : i32
    return %arg1, %c0_i32, %c0_i32_0 : i32, i32, i32
  }
  func.func @transform_6(%arg0: i32, %arg1: i32) -> (i32, i32, i32) {
    %c0_i32 = arith.constant 0 : i32
    %c0_i32_0 = arith.constant 0 : i32
    %c0_i32_1 = arith.constant 0 : i32
    return %arg1, %c0_i32, %c0_i32_0 : i32, i32, i32
  }
  func.func @transform_7(%arg0: i32, %arg1: i32) -> (i32, i32, i32) {
    %c0_i32 = arith.constant 0 : i32
    %c0_i32_0 = arith.constant 0 : i32
    %c0_i32_1 = arith.constant 0 : i32
    return %arg1, %c0_i32, %c0_i32_0 : i32, i32, i32
  }
  func.func @transform_8(%arg0: i32, %arg1: i32) -> (i32, i32, i32) {
    %c0_i32 = arith.constant 0 : i32
    %c0_i32_0 = arith.constant 0 : i32
    %c0_i32_1 = arith.constant 0 : i32
    return %arg1, %c0_i32, %c0_i32_0 : i32, i32, i32
  }
  func.func @transform_9(%arg0: i32, %arg1: i32) -> (i32, i32, i32) {
    %c0_i32 = arith.constant 0 : i32
    %c0_i32_0 = arith.constant 0 : i32
    %c0_i32_1 = arith.constant 0 : i32
    return %arg1, %c0_i32, %c0_i32_0 : i32, i32, i32
  }
  func.func @transform_10(%arg0: i32, %arg1: i32) -> (i32, i32, i32) {
    %c0_i32 = arith.constant 0 : i32
    %c0_i32_0 = arith.constant 0 : i32
    %c0_i32_1 = arith.constant 0 : i32
    return %arg1, %c0_i32, %c0_i32_0 : i32, i32, i32
  }
  func.func @transform_11(%arg0: i32, %arg1: i32) -> (i32, i32, i32) {
    %c0_i32 = arith.constant 0 : i32
    %c0_i32_0 = arith.constant 0 : i32
    %c0_i32_1 = arith.constant 0 : i32
    return %arg1, %c0_i32, %c0_i32_0 : i32, i32, i32
  }
  func.func @transform_12(%arg0: i32, %arg1: i32) -> (i32, i32, i32) {
    %c0_i32 = arith.constant 0 : i32
    %c0_i32_0 = arith.constant 0 : i32
    %c0_i32_1 = arith.constant 0 : i32
    return %arg1, %c0_i32, %c0_i32_0 : i32, i32, i32
  }
  func.func @transform_13(%arg0: i32, %arg1: i32) -> (i32, i32, i32) {
    %c0_i32 = arith.constant 0 : i32
    %c0_i32_0 = arith.constant 0 : i32
    %c0_i32_1 = arith.constant 0 : i32
    return %arg0, %c0_i32, %c0_i32_0 : i32, i32, i32
  }
}

</mosaic_0001>

<llo_original>
// kernel: transformer_decoder_forward.1
$region0: #{transformer_decoder_forward.1}
  #allocation0 [shape = 'u32[]', space=smem, size = 0x4, offset = 0x4, fixed_abs, tag = 'smem constant byte address 0x4 - core index']
  #allocation1 [shape = 'u32[72,128]{1,0:T(1,128)}', space=vmem, size = 0x9000, scoped, tag = 'internal scratch']
  %s0 = inlined_call_operand.hbm [shape: f32[2,8,128], index: 0, kind: input, shape index: {}, may-alias: {0,13}]
  %s1 = inlined_call_operand.vmem [shape: bf16[2,8,128], index: 1, kind: input, shape index: {}]
  %s2 = inlined_call_operand.vmem [shape: f32[8,1,8], index: 2, kind: input, shape index: {}]
  %s3 = inlined_call_operand.vmem [shape: f32[8,8], index: 3, kind: input, shape index: {}]
  %s4 = inlined_call_operand.hbm [shape: bf16[2,128,384], index: 4, kind: input, shape index: {}]
  %s5 = inlined_call_operand.hbm [shape: bf16[2,128,128], index: 5, kind: input, shape index: {}]
  %s6 = inlined_call_operand.hbm [shape: bf16[2,128,128], index: 6, kind: input, shape index: {}]
  %s7 = inlined_call_operand.vmem [shape: bf16[2,128,256], index: 7, kind: input, shape index: {}]
  %s8 = inlined_call_operand.hbm [shape: bf16[2,128,128], index: 8, kind: input, shape index: {}]
  %s9 = inlined_call_operand.hbm [shape: bf16[2,128,256], index: 9, kind: input, shape index: {}]
  %s10 = inlined_call_operand.hbm [shape: bf16[2,256,128], index: 10, kind: input, shape index: {}]
  %s11 = inlined_call_operand.vmem [shape: f32[2,10,128], index: 11, kind: input, shape index: {}]
  %s12 = inlined_call_operand.vmem [shape: f32[2,3,384], index: 12, kind: input, shape index: {}]
  %s13 = inlined_call_operand.hbm [shape: f32[2,8,128], index: 13, kind: output, shape index: {}, may-alias: {0,13}]
  %s14 = sld [smem:[#allocation0]]
  $region117: #{transformer_decoder_forward.1} parent=0
    _
  %s16 = ssub.s32 1, %s14
  %s17 = scalar_select 0, %s16, %s14
  $region1: #{transformer_decoder_forward.1} parent=0
    #allocation2 [shape = 'u8[8192]{0}', space=vmem, size = 0x2000, scoped, tag = 'input window, operand 0, single buffered']
    #allocation3 [shape = 's32[2]{0}', space=sflag, size = 0x8, scoped, tag = 'scoped memory for transformer_decoder_forward.1']
    #allocation4 [shape = 's32[2]{0}', space=sflag, size = 0x8, scoped, tag = 'scoped memory for transformer_decoder_forward.1']
    #allocation5 [shape = 'u8[196608]{0}', space=vmem, size = 0x30000, scoped, tag = 'input window, operand 4']
    #allocation6 [shape = 's32[2]{0}', space=sflag, size = 0x8, scoped, tag = 'scoped memory for transformer_decoder_forward.1']
    #allocation7 [shape = 'u8[65536]{0}', space=vmem, size = 0x10000, scoped, tag = 'input window, operand 5']
    #allocation8 [shape = 'u8[65536]{0}', space=vmem, size = 0x10000, scoped, tag = 'input window, operand 6']
    #allocation9 [shape = 's32[2]{0}', space=sflag, size = 0x8, scoped, tag = 'scoped memory for transformer_decoder_forward.1']
    #allocation10 [shape = 'u8[65536]{0}', space=vmem, size = 0x10000, scoped, tag = 'input window, operand 8']
    #allocation11 [shape = 'u8[131072]{0}', space=vmem, size = 0x20000, scoped, tag = 'input window, operand 9']
    #allocation12 [shape = 's32[2]{0}', space=sflag, size = 0x8, scoped, tag = 'scoped memory for transformer_decoder_forward.1']
    #allocation13 [shape = 'u8[131072]{0}', space=vmem, size = 0x20000, scoped, tag = 'input window, operand 10']
    #allocation14 [shape = 'u8[8192]{0}', space=vmem, size = 0x2000, scoped, tag = 'output window, operand 0, single buffered']
    %18 = vsyncpa [#allocation3], 0
    %19 = vsyncpa [#allocation6], 0
    %s20 = scalar_lea.sflag [#allocation6], 1
    %21 = vsyncpa %s20, 0
    %22 = vsyncpa [#allocation9], 0
    %s23 = scalar_lea.sflag [#allocation9], 1
    %24 = vsyncpa %s23, 0
    %25 = vsyncpa [#allocation12], 0
    %s26 = scalar_lea.sflag [#allocation12], 1
    %27 = vsyncpa %s26, 0
    %28 = vsyncpa [#allocation4], 0
    loop: start=0, step=1, limit=4
    $region2: #{transformer_decoder_forward.1} parent=1 // loop_pre_header
      _
    $region3: #{transformer_decoder_forward.1} parent=1 // loop_header
      %s30 = sphi 0, %s34
      %p31 = scmp.ge.s32.totalorder %s30, 4
      %s37 = sphi 0, %s49
      %s38 = sphi 0, %s45
      %s39 = sphi 0, %s37
      %s40 = sphi 0, %s38
      %s41 = sphi 0, %s39
      %s42 = sphi 0, %s40
      %s52 = sphi 0, %s54
      %s55 = sphi 0, %s52
      %s56 = sphi 0, %s55
      %s72 = sphi 0, %s56
      %s78 = sphi 0, %s80
      %s81 = sphi 0, %s78
      %s82 = sphi 0, %s81
      %s98 = sphi 0, %s82
      %s104 = sphi 0, %s106
      %s107 = sphi 0, %s104
      %s108 = sphi 0, %s107
      %s124 = sphi 0, %s108
      %s128 = sphi 0, %s128
      %s130 = sphi 0, %s128
      %s131 = sphi 0, %s130
      %s145 = sphi 0, %s131
      %s151 = sphi 0, %s153
      %s154 = sphi 0, %s151
      %s155 = sphi 0, %s154
      %s171 = sphi 0, %s155
      %s177 = sphi 0, %s179
      %s180 = sphi 0, %s177
      %s181 = sphi 0, %s180
      %s197 = sphi 0, %s181
      %s203 = sphi 0, %s205
      %s206 = sphi 0, %s203
      %s207 = sphi 0, %s206
      %s223 = sphi 0, %s207
      %s229 = sphi 0, %s231
      %s232 = sphi 0, %s229
      %s233 = sphi 0, %s232
      %s249 = sphi 0, %s233
      %s255 = sphi 0, %s257
      %s258 = sphi 0, %s255
      %s259 = sphi 0, %s258
      %s275 = sphi 0, %s259
      %s281 = sphi 0, %s283
      %s284 = sphi 0, %s281
      %s285 = sphi 0, %s284
      %s301 = sphi 0, %s285
      %s307 = sphi 0, %s309
      %s310 = sphi 0, %s307
      %s311 = sphi 0, %s310
      %s327 = sphi 0, %s311
      %s333 = sphi 0, %s335
      %s336 = sphi 0, %s333
      %s337 = sphi 0, %s336
      %s353 = sphi 0, %s337
      %s359 = sphi 0, %s361
      %s362 = sphi 0, %s359
      %s363 = sphi 0, %s362
      %s379 = sphi 0, %s363
      %s385 = sphi 0, %s387
      %s388 = sphi 0, %s385
      %s389 = sphi 0, %s388
      %s405 = sphi 0, %s389
    $region4: #{transformer_decoder_forward.1} parent=1 // loop_header_branch
      %33 = sbr.rel (%p31) target = $region8
    $region5: #{transformer_decoder_forward.1} parent=1 // loop_body
      %s35 = ssub.s32 %s30, 1
      %s36 = ssub.s32 %s30, 2
      %s43 = sadd.s32 1, %s38
      %p44 = scmp.ge.s32.totalorder %s43, 2
      %s45 = scalar_select %p44, 0, %s43
      %s46 = sadd.s32 1, %s37
      %s47 = scalar_select %p44, %s46, %s37
      %p48 = scmp.ge.s32.totalorder %s47, 1
      %s49 = scalar_select %p48, 0, %s47
      %s50 = ssub.s32 %s37, %s49
      %p51 = scmp.eq.s32.totalorder %s50, 0
      %s53 = sadd.s32 %s52, 1
      %s54 = scalar_select %p51, %s52, %s53
      %p57 = pneg %p51
      %p58 = scmp.eq.s32.totalorder %s30, 1
      %p59 = por %p57, %p58
      %p60 = scmp.ne.s32.totalorder %s52, %s55
      %p61 = scmp.eq.s32.totalorder %s30, 0
      %p62 = por %p60, %p61
      %p63 = scmp.ne.s32.totalorder %s52, %s55
      %p64 = scmp.eq.s32.totalorder %s35, 1
      %p65 = por %p63, %p64
      %p66 = scmp.ne.s32.totalorder %s55, %s56
      %p67 = scmp.eq.s32.totalorder %s35, 0
      %p68 = por %p66, %p67
      %p69 = scmp.ne.s32.totalorder %s55, %s56
      %p70 = scmp.eq.s32.totalorder %s36, 1
      %p71 = por %p69, %p70
      %p73 = scmp.ne.s32.totalorder %s56, %s72
      %p74 = scmp.eq.s32.totalorder %s36, 0
      %p75 = por %p73, %p74
      %s76 = ssub.s32 %s37, %s49
      %p77 = scmp.eq.s32.totalorder %s76, 0
      %s79 = sadd.s32 %s78, 1
      %s80 = scalar_select %p77, %s78, %s79
      %p83 = pneg %p77
      %p84 = scmp.eq.s32.totalorder %s30, 1
      %p85 = por %p83, %p84
      %p86 = scmp.ne.s32.totalorder %s78, %s81
      %p87 = scmp.eq.s32.totalorder %s30, 0
      %p88 = por %p86, %p87
      %p89 = scmp.ne.s32.totalorder %s78, %s81
      %p90 = scmp.eq.s32.totalorder %s35, 1
      %p91 = por %p89, %p90
      %p92 = scmp.ne.s32.totalorder %s81, %s82
      %p93 = scmp.eq.s32.totalorder %s35, 0
      %p94 = por %p92, %p93
      %p95 = scmp.ne.s32.totalorder %s81, %s82
      %p96 = scmp.eq.s32.totalorder %s36, 1
      %p97 = por %p95, %p96
      %p99 = scmp.ne.s32.totalorder %s82, %s98
      %p100 = scmp.eq.s32.totalorder %s36, 0
      %p101 = por %p99, %p100
      %s102 = ssub.s32 %s37, %s49
      %p103 = scmp.eq.s32.totalorder %s102, 0
      %s105 = sadd.s32 %s104, 1
      %s106 = scalar_select %p103, %s104, %s105
      %p109 = pneg %p103
      %p110 = scmp.eq.s32.totalorder %s30, 1
      %p111 = por %p109, %p110
      %p112 = scmp.ne.s32.totalorder %s104, %s107
      %p113 = scmp.eq.s32.totalorder %s30, 0
      %p114 = por %p112, %p113
      %p115 = scmp.ne.s32.totalorder %s104, %s107
      %p116 = scmp.eq.s32.totalorder %s35, 1
      %p117 = por %p115, %p116
      %p118 = scmp.ne.s32.totalorder %s107, %s108
      %p119 = scmp.eq.s32.totalorder %s35, 0
      %p120 = por %p118, %p119
      %p121 = scmp.ne.s32.totalorder %s107, %s108
      %p122 = scmp.eq.s32.totalorder %s36, 1
      %p123 = por %p121, %p122
      %p125 = scmp.ne.s32.totalorder %s108, %s124
      %p126 = scmp.eq.s32.totalorder %s36, 0
      %p127 = por %p125, %p126
      %s129 = sadd.s32 %s128, 1
      %p132 = scmp.eq.s32.totalorder %s30, 1
      %p133 = scmp.ne.s32.totalorder %s128, %s130
      %p134 = scmp.eq.s32.totalorder %s30, 0
      %p135 = por %p133, %p134
      %p136 = scmp.ne.s32.totalorder %s128, %s130
      %p137 = scmp.eq.s32.totalorder %s35, 1
      %p138 = por %p136, %p137
      %p139 = scmp.ne.s32.totalorder %s130, %s131
      %p140 = scmp.eq.s32.totalorder %s35, 0
      %p141 = por %p139, %p140
      %p142 = scmp.ne.s32.totalorder %s130, %s131
      %p143 = scmp.eq.s32.totalorder %s36, 1
      %p144 = por %p142, %p143
      %p146 = scmp.ne.s32.totalorder %s131, %s145
      %p147 = scmp.eq.s32.totalorder %s36, 0
      %p148 = por %p146, %p147
      %s149 = ssub.s32 %s38, %s45
      %p150 = scmp.eq.s32.totalorder %s149, 0
      %s152 = sadd.s32 %s151, 1
      %s153 = scalar_select %p150, %s151, %s152
      %p156 = pneg %p150
      %p157 = scmp.eq.s32.totalorder %s30, 1
      %p158 = por %p156, %p157
      %p159 = scmp.ne.s32.totalorder %s151, %s154
      %p160 = scmp.eq.s32.totalorder %s30, 0
      %p161 = por %p159, %p160
      %p162 = scmp.ne.s32.totalorder %s151, %s154
      %p163 = scmp.eq.s32.totalorder %s35, 1
      %p164 = por %p162, %p163
      %p165 = scmp.ne.s32.totalorder %s154, %s155
      %p166 = scmp.eq.s32.totalorder %s35, 0
      %p167 = por %p165, %p166
      %p168 = scmp.ne.s32.totalorder %s154, %s155
      %p169 = scmp.eq.s32.totalorder %s36, 1
      %p170 = por %p168, %p169
      %p172 = scmp.ne.s32.totalorder %s155, %s171
      %p173 = scmp.eq.s32.totalorder %s36, 0
      %p174 = por %p172, %p173
      %s175 = ssub.s32 %s38, %s45
      %p176 = scmp.eq.s32.totalorder %s175, 0
      %s178 = sadd.s32 %s177, 1
      %s179 = scalar_select %p176, %s177, %s178
      %p182 = pneg %p176
      %p183 = scmp.eq.s32.totalorder %s30, 1
      %p184 = por %p182, %p183
      %p185 = scmp.ne.s32.totalorder %s177, %s180
      %p186 = scmp.eq.s32.totalorder %s30, 0
      %p187 = por %p185, %p186
      %p188 = scmp.ne.s32.totalorder %s177, %s180
      %p189 = scmp.eq.s32.totalorder %s35, 1
      %p190 = por %p188, %p189
      %p191 = scmp.ne.s32.totalorder %s180, %s181
      %p192 = scmp.eq.s32.totalorder %s35, 0
      %p193 = por %p191, %p192
      %p194 = scmp.ne.s32.totalorder %s180, %s181
      %p195 = scmp.eq.s32.totalorder %s36, 1
      %p196 = por %p194, %p195
      %p198 = scmp.ne.s32.totalorder %s181, %s197
      %p199 = scmp.eq.s32.totalorder %s36, 0
      %p200 = por %p198, %p199
      %s201 = ssub.s32 %s38, %s45
      %p202 = scmp.eq.s32.totalorder %s201, 0
      %s204 = sadd.s32 %s203, 1
      %s205 = scalar_select %p202, %s203, %s204
      %p208 = pneg %p202
      %p209 = scmp.eq.s32.totalorder %s30, 1
      %p210 = por %p208, %p209
      %p211 = scmp.ne.s32.totalorder %s203, %s206
      %p212 = scmp.eq.s32.totalorder %s30, 0
      %p213 = por %p211, %p212
      %p214 = scmp.ne.s32.totalorder %s203, %s206
      %p215 = scmp.eq.s32.totalorder %s35, 1
      %p216 = por %p214, %p215
      %p217 = scmp.ne.s32.totalorder %s206, %s207
      %p218 = scmp.eq.s32.totalorder %s35, 0
      %p219 = por %p217, %p218
      %p220 = scmp.ne.s32.totalorder %s206, %s207
      %p221 = scmp.eq.s32.totalorder %s36, 1
      %p222 = por %p220, %p221
      %p224 = scmp.ne.s32.totalorder %s207, %s223
      %p225 = scmp.eq.s32.totalorder %s36, 0
      %p226 = por %p224, %p225
      %s227 = ssub.s32 %s38, %s45
      %p228 = scmp.eq.s32.totalorder %s227, 0
      %s230 = sadd.s32 %s229, 1
      %s231 = scalar_select %p228, %s229, %s230
      %p234 = pneg %p228
      %p235 = scmp.eq.s32.totalorder %s30, 1
      %p236 = por %p234, %p235
      %p237 = scmp.ne.s32.totalorder %s229, %s232
      %p238 = scmp.eq.s32.totalorder %s30, 0
      %p239 = por %p237, %p238
      %p240 = scmp.ne.s32.totalorder %s229, %s232
      %p241 = scmp.eq.s32.totalorder %s35, 1
      %p242 = por %p240, %p241
      %p243 = scmp.ne.s32.totalorder %s232, %s233
      %p244 = scmp.eq.s32.totalorder %s35, 0
      %p245 = por %p243, %p244
      %p246 = scmp.ne.s32.totalorder %s232, %s233
      %p247 = scmp.eq.s32.totalorder %s36, 1
      %p248 = por %p246, %p247
      %p250 = scmp.ne.s32.totalorder %s233, %s249
      %p251 = scmp.eq.s32.totalorder %s36, 0
      %p252 = por %p250, %p251
      %s253 = ssub.s32 %s38, %s45
      %p254 = scmp.eq.s32.totalorder %s253, 0
      %s256 = sadd.s32 %s255, 1
      %s257 = scalar_select %p254, %s255, %s256
      %p260 = pneg %p254
      %p261 = scmp.eq.s32.totalorder %s30, 1
      %p262 = por %p260, %p261
      %p263 = scmp.ne.s32.totalorder %s255, %s258
      %p264 = scmp.eq.s32.totalorder %s30, 0
      %p265 = por %p263, %p264
      %p266 = scmp.ne.s32.totalorder %s255, %s258
      %p267 = scmp.eq.s32.totalorder %s35, 1
      %p268 = por %p266, %p267
      %p269 = scmp.ne.s32.totalorder %s258, %s259
      %p270 = scmp.eq.s32.totalorder %s35, 0
      %p271 = por %p269, %p270
      %p272 = scmp.ne.s32.totalorder %s258, %s259
      %p273 = scmp.eq.s32.totalorder %s36, 1
      %p274 = por %p272, %p273
      %p276 = scmp.ne.s32.totalorder %s259, %s275
      %p277 = scmp.eq.s32.totalorder %s36, 0
      %p278 = por %p276, %p277
      %s279 = ssub.s32 %s38, %s45
      %p280 = scmp.eq.s32.totalorder %s279, 0
      %s282 = sadd.s32 %s281, 1
      %s283 = scalar_select %p280, %s281, %s282
      %p286 = pneg %p280
      %p287 = scmp.eq.s32.totalorder %s30, 1
      %p288 = por %p286, %p287
      %p289 = scmp.ne.s32.totalorder %s281, %s284
      %p290 = scmp.eq.s32.totalorder %s30, 0
      %p291 = por %p289, %p290
      %p292 = scmp.ne.s32.totalorder %s281, %s284
      %p293 = scmp.eq.s32.totalorder %s35, 1
      %p294 = por %p292, %p293
      %p295 = scmp.ne.s32.totalorder %s284, %s285
      %p296 = scmp.eq.s32.totalorder %s35, 0
      %p297 = por %p295, %p296
      %p298 = scmp.ne.s32.totalorder %s284, %s285
      %p299 = scmp.eq.s32.totalorder %s36, 1
      %p300 = por %p298, %p299
      %p302 = scmp.ne.s32.totalorder %s285, %s301
      %p303 = scmp.eq.s32.totalorder %s36, 0
      %p304 = por %p302, %p303
      %s305 = ssub.s32 %s38, %s45
      %p306 = scmp.eq.s32.totalorder %s305, 0
      %s308 = sadd.s32 %s307, 1
      %s309 = scalar_select %p306, %s307, %s308
      %p312 = pneg %p306
      %p313 = scmp.eq.s32.totalorder %s30, 1
      %p314 = por %p312, %p313
      %p315 = scmp.ne.s32.totalorder %s307, %s310
      %p316 = scmp.eq.s32.totalorder %s30, 0
      %p317 = por %p315, %p316
      %p318 = scmp.ne.s32.totalorder %s307, %s310
      %p319 = scmp.eq.s32.totalorder %s35, 1
      %p320 = por %p318, %p319
      %p321 = scmp.ne.s32.totalorder %s310, %s311
      %p322 = scmp.eq.s32.totalorder %s35, 0
      %p323 = por %p321, %p322
      %p324 = scmp.ne.s32.totalorder %s310, %s311
      %p325 = scmp.eq.s32.totalorder %s36, 1
      %p326 = por %p324, %p325
      %p328 = scmp.ne.s32.totalorder %s311, %s327
      %p329 = scmp.eq.s32.totalorder %s36, 0
      %p330 = por %p328, %p329
      %s331 = ssub.s32 %s38, %s45
      %p332 = scmp.eq.s32.totalorder %s331, 0
      %s334 = sadd.s32 %s333, 1
      %s335 = scalar_select %p332, %s333, %s334
      %p338 = pneg %p332
      %p339 = scmp.eq.s32.totalorder %s30, 1
      %p340 = por %p338, %p339
      %p341 = scmp.ne.s32.totalorder %s333, %s336
      %p342 = scmp.eq.s32.totalorder %s30, 0
      %p343 = por %p341, %p342
      %p344 = scmp.ne.s32.totalorder %s333, %s336
      %p345 = scmp.eq.s32.totalorder %s35, 1
      %p346 = por %p344, %p345
      %p347 = scmp.ne.s32.totalorder %s336, %s337
      %p348 = scmp.eq.s32.totalorder %s35, 0
      %p349 = por %p347, %p348
      %p350 = scmp.ne.s32.totalorder %s336, %s337
      %p351 = scmp.eq.s32.totalorder %s36, 1
      %p352 = por %p350, %p351
      %p354 = scmp.ne.s32.totalorder %s337, %s353
      %p355 = scmp.eq.s32.totalorder %s36, 0
      %p356 = por %p354, %p355
      %s357 = ssub.s32 %s38, %s45
      %p358 = scmp.eq.s32.totalorder %s357, 0
      %s360 = sadd.s32 %s359, 1
      %s361 = scalar_select %p358, %s359, %s360
      %p364 = pneg %p358
      %p365 = scmp.eq.s32.totalorder %s30, 1
      %p366 = por %p364, %p365
      %p367 = scmp.ne.s32.totalorder %s359, %s362
      %p368 = scmp.eq.s32.totalorder %s30, 0
      %p369 = por %p367, %p368
      %p370 = scmp.ne.s32.totalorder %s359, %s362
      %p371 = scmp.eq.s32.totalorder %s35, 1
      %p372 = por %p370, %p371
      %p373 = scmp.ne.s32.totalorder %s362, %s363
      %p374 = scmp.eq.s32.totalorder %s35, 0
      %p375 = por %p373, %p374
      %p376 = scmp.ne.s32.totalorder %s362, %s363
      %p377 = scmp.eq.s32.totalorder %s36, 1
      %p378 = por %p376, %p377
      %p380 = scmp.ne.s32.totalorder %s363, %s379
      %p381 = scmp.eq.s32.totalorder %s36, 0
      %p382 = por %p380, %p381
      %s383 = ssub.s32 %s37, %s49
      %p384 = scmp.eq.s32.totalorder %s383, 0
      %s386 = sadd.s32 %s385, 1
      %s387 = scalar_select %p384, %s385, %s386
      %p390 = pneg %p384
      %p391 = scmp.eq.s32.totalorder %s30, 1
      %p392 = por %p390, %p391
      %p393 = scmp.ne.s32.totalorder %s385, %s388
      %p394 = scmp.eq.s32.totalorder %s30, 0
      %p395 = por %p393, %p394
      %p396 = scmp.ne.s32.totalorder %s385, %s388
      %p397 = scmp.eq.s32.totalorder %s35, 1
      %p398 = por %p396, %p397
      %p399 = scmp.ne.s32.totalorder %s388, %s389
      %p400 = scmp.eq.s32.totalorder %s35, 0
      %p401 = por %p399, %p400
      %p402 = scmp.ne.s32.totalorder %s388, %s389
      %p403 = scmp.eq.s32.totalorder %s36, 1
      %p404 = por %p402, %p403
      %p406 = scmp.ne.s32.totalorder %s389, %s405
      %p407 = scmp.eq.s32.totalorder %s36, 0
      %p408 = por %p406, %p407
      %p409 = scmp.le.s32.totalorder 1, %s30
      %p410 = scmp.lt.s32.totalorder %s30, 3
      %p411 = pnand %p409, %p410
      %p412 = pneg %p411
      // Predicated region
      $region9: #{transformer_decoder_forward.1} parent=5 // pred_check
        _
      $region10: #{transformer_decoder_forward.1} parent=5 // pred_check_branch
        %414 = sbr.rel (%p411) target = $region12
      $region11: #{transformer_decoder_forward.1} parent=5 // pred_region
        %s415 = ssub.s32 %s30, 1
        // Predicated region
        $region13: #{transformer_decoder_forward.1} parent=11 // pred_check
          %p416 = pneg %p68
        $region14: #{transformer_decoder_forward.1} parent=11 // pred_check_branch
          %418 = sbr.rel (%p416) target = $region16
        $region15: #{transformer_decoder_forward.1} parent=11 // pred_region
          %s419 = smul.u32 2, %s39
          %421 = vsyncadd [#allocation3], 0
          %s422 = smul.addr %s419, 8
          %s423 = scalar_lea.hbm %s0, %s422
          %s424 = sshll.u32 %s423, 4
          %s425 = int_to_ptr.hbm [resolvable:$true] %s424
          %s426 = sshll.u32 [#allocation2], 4
          %s427 = int_to_ptr.vmem [resolvable:$true] %s426
          %432 = dma.hbm_to_vmem [thread:$0]  %s425, 256, %s427, [#allocation3], 128, 128, 8
        $region16: #{transformer_decoder_forward.1} parent=11 // pred_fallthru
          _
        // Predicated region
        $region17: #{transformer_decoder_forward.1} parent=11 // pred_check
          %p433 = pneg %p94
        $region18: #{transformer_decoder_forward.1} parent=11 // pred_check_branch
          %435 = sbr.rel (%p433) target = $region20
        $region19: #{transformer_decoder_forward.1} parent=11 // pred_region
          %s436 = smul.u32 2, %s39
          %p437 = scmp.lt.s32.totalorder %s436, 1
          %s438 = scalar_select %p437, %s436, 1
          %s439 = smul.addr %s438, 4
          %s440 = scalar_lea.vmem %s1, %s439
          %s441 = smul.u32 2, %s39
        $region20: #{transformer_decoder_forward.1} parent=11 // pred_fallthru
          _
        // Predicated region
        $region21: #{transformer_decoder_forward.1} parent=11 // pred_check
          %p442 = pneg %p120
        $region22: #{transformer_decoder_forward.1} parent=11 // pred_check_branch
          %444 = sbr.rel (%p442) target = $region24
        $region23: #{transformer_decoder_forward.1} parent=11 // pred_region
          %s445 = smul.u32 8, %s39
          %p446 = scmp.lt.s32.totalorder %s445, 7
          %s447 = scalar_select %p446, %s445, 7
          %s448 = scalar_lea.vmem %s2, %s447
          %s449 = smul.u32 8, %s39
        $region24: #{transformer_decoder_forward.1} parent=11 // pred_fallthru
          _
        // Predicated region
        $region25: #{transformer_decoder_forward.1} parent=11 // pred_check
          %p450 = pneg %p141
        $region26: #{transformer_decoder_forward.1} parent=11 // pred_check_branch
          %452 = sbr.rel (%p450) target = $region28
        $region27: #{transformer_decoder_forward.1} parent=11 // pred_region
          _
        $region28: #{transformer_decoder_forward.1} parent=11 // pred_fallthru
          _
      $region12: #{transformer_decoder_forward.1} parent=5 // pred_fallthru
        _
      %p453 = scmp.lt.s32.totalorder %s30, 2
      // Predicated region
      $region29: #{transformer_decoder_forward.1} parent=5 // pred_check
        %p454 = pneg %p453
      $region30: #{transformer_decoder_forward.1} parent=5 // pred_check_branch
        %456 = sbr.rel (%p454) target = $region32
      $region31: #{transformer_decoder_forward.1} parent=5 // pred_region
        // Predicated region
        $region33: #{transformer_decoder_forward.1} parent=31 // pred_check
          %p457 = pneg %p161
        $region34: #{transformer_decoder_forward.1} parent=31 // pred_check_branch
          %459 = sbr.rel (%p457) target = $region36
        $region35: #{transformer_decoder_forward.1} parent=31 // pred_region
          %s460 = sand.u32 %s30, 1
          %s461 = scalar_lea.sflag [#allocation6], %s460
          %s462 = sand.u32 %s151, 1
          %s463 = smul.addr %s462, 192
          %s464 = scalar_lea.vmem [#allocation5], %s463
          %466 = vsyncadd %s461, 0
          %s467 = smul.addr %s38, 48
          %s468 = smul.addr %s467, 4
          %s469 = scalar_lea.hbm %s4, %s468
          %s470 = sshll.u32 %s469, 4
          %s471 = int_to_ptr.hbm [resolvable:$true] %s470
          %s472 = sshll.u32 %s464, 4
          %s473 = int_to_ptr.vmem [resolvable:$true] %s472
          %478 = dma.hbm_to_vmem [thread:$0]  %s471, 3072, %s473, %s461, 192, 192, 12
        $region36: #{transformer_decoder_forward.1} parent=31 // pred_fallthru
          _
        // Predicated region
        $region37: #{transformer_decoder_forward.1} parent=31 // pred_check
          %p479 = pneg %p187
        $region38: #{transformer_decoder_forward.1} parent=31 // pred_check_branch
          %481 = sbr.rel (%p479) target = $region40
        $region39: #{transformer_decoder_forward.1} parent=31 // pred_region
          %s482 = sand.u32 %s30, 1
          %s483 = scalar_lea.sflag [#allocation6], %s482
          %s484 = sand.u32 %s177, 1
          %s485 = smul.addr %s484, 64
          %s486 = scalar_lea.vmem [#allocation7], %s485
          %488 = vsyncadd %s483, 0
          %s489 = smul.addr %s38, 16
          %s490 = smul.addr %s489, 4
          %s491 = scalar_lea.hbm %s5, %s490
          %s492 = sshll.u32 %s491, 4
          %s493 = int_to_ptr.hbm [resolvable:$true] %s492
          %s494 = sshll.u32 %s486, 4
          %s495 = int_to_ptr.vmem [resolvable:$true] %s494
          %500 = dma.hbm_to_vmem [thread:$0]  %s493, 1024, %s495, %s483, 64, 64, 4
        $region40: #{transformer_decoder_forward.1} parent=31 // pred_fallthru
          _
        // Predicated region
        $region41: #{transformer_decoder_forward.1} parent=31 // pred_check
          %p501 = pneg %p213
        $region42: #{transformer_decoder_forward.1} parent=31 // pred_check_branch
          %503 = sbr.rel (%p501) target = $region44
        $region43: #{transformer_decoder_forward.1} parent=31 // pred_region
          %s504 = sand.u32 %s30, 1
          %s505 = scalar_lea.sflag [#allocation9], %s504
          %s506 = sand.u32 %s203, 1
          %s507 = smul.addr %s506, 64
          %s508 = scalar_lea.vmem [#allocation8], %s507
          %510 = vsyncadd %s505, 0
          %s511 = smul.addr %s38, 16
          %s512 = smul.addr %s511, 4
          %s513 = scalar_lea.hbm %s6, %s512
          %s514 = sshll.u32 %s513, 4
          %s515 = int_to_ptr.hbm [resolvable:$true] %s514
          %s516 = sshll.u32 %s508, 4
          %s517 = int_to_ptr.vmem [resolvable:$true] %s516
          %522 = dma.hbm_to_vmem [thread:$0]  %s515, 1024, %s517, %s505, 64, 64, 4
        $region44: #{transformer_decoder_forward.1} parent=31 // pred_fallthru
          _
        // Predicated region
        $region45: #{transformer_decoder_forward.1} parent=31 // pred_check
          %p523 = pneg %p239
        $region46: #{transformer_decoder_forward.1} parent=31 // pred_check_branch
          %525 = sbr.rel (%p523) target = $region48
        $region47: #{transformer_decoder_forward.1} parent=31 // pred_region
          %p526 = scmp.lt.s32.totalorder %s38, 1
          %s527 = scalar_select %p526, %s38, 1
          %s528 = smul.addr %s527, 32
          %s529 = smul.addr %s528, 4
          %s530 = scalar_lea.vmem %s7, %s529
        $region48: #{transformer_decoder_forward.1} parent=31 // pred_fallthru
          _
        // Predicated region
        $region49: #{transformer_decoder_forward.1} parent=31 // pred_check
          %p531 = pneg %p265
        $region50: #{transformer_decoder_forward.1} parent=31 // pred_check_branch
          %533 = sbr.rel (%p531) target = $region52
        $region51: #{transformer_decoder_forward.1} parent=31 // pred_region
          %s534 = sand.u32 %s30, 1
          %s535 = scalar_lea.sflag [#allocation9], %s534
          %s536 = sand.u32 %s255, 1
          %s537 = smul.addr %s536, 64
          %s538 = scalar_lea.vmem [#allocation10], %s537
          %540 = vsyncadd %s535, 0
          %s541 = smul.addr %s38, 16
          %s542 = smul.addr %s541, 4
          %s543 = scalar_lea.hbm %s8, %s542
          %s544 = sshll.u32 %s543, 4
          %s545 = int_to_ptr.hbm [resolvable:$true] %s544
          %s546 = sshll.u32 %s538, 4
          %s547 = int_to_ptr.vmem [resolvable:$true] %s546
          %552 = dma.hbm_to_vmem [thread:$0]  %s545, 1024, %s547, %s535, 64, 64, 4
        $region52: #{transformer_decoder_forward.1} parent=31 // pred_fallthru
          _
        // Predicated region
        $region53: #{transformer_decoder_forward.1} parent=31 // pred_check
          %p553 = pneg %p291
        $region54: #{transformer_decoder_forward.1} parent=31 // pred_check_branch
          %555 = sbr.rel (%p553) target = $region56
        $region55: #{transformer_decoder_forward.1} parent=31 // pred_region
          %s556 = sand.u32 %s30, 1
          %s557 = scalar_lea.sflag [#allocation12], %s556
          %s558 = sand.u32 %s281, 1
          %s559 = smul.addr %s558, 128
          %s560 = scalar_lea.vmem [#allocation11], %s559
          %562 = vsyncadd %s557, 0
          %s563 = smul.addr %s38, 32
          %s564 = smul.addr %s563, 4
          %s565 = scalar_lea.hbm %s9, %s564
          %s566 = sshll.u32 %s565, 4
          %s567 = int_to_ptr.hbm [resolvable:$true] %s566
          %s568 = sshll.u32 %s560, 4
          %s569 = int_to_ptr.vmem [resolvable:$true] %s568
          %574 = dma.hbm_to_vmem [thread:$0]  %s567, 2048, %s569, %s557, 128, 128, 8
        $region56: #{transformer_decoder_forward.1} parent=31 // pred_fallthru
          _
        // Predicated region
        $region57: #{transformer_decoder_forward.1} parent=31 // pred_check
          %p575 = pneg %p317
        $region58: #{transformer_decoder_forward.1} parent=31 // pred_check_branch
          %577 = sbr.rel (%p575) target = $region60
        $region59: #{transformer_decoder_forward.1} parent=31 // pred_region
          %s578 = sand.u32 %s30, 1
          %s579 = scalar_lea.sflag [#allocation12], %s578
          %s580 = sand.u32 %s307, 1
          %s581 = smul.addr %s580, 128
          %s582 = scalar_lea.vmem [#allocation13], %s581
          %584 = vsyncadd %s579, 0
          %s585 = smul.addr %s38, 32
          %s586 = smul.addr %s585, 4
          %s587 = scalar_lea.hbm %s10, %s586
          %s588 = sshll.u32 %s587, 4
          %s589 = int_to_ptr.hbm [resolvable:$true] %s588
          %s590 = sshll.u32 %s582, 4
          %s591 = int_to_ptr.vmem [resolvable:$true] %s590
          %596 = dma.hbm_to_vmem [thread:$0]  %s589, 2048, %s591, %s579, 64, 64, 4
        $region60: #{transformer_decoder_forward.1} parent=31 // pred_fallthru
          _
        // Predicated region
        $region61: #{transformer_decoder_forward.1} parent=31 // pred_check
          %p597 = pneg %p343
        $region62: #{transformer_decoder_forward.1} parent=31 // pred_check_branch
          %599 = sbr.rel (%p597) target = $region64
        $region63: #{transformer_decoder_forward.1} parent=31 // pred_region
          %p600 = scmp.lt.s32.totalorder %s38, 1
          %s601 = scalar_select %p600, %s38, 1
          %s602 = smul.addr %s601, 2
          %s603 = smul.addr %s602, 8
          %s604 = scalar_lea.vmem %s11, %s603
        $region64: #{transformer_decoder_forward.1} parent=31 // pred_fallthru
          _
        // Predicated region
        $region65: #{transformer_decoder_forward.1} parent=31 // pred_check
          %p605 = pneg %p369
        $region66: #{transformer_decoder_forward.1} parent=31 // pred_check_branch
          %607 = sbr.rel (%p605) target = $region68
        $region67: #{transformer_decoder_forward.1} parent=31 // pred_region
          %p608 = scmp.lt.s32.totalorder %s38, 1
          %s609 = scalar_select %p608, %s38, 1
          %s610 = smul.addr %s609, 3
          %s611 = smul.addr %s610, 4
          %s612 = scalar_lea.vmem %s12, %s611
        $region68: #{transformer_decoder_forward.1} parent=31 // pred_fallthru
          _
      $region32: #{transformer_decoder_forward.1} parent=5 // pred_fallthru
        _
      %p613 = scmp.le.s32.totalorder 1, %s30
      %p614 = scmp.lt.s32.totalorder %s30, 3
      %p615 = pnand %p613, %p614
      %p616 = pneg %p615
      // Predicated region
      $region69: #{transformer_decoder_forward.1} parent=5 // pred_check
        _
      $region70: #{transformer_decoder_forward.1} parent=5 // pred_check_branch
        %618 = sbr.rel (%p615) target = $region72
      $region71: #{transformer_decoder_forward.1} parent=5 // pred_region
        %s619 = ssub.s32 %s30, 1
        // Predicated region
        $region73: #{transformer_decoder_forward.1} parent=71 // pred_check
          %p620 = pneg %p68
        $region74: #{transformer_decoder_forward.1} parent=71 // pred_check_branch
          %622 = sbr.rel (%p620) target = $region76
        $region75: #{transformer_decoder_forward.1} parent=71 // pred_region
          %624 = dma.done [#allocation3], 256
        $region76: #{transformer_decoder_forward.1} parent=71 // pred_fallthru
          _
        %s625 = sand.u32 %s35, 1
        %s626 = scalar_lea.sflag [#allocation6], %s625
        %s627 = sand.u32 %s154, 1
        %s628 = smul.addr %s627, 192
        %s629 = scalar_lea.vmem [#allocation5], %s628
        // Predicated region
        $region77: #{transformer_decoder_forward.1} parent=71 // pred_check
          %p630 = pneg %p167
        $region78: #{transformer_decoder_forward.1} parent=71 // pred_check_branch
          %632 = sbr.rel (%p630) target = $region80
        $region79: #{transformer_decoder_forward.1} parent=71 // pred_region
          %634 = dma.done %s626, 3072
        $region80: #{transformer_decoder_forward.1} parent=71 // pred_fallthru
          _
        %s635 = sand.u32 %s35, 1
        %s636 = scalar_lea.sflag [#allocation6], %s635
        %s637 = sand.u32 %s180, 1
        %s638 = smul.addr %s637, 64
        %s639 = scalar_lea.vmem [#allocation7], %s638
        // Predicated region
        $region81: #{transformer_decoder_forward.1} parent=71 // pred_check
          %p640 = pneg %p193
        $region82: #{transformer_decoder_forward.1} parent=71 // pred_check_branch
          %642 = sbr.rel (%p640) target = $region84
        $region83: #{transformer_decoder_forward.1} parent=71 // pred_region
          %644 = dma.done %s636, 1024
        $region84: #{transformer_decoder_forward.1} parent=71 // pred_fallthru
          _
        %s645 = sand.u32 %s35, 1
        %s646 = scalar_lea.sflag [#allocation9], %s645
        %s647 = sand.u32 %s206, 1
        %s648 = smul.addr %s647, 64
        %s649 = scalar_lea.vmem [#allocation8], %s648
        // Predicated region
        $region85: #{transformer_decoder_forward.1} parent=71 // pred_check
          %p650 = pneg %p219
        $region86: #{transformer_decoder_forward.1} parent=71 // pred_check_branch
          %652 = sbr.rel (%p650) target = $region88
        $region87: #{transformer_decoder_forward.1} parent=71 // pred_region
          %654 = dma.done %s646, 1024
        $region88: #{transformer_decoder_forward.1} parent=71 // pred_fallthru
          _
        %s655 = sand.u32 %s35, 1
        %s656 = scalar_lea.sflag [#allocation9], %s655
        %s657 = sand.u32 %s258, 1
        %s658 = smul.addr %s657, 64
        %s659 = scalar_lea.vmem [#allocation10], %s658
        // Predicated region
        $region89: #{transformer_decoder_forward.1} parent=71 // pred_check
          %p660 = pneg %p271
        $region90: #{transformer_decoder_forward.1} parent=71 // pred_check_branch
          %662 = sbr.rel (%p660) target = $region92
        $region91: #{transformer_decoder_forward.1} parent=71 // pred_region
          %664 = dma.done %s656, 1024
        $region92: #{transformer_decoder_forward.1} parent=71 // pred_fallthru
          _
        %s665 = sand.u32 %s35, 1
        %s666 = scalar_lea.sflag [#allocation12], %s665
        %s667 = sand.u32 %s284, 1
        %s668 = smul.addr %s667, 128
        %s669 = scalar_lea.vmem [#allocation11], %s668
        // Predicated region
        $region93: #{transformer_decoder_forward.1} parent=71 // pred_check
          %p670 = pneg %p297
        $region94: #{transformer_decoder_forward.1} parent=71 // pred_check_branch
          %672 = sbr.rel (%p670) target = $region96
        $region95: #{transformer_decoder_forward.1} parent=71 // pred_region
          %674 = dma.done %s666, 2048
        $region96: #{transformer_decoder_forward.1} parent=71 // pred_fallthru
          _
        %s675 = sand.u32 %s35, 1
        %s676 = scalar_lea.sflag [#allocation12], %s675
        %s677 = sand.u32 %s310, 1
        %s678 = smul.addr %s677, 128
        %s679 = scalar_lea.vmem [#allocation13], %s678
        // Predicated region
        $region97: #{transformer_decoder_forward.1} parent=71 // pred_check
          %p680 = pneg %p323
        $region98: #{transformer_decoder_forward.1} parent=71 // pred_check_branch
          %682 = sbr.rel (%p680) target = $region100
        $region99: #{transformer_decoder_forward.1} parent=71 // pred_region
          %684 = dma.done %s676, 2048
        $region100: #{transformer_decoder_forward.1} parent=71 // pred_fallthru
          _
        %p685 = pneg %p68
        %p686 = pneg %p65
        %s687 = smul.u32 2, %s39
        %p688 = scmp.lt.s32.totalorder %s687, 1
        %s689 = scalar_select %p688, %s687, 1
        %s690 = smul.addr %s689, 4
        %s691 = scalar_lea.vmem %s1, %s690
        %p692 = pneg %p94
        %p693 = pneg %p91
        %s694 = smul.u32 8, %s39
        %p695 = scmp.lt.s32.totalorder %s694, 7
        %s696 = scalar_select %p695, %s694, 7
        %s697 = scalar_lea.vmem %s2, %s696
        %p698 = pneg %p120
        %p699 = pneg %p117
        %p700 = pneg %p141
        %p701 = pneg %p138
        %s702 = sand.u32 %s35, 1
        %s703 = scalar_lea.sflag [#allocation6], %s702
        %s704 = sand.u32 %s154, 1
        %s705 = smul.addr %s704, 192
        %s706 = scalar_lea.vmem [#allocation5], %s705
        %p707 = pneg %p167
        %p708 = pneg %p164
        %s709 = sand.u32 %s35, 1
        %s710 = scalar_lea.sflag [#allocation6], %s709
        %s711 = sand.u32 %s180, 1
        %s712 = smul.addr %s711, 64
        %s713 = scalar_lea.vmem [#allocation7], %s712
        %p714 = pneg %p193
        %p715 = pneg %p190
        %s716 = sand.u32 %s35, 1
        %s717 = scalar_lea.sflag [#allocation9], %s716
        %s718 = sand.u32 %s206, 1
        %s719 = smul.addr %s718, 64
        %s720 = scalar_lea.vmem [#allocation8], %s719
        %p721 = pneg %p219
        %p722 = pneg %p216
        %p723 = scmp.lt.s32.totalorder %s40, 1
        %s724 = scalar_select %p723, %s40, 1
        %s725 = smul.addr %s724, 32
        %s726 = smul.addr %s725, 4
        %s727 = scalar_lea.vmem %s7, %s726
        %p728 = pneg %p245
        %p729 = pneg %p242
        %s730 = sand.u32 %s35, 1
        %s731 = scalar_lea.sflag [#allocation9], %s730
        %s732 = sand.u32 %s258, 1
        %s733 = smul.addr %s732, 64
        %s734 = scalar_lea.vmem [#allocation10], %s733
        %p735 = pneg %p271
        %p736 = pneg %p268
        %s737 = sand.u32 %s35, 1
        %s738 = scalar_lea.sflag [#allocation12], %s737
        %s739 = sand.u32 %s284, 1
        %s740 = smul.addr %s739, 128
        %s741 = scalar_lea.vmem [#allocation11], %s740
        %p742 = pneg %p297
        %p743 = pneg %p294
        %s744 = sand.u32 %s35, 1
        %s745 = scalar_lea.sflag [#allocation12], %s744
        %s746 = sand.u32 %s310, 1
        %s747 = smul.addr %s746, 128
        %s748 = scalar_lea.vmem [#allocation13], %s747
        %p749 = pneg %p323
        %p750 = pneg %p320
        %p751 = scmp.lt.s32.totalorder %s40, 1
        %s752 = scalar_select %p751, %s40, 1
        %s753 = smul.addr %s752, 2
        %s754 = smul.addr %s753, 8
        %s755 = scalar_lea.vmem %s11, %s754
        %p756 = pneg %p349
        %p757 = pneg %p346
        %p758 = scmp.lt.s32.totalorder %s40, 1
        %s759 = scalar_select %p758, %s40, 1
        %s760 = smul.addr %s759, 3
        %s761 = smul.addr %s760, 4
        %s762 = scalar_lea.vmem %s12, %s761
        %p763 = pneg %p375
        %p764 = pneg %p372
        %p765 = pneg %p401
        %p766 = pneg %p398
        %s767 = smul.u32 2, %s39
        %s768 = smul.u32 2, %s39
        %p769 = scmp.lt.s32.totalorder %s768, 1
        %s770 = scalar_select %p769, %s768, 1
        %s771 = smul.addr %s770, 4
        %s772 = scalar_lea.vmem %s1, %s771
        %s773 = smul.u32 2, %s39
        %s774 = smul.u32 8, %s39
        %p775 = scmp.lt.s32.totalorder %s774, 7
        %s776 = scalar_select %p775, %s774, 7
        %s777 = scalar_lea.vmem %s2, %s776
        %s778 = smul.u32 8, %s39
        %p779 = scmp.lt.s32.totalorder %s40, 1
        %s780 = scalar_select %p779, %s40, 1
        %s781 = smul.addr %s780, 32
        %s782 = smul.addr %s781, 4
        %s783 = scalar_lea.vmem %s7, %s782
        %p784 = scmp.lt.s32.totalorder %s40, 1
        %s785 = scalar_select %p784, %s40, 1
        %s786 = smul.addr %s785, 2
        %s787 = smul.addr %s786, 8
        %s788 = scalar_lea.vmem %s11, %s787
        %p789 = scmp.lt.s32.totalorder %s40, 1
        %s790 = scalar_select %p789, %s40, 1
        %s791 = smul.addr %s790, 3
        %s792 = smul.addr %s791, 4
        %s793 = scalar_lea.vmem %s12, %s792
        %s794 = smul.u32 2, %s39
        %p796 = scmp.eq.s32.totalorder %s40, 0
        // Predicated region
        $region101: #{transformer_decoder_forward.1} parent=71 // pred_check
          %p797 = pneg %p796
        $region102: #{transformer_decoder_forward.1} parent=71 // pred_check_branch
          %799 = sbr.rel (%p797) target = $region104
        $region103: #{transformer_decoder_forward.1} parent=71 // pred_region
          %v800 = vld [vmem:[#allocation2] sm:$0xff]
          %v801 = vld [vmem:[#allocation2 + $0x8] sm:$0xff]
          %802 = vst [vmem:[#allocation14] sm:$0xff] %v800
          %803 = vst [vmem:[#allocation14 + $0x8] sm:$0xff] %v801
        $region104: #{transformer_decoder_forward.1} parent=71 // pred_fallthru
          _
        %v804 = vld [vmem:[#allocation14] sm:$0xff]
        %v805 = vld [vmem:[#allocation14 + $0x8] sm:$0xff]
        %v806 = vld [vmem:[%s629] sm:$0xff]
        %v807 = vld [vmem:[%s629 + $0x8] sm:$0xf]
        %v808 = vld [vmem:[%s629 + $0xc] sm:$0xff]
        %v809 = vld [vmem:[%s629 + $0x14] sm:$0xf]
        %v810 = vld [vmem:[%s629 + $0x18] sm:$0xff]
        %v811 = vld [vmem:[%s629 + $0x20] sm:$0xf]
        %v812 = vld [vmem:[%s629 + $0x24] sm:$0xff]
        %v813 = vld [vmem:[%s629 + $0x2c] sm:$0xf]
        %v814 = vld [vmem:[%s629 + $0x30] sm:$0xff]
        %v815 = vld [vmem:[%s629 + $0x38] sm:$0xf]
        %v816 = vld [vmem:[%s629 + $0x3c] sm:$0xff]
        %v817 = vld [vmem:[%s629 + $0x44] sm:$0xf]
        %v818 = vld [vmem:[%s629 + $0x48] sm:$0xff]
        %v819 = vld [vmem:[%s629 + $0x50] sm:$0xf]
        %v820 = vld [vmem:[%s629 + $0x54] sm:$0xff]
        %v821 = vld [vmem:[%s629 + $0x5c] sm:$0xf]
        %v822 = vld [vmem:[%s629 + $0x60] sm:$0xff]
        %v823 = vld [vmem:[%s629 + $0x68] sm:$0xf]
        %v824 = vld [vmem:[%s629 + $0x6c] sm:$0xff]
        %v825 = vld [vmem:[%s629 + $0x74] sm:$0xf]
        %v826 = vld [vmem:[%s629 + $0x78] sm:$0xff]
        %v827 = vld [vmem:[%s629 + $0x80] sm:$0xf]
        %v828 = vld [vmem:[%s629 + $0x84] sm:$0xff]
        %v829 = vld [vmem:[%s629 + $0x8c] sm:$0xf]
        %v830 = vld [vmem:[%s629 + $0x90] sm:$0xff]
        %v831 = vld [vmem:[%s629 + $0x98] sm:$0xf]
        %v832 = vld [vmem:[%s629 + $0x9c] sm:$0xff]
        %v833 = vld [vmem:[%s629 + $0xa4] sm:$0xf]
        %v834 = vld [vmem:[%s629 + $0xa8] sm:$0xff]
        %v835 = vld [vmem:[%s629 + $0xb0] sm:$0xf]
        %v836 = vld [vmem:[%s629 + $0xb4] sm:$0xff]
        %v837 = vld [vmem:[%s629 + $0xbc] sm:$0xf]
        %v838 = vld [vmem:[%s639] sm:$0xf]
        %v839 = vld [vmem:[%s639 + $0x4] sm:$0xf]
        %v840 = vld [vmem:[%s639 + $0x8] sm:$0xf]
        %v841 = vld [vmem:[%s639 + $0xc] sm:$0xf]
        %v842 = vld [vmem:[%s639 + $0x10] sm:$0xf]
        %v843 = vld [vmem:[%s639 + $0x14] sm:$0xf]
        %v844 = vld [vmem:[%s639 + $0x18] sm:$0xf]
        %v845 = vld [vmem:[%s639 + $0x1c] sm:$0xf]
        %v846 = vld [vmem:[%s639 + $0x20] sm:$0xf]
        %v847 = vld [vmem:[%s639 + $0x24] sm:$0xf]
        %v848 = vld [vmem:[%s639 + $0x28] sm:$0xf]
        %v849 = vld [vmem:[%s639 + $0x2c] sm:$0xf]
        %v850 = vld [vmem:[%s639 + $0x30] sm:$0xf]
        %v851 = vld [vmem:[%s639 + $0x34] sm:$0xf]
        %v852 = vld [vmem:[%s639 + $0x38] sm:$0xf]
        %v853 = vld [vmem:[%s639 + $0x3c] sm:$0xf]
        %v854 = vld [vmem:[%s649] sm:$0xf]
        %v855 = vld [vmem:[%s649 + $0x4] sm:$0xf]
        %v856 = vld [vmem:[%s649 + $0x8] sm:$0xf]
        %v857 = vld [vmem:[%s649 + $0xc] sm:$0xf]
        %v858 = vld [vmem:[%s649 + $0x10] sm:$0xf]
        %v859 = vld [vmem:[%s649 + $0x14] sm:$0xf]
        %v860 = vld [vmem:[%s649 + $0x18] sm:$0xf]
        %v861 = vld [vmem:[%s649 + $0x1c] sm:$0xf]
        %v862 = vld [vmem:[%s649 + $0x20] sm:$0xf]
        %v863 = vld [vmem:[%s649 + $0x24] sm:$0xf]
        %v864 = vld [vmem:[%s649 + $0x28] sm:$0xf]
        %v865 = vld [vmem:[%s649 + $0x2c] sm:$0xf]
        %v866 = vld [vmem:[%s649 + $0x30] sm:$0xf]
        %v867 = vld [vmem:[%s649 + $0x34] sm:$0xf]
        %v868 = vld [vmem:[%s649 + $0x38] sm:$0xf]
        %v869 = vld [vmem:[%s649 + $0x3c] sm:$0xf]
        %v870 = vld [vmem:[%s783] sm:$0xff]
        %v871 = vld [vmem:[%s783 + $0x8] sm:$0xff]
        %v872 = vld [vmem:[%s783 + $0x10] sm:$0xff]
        %v873 = vld [vmem:[%s783 + $0x18] sm:$0xff]
        %v874 = vld [vmem:[%s783 + $0x20] sm:$0xff]
        %v875 = vld [vmem:[%s783 + $0x28] sm:$0xff]
        %v876 = vld [vmem:[%s783 + $0x30] sm:$0xff]
        %v877 = vld [vmem:[%s783 + $0x38] sm:$0xff]
        %v878 = vld [vmem:[%s783 + $0x40] sm:$0xff]
        %v879 = vld [vmem:[%s783 + $0x48] sm:$0xff]
        %v880 = vld [vmem:[%s783 + $0x50] sm:$0xff]
        %v881 = vld [vmem:[%s783 + $0x58] sm:$0xff]
        %v882 = vld [vmem:[%s783 + $0x60] sm:$0xff]
        %v883 = vld [vmem:[%s783 + $0x68] sm:$0xff]
        %v884 = vld [vmem:[%s783 + $0x70] sm:$0xff]
        %v885 = vld [vmem:[%s783 + $0x78] sm:$0xff]
        %v886 = vld [vmem:[%s659] sm:$0xf]
        %v887 = vld [vmem:[%s659 + $0x4] sm:$0xf]
        %v888 = vld [vmem:[%s659 + $0x8] sm:$0xf]
        %v889 = vld [vmem:[%s659 + $0xc] sm:$0xf]
        %v890 = vld [vmem:[%s659 + $0x10] sm:$0xf]
        %v891 = vld [vmem:[%s659 + $0x14] sm:$0xf]
        %v892 = vld [vmem:[%s659 + $0x18] sm:$0xf]
        %v893 = vld [vmem:[%s659 + $0x1c] sm:$0xf]
        %v894 = vld [vmem:[%s659 + $0x20] sm:$0xf]
        %v895 = vld [vmem:[%s659 + $0x24] sm:$0xf]
        %v896 = vld [vmem:[%s659 + $0x28] sm:$0xf]
        %v897 = vld [vmem:[%s659 + $0x2c] sm:$0xf]
        %v898 = vld [vmem:[%s659 + $0x30] sm:$0xf]
        %v899 = vld [vmem:[%s659 + $0x34] sm:$0xf]
        %v900 = vld [vmem:[%s659 + $0x38] sm:$0xf]
        %v901 = vld [vmem:[%s659 + $0x3c] sm:$0xf]
        %v902 = vld [vmem:[%s669] sm:$0xff]
        %v903 = vld [vmem:[%s669 + $0x8] sm:$0xff]
        %v904 = vld [vmem:[%s669 + $0x10] sm:$0xff]
        %v905 = vld [vmem:[%s669 + $0x18] sm:$0xff]
        %v906 = vld [vmem:[%s669 + $0x20] sm:$0xff]
        %v907 = vld [vmem:[%s669 + $0x28] sm:$0xff]
        %v908 = vld [vmem:[%s669 + $0x30] sm:$0xff]
        %v909 = vld [vmem:[%s669 + $0x38] sm:$0xff]
        %v910 = vld [vmem:[%s669 + $0x40] sm:$0xff]
        %v911 = vld [vmem:[%s669 + $0x48] sm:$0xff]
        %v912 = vld [vmem:[%s669 + $0x50] sm:$0xff]
        %v913 = vld [vmem:[%s669 + $0x58] sm:$0xff]
        %v914 = vld [vmem:[%s669 + $0x60] sm:$0xff]
        %v915 = vld [vmem:[%s669 + $0x68] sm:$0xff]
        %v916 = vld [vmem:[%s669 + $0x70] sm:$0xff]
        %v917 = vld [vmem:[%s669 + $0x78] sm:$0xff]
        %v918 = vld [vmem:[%s679] sm:$0xf]
        %v919 = vld [vmem:[%s679 + $0x4] sm:$0xf]
        %v920 = vld [vmem:[%s679 + $0x8] sm:$0xf]
        %v921 = vld [vmem:[%s679 + $0xc] sm:$0xf]
        %v922 = vld [vmem:[%s679 + $0x10] sm:$0xf]
        %v923 = vld [vmem:[%s679 + $0x14] sm:$0xf]
        %v924 = vld [vmem:[%s679 + $0x18] sm:$0xf]
        %v925 = vld [vmem:[%s679 + $0x1c] sm:$0xf]
        %v926 = vld [vmem:[%s679 + $0x20] sm:$0xf]
        %v927 = vld [vmem:[%s679 + $0x24] sm:$0xf]
        %v928 = vld [vmem:[%s679 + $0x28] sm:$0xf]
        %v929 = vld [vmem:[%s679 + $0x2c] sm:$0xf]
        %v930 = vld [vmem:[%s679 + $0x30] sm:$0xf]
        %v931 = vld [vmem:[%s679 + $0x34] sm:$0xf]
        %v932 = vld [vmem:[%s679 + $0x38] sm:$0xf]
        %v933 = vld [vmem:[%s679 + $0x3c] sm:$0xf]
        %v934 = vld [vmem:[%s679 + $0x40] sm:$0xf]
        %v935 = vld [vmem:[%s679 + $0x44] sm:$0xf]
        %v936 = vld [vmem:[%s679 + $0x48] sm:$0xf]
        %v937 = vld [vmem:[%s679 + $0x4c] sm:$0xf]
        %v938 = vld [vmem:[%s679 + $0x50] sm:$0xf]
        %v939 = vld [vmem:[%s679 + $0x54] sm:$0xf]
        %v940 = vld [vmem:[%s679 + $0x58] sm:$0xf]
        %v941 = vld [vmem:[%s679 + $0x5c] sm:$0xf]
        %v942 = vld [vmem:[%s679 + $0x60] sm:$0xf]
        %v943 = vld [vmem:[%s679 + $0x64] sm:$0xf]
        %v944 = vld [vmem:[%s679 + $0x68] sm:$0xf]
        %v945 = vld [vmem:[%s679 + $0x6c] sm:$0xf]
        %v946 = vld [vmem:[%s679 + $0x70] sm:$0xf]
        %v947 = vld [vmem:[%s679 + $0x74] sm:$0xf]
        %v948 = vld [vmem:[%s679 + $0x78] sm:$0xf]
        %v949 = vld [vmem:[%s679 + $0x7c] sm:$0xf]
        %v950 = vld [vmem:[%s788] sm:$0xff]
        %v951 = vld [vmem:[%s788 + $0x8] sm:$0x3]
        %v952 = vld [vmem:[%s793] sm:$0x77]
        %v953 = vld [vmem:[%s793 + $0x8] sm:$0x7]
        %v954 = vld [vmem:[%s772] sm:$0xf]
        %v955 = vld [vmem:[%s772 + $0x4] sm:$0xf]
        %v956 = vld [vmem:[%s777] sm:$0x1]
        %v957 = vld [vmem:[%s777 + $0x1] sm:$0x1]
        %v958 = vld [vmem:[%s777 + $0x2] sm:$0x1]
        %v959 = vld [vmem:[%s777 + $0x3] sm:$0x1]
        %v960 = vld [vmem:[%s777 + $0x4] sm:$0x1]
        %v961 = vld [vmem:[%s777 + $0x5] sm:$0x1]
        %v962 = vld [vmem:[%s777 + $0x6] sm:$0x1]
        %v963 = vld [vmem:[%s777 + $0x7] sm:$0x1]
        %v964 = vld [vmem:[%s3] sm:$0xff]
        %v965 = vpack.c.bf16 %v805, %v804
        %v968 = vperm.slane %v952, 0
        %v969 = vperm.slane %v952, 4
        %v970 = vperm.slane %v953, 0
        %v974 = vperm.slane %v968, 0
        %v975 = vperm.slane %v969, 0
        %v976 = vperm.slane %v970, 0
        %v1009 = vunpack.c.l.b16 %v806
        %v1010 = vunpack.c.h.b16 %v806
        %v1011 = vunpack.c.l.b16 %v807
        %v1012 = vunpack.c.l.b16 %v808
        %v1013 = vunpack.c.h.b16 %v808
        %v1014 = vunpack.c.l.b16 %v809
        %v1015 = vunpack.c.l.b16 %v810
        %v1016 = vunpack.c.h.b16 %v810
        %v1017 = vunpack.c.l.b16 %v811
        %v1018 = vunpack.c.l.b16 %v812
        %v1019 = vunpack.c.h.b16 %v812
        %v1020 = vunpack.c.l.b16 %v813
        %v1021 = vunpack.c.l.b16 %v814
        %v1022 = vunpack.c.h.b16 %v814
        %v1023 = vunpack.c.l.b16 %v815
        %v1024 = vunpack.c.l.b16 %v816
        %v1025 = vunpack.c.h.b16 %v816
        %v1026 = vunpack.c.l.b16 %v817
        %v1027 = vunpack.c.l.b16 %v818
        %v1028 = vunpack.c.h.b16 %v818
        %v1029 = vunpack.c.l.b16 %v819
        %v1030 = vunpack.c.l.b16 %v820
        %v1031 = vunpack.c.h.b16 %v820
        %v1032 = vunpack.c.l.b16 %v821
        %v1033 = vunpack.c.l.b16 %v822
        %v1034 = vunpack.c.h.b16 %v822
        %v1035 = vunpack.c.l.b16 %v823
        %v1036 = vunpack.c.l.b16 %v824
        %v1037 = vunpack.c.h.b16 %v824
        %v1038 = vunpack.c.l.b16 %v825
        %v1039 = vunpack.c.l.b16 %v826
        %v1040 = vunpack.c.h.b16 %v826
        %v1041 = vunpack.c.l.b16 %v827
        %v1042 = vunpack.c.l.b16 %v828
        %v1043 = vunpack.c.h.b16 %v828
        %v1044 = vunpack.c.l.b16 %v829
        %v1045 = vunpack.c.l.b16 %v830
        %v1046 = vunpack.c.h.b16 %v830
        %v1047 = vunpack.c.l.b16 %v831
        %v1048 = vunpack.c.l.b16 %v832
        %v1049 = vunpack.c.h.b16 %v832
        %v1050 = vunpack.c.l.b16 %v833
        %v1051 = vunpack.c.l.b16 %v834
        %v1052 = vunpack.c.h.b16 %v834
        %v1053 = vunpack.c.l.b16 %v835
        %v1054 = vunpack.c.l.b16 %v836
        %v1055 = vunpack.c.h.b16 %v836
        %v1056 = vunpack.c.l.b16 %v837
        %v1057 = vpack.c.b16 %v1012, %v1009
        %v1058 = vpack.c.b16 %v1013, %v1010
        %v1059 = vpack.c.b16 %v1014, %v1011
        %v1060 = vpack.c.b16 %v1018, %v1015
        %v1061 = vpack.c.b16 %v1019, %v1016
        %v1062 = vpack.c.b16 %v1020, %v1017
        %v1063 = vpack.c.b16 %v1024, %v1021
        %v1064 = vpack.c.b16 %v1025, %v1022
        %v1065 = vpack.c.b16 %v1026, %v1023
        %v1066 = vpack.c.b16 %v1030, %v1027
        %v1067 = vpack.c.b16 %v1031, %v1028
        %v1068 = vpack.c.b16 %v1032, %v1029
        %v1069 = vpack.c.b16 %v1036, %v1033
        %v1070 = vpack.c.b16 %v1037, %v1034
        %v1071 = vpack.c.b16 %v1038, %v1035
        %v1072 = vpack.c.b16 %v1042, %v1039
        %v1073 = vpack.c.b16 %v1043, %v1040
        %v1074 = vpack.c.b16 %v1044, %v1041
        %v1075 = vpack.c.b16 %v1048, %v1045
        %v1076 = vpack.c.b16 %v1049, %v1046
        %v1077 = vpack.c.b16 %v1050, %v1047
        %v1078 = vpack.c.b16 %v1054, %v1051
        %v1079 = vpack.c.b16 %v1055, %v1052
        %v1080 = vpack.c.b16 %v1056, %v1053
        %1105 = vmatpush.bf16.msra.mxu0 %v1078
        %1106 = vmatpush.bf16.msra.mxu0 %v1075
        %1107 = vmatpush.bf16.msra.mxu0 %v1072
        %1108 = vmatpush.bf16.msra.mxu0 %v1069
        %1109 = vmatpush.bf16.msra.mxu0 %v1066
        %1110 = vmatpush.bf16.msra.mxu0 %v1063
        %1111 = vmatpush.bf16.msra.mxu0 %v1060
        %1112 = vmatpush.bf16.msra.mxu0 %v1057
        %1113 = vmatmul.bf16.gmra.mxu0 %v965
        %v1114 = vpop.f32.mrf.mxu0
        %v1115 = vadd.f32 %v974, %v1114
        %v1116 = vpop.f32.mrf.mxu0
        %v1117 = vadd.f32 %v974, %v1116
        %1118 = vdwg.mxu0
        %1119 = vmatpush.bf16.msra.mxu0 %v1079
        %1120 = vmatpush.bf16.msra.mxu0 %v1076
        %1121 = vmatpush.bf16.msra.mxu0 %v1073
        %1122 = vmatpush.bf16.msra.mxu0 %v1070
        %1123 = vmatpush.bf16.msra.mxu0 %v1067
        %1124 = vmatpush.bf16.msra.mxu0 %v1064
        %1125 = vmatpush.bf16.msra.mxu0 %v1061
        %1126 = vmatpush.bf16.msra.mxu0 %v1058
        %1127 = vmatmul.bf16.gmra.mxu0 %v965
        %v1128 = vpop.f32.mrf.mxu0
        %v1129 = vadd.f32 %v975, %v1128
        %v1130 = vpop.f32.mrf.mxu0
        %v1131 = vadd.f32 %v975, %v1130
        %1132 = vdwg.mxu0
        %1133 = vmatpush.bf16.msra.mxu0 %v1080
        %1134 = vmatpush.bf16.msra.mxu0 %v1077
        %1135 = vmatpush.bf16.msra.mxu0 %v1074
        %1136 = vmatpush.bf16.msra.mxu0 %v1071
        %1137 = vmatpush.bf16.msra.mxu0 %v1068
        %1138 = vmatpush.bf16.msra.mxu0 %v1065
        %1139 = vmatpush.bf16.msra.mxu0 %v1062
        %1140 = vmatpush.bf16.msra.mxu0 %v1059
        %1141 = vmatmul.bf16.gmra.mxu0 %v965
        %v1142 = vpop.f32.mrf.mxu0
        %v1143 = vadd.f32 %v976, %v1142
        %v1144 = vpop.f32.mrf.mxu0
        %v1145 = vadd.f32 %v976, %v1144
        %1146 = vdwg.mxu0
        %1149 = vrot.lane.b32.xlu0 %v1115, 96
        %v1150 = vpop.permute.xlu0 %1149
        %1151 = vrot.lane.b32.xlu0 %v1117, 96
        %v1152 = vpop.permute.xlu0 %1151
        %1155 = vrot.lane.b32.xlu0 %v1115, 64
        %v1156 = vpop.permute.xlu0 %1155
        %1157 = vrot.lane.b32.xlu0 %v1117, 64
        %v1158 = vpop.permute.xlu0 %1157
        %1161 = vrot.lane.b32.xlu0 %v1115, 32
        %v1162 = vpop.permute.xlu0 %1161
        %1163 = vrot.lane.b32.xlu0 %v1117, 32
        %v1164 = vpop.permute.xlu0 %1163
        %v1167 = vpack.c.bf16 %v1115, %v1115
        %v1168 = vpack.c.bf16 %v1150, %v1150
        %v1169 = vpack.c.bf16 %v1156, %v1156
        %v1170 = vpack.c.bf16 %v1162, %v1162
        %v1171 = vpack.c.bf16 %v1117, %v1117
        %v1172 = vpack.c.bf16 %v1152, %v1152
        %v1173 = vpack.c.bf16 %v1158, %v1158
        %v1174 = vpack.c.bf16 %v1164, %v1164
        %1177 = vrot.lane.b32.xlu0 %v1129, 96
        %v1178 = vpop.permute.xlu0 %1177
        %1179 = vrot.lane.b32.xlu0 %v1131, 96
        %v1180 = vpop.permute.xlu0 %1179
        %1183 = vrot.lane.b32.xlu0 %v1129, 64
        %v1184 = vpop.permute.xlu0 %1183
        %1185 = vrot.lane.b32.xlu0 %v1131, 64
        %v1186 = vpop.permute.xlu0 %1185
        %1189 = vrot.lane.b32.xlu0 %v1129, 32
        %v1190 = vpop.permute.xlu0 %1189
        %1191 = vrot.lane.b32.xlu0 %v1131, 32
        %v1192 = vpop.permute.xlu0 %1191
        %v1195 = vpack.c.bf16 %v1129, %v1129
        %v1196 = vpack.c.bf16 %v1178, %v1178
        %v1197 = vpack.c.bf16 %v1184, %v1184
        %v1198 = vpack.c.bf16 %v1190, %v1190
        %v1199 = vpack.c.bf16 %v1131, %v1131
        %v1200 = vpack.c.bf16 %v1180, %v1180
        %v1201 = vpack.c.bf16 %v1186, %v1186
        %v1202 = vpack.c.bf16 %v1192, %v1192
        %1205 = vrot.lane.b32.xlu0 %v1143, 96
        %v1206 = vpop.permute.xlu0 %1205
        %1207 = vrot.lane.b32.xlu0 %v1145, 96
        %v1208 = vpop.permute.xlu0 %1207
        %1211 = vrot.lane.b32.xlu0 %v1143, 64
        %v1212 = vpop.permute.xlu0 %1211
        %1213 = vrot.lane.b32.xlu0 %v1145, 64
        %v1214 = vpop.permute.xlu0 %1213
        %1217 = vrot.lane.b32.xlu0 %v1143, 32
        %v1218 = vpop.permute.xlu0 %1217
        %1219 = vrot.lane.b32.xlu0 %v1145, 32
        %v1220 = vpop.permute.xlu0 %1219
        %v1223 = vpack.c.bf16 %v1143, %v1143
        %v1224 = vpack.c.bf16 %v1206, %v1206
        %v1225 = vpack.c.bf16 %v1212, %v1212
        %v1226 = vpack.c.bf16 %v1218, %v1218
        %v1227 = vpack.c.bf16 %v1145, %v1145
        %v1228 = vpack.c.bf16 %v1208, %v1208
        %v1229 = vpack.c.bf16 %v1214, %v1214
        %v1230 = vpack.c.bf16 %v1220, %v1220
        %vm1231 = vcmask 261120
        %v1233 = vsel %vm1231, %v1167, 0
        %v1236 = vsel %vm1231, %v1195, 0
        %1238 = vmatpush.bf16.xpose.msra.mxu0 0
        %1239 = vmatpush.bf16.xpose.msra.mxu0 0
        %1240 = vmatpush.bf16.xpose.msra.mxu0 0
        %1241 = vmatpush.bf16.xpose.msra.mxu0 0
        %1242 = vmatpush.bf16.xpose.msra.mxu0 0
        %1243 = vmatpush.bf16.xpose.msra.mxu0 0
        %1244 = vmatpush.bf16.xpose.msra.mxu0 0
        %1245 = vmatpush.bf16.xpose.msra.mxu0 %v1236
        %1246 = vmatmul.bf16.gmra.mxu0 %v1233
        %v1247 = vpop.f32.mrf.mxu0
        %v1248 = vadd.f32 %v964, %v1247
        %v1249 = vpop.f32.mrf.mxu0
        %1250 = vdwg.mxu0
        %v1252 = vsel %vm1231, %v1168, 0
        %v1255 = vsel %vm1231, %v1196, 0
        %1257 = vmatpush.bf16.xpose.msra.mxu0 0
        %1258 = vmatpush.bf16.xpose.msra.mxu0 0
        %1259 = vmatpush.bf16.xpose.msra.mxu0 0
        %1260 = vmatpush.bf16.xpose.msra.mxu0 0
        %1261 = vmatpush.bf16.xpose.msra.mxu0 0
        %1262 = vmatpush.bf16.xpose.msra.mxu0 0
        %1263 = vmatpush.bf16.xpose.msra.mxu0 0
        %1264 = vmatpush.bf16.xpose.msra.mxu0 %v1255
        %1265 = vmatmul.bf16.gmra.mxu0 %v1252
        %v1266 = vpop.f32.mrf.mxu0
        %v1267 = vadd.f32 %v964, %v1266
        %v1268 = vpop.f32.mrf.mxu0
        %1269 = vdwg.mxu0
        %v1271 = vsel %vm1231, %v1169, 0
        %v1274 = vsel %vm1231, %v1197, 0
        %1276 = vmatpush.bf16.xpose.msra.mxu0 0
        %1277 = vmatpush.bf16.xpose.msra.mxu0 0
        %1278 = vmatpush.bf16.xpose.msra.mxu0 0
        %1279 = vmatpush.bf16.xpose.msra.mxu0 0
        %1280 = vmatpush.bf16.xpose.msra.mxu0 0
        %1281 = vmatpush.bf16.xpose.msra.mxu0 0
        %1282 = vmatpush.bf16.xpose.msra.mxu0 0
        %1283 = vmatpush.bf16.xpose.msra.mxu0 %v1274
        %1284 = vmatmul.bf16.gmra.mxu0 %v1271
        %v1285 = vpop.f32.mrf.mxu0
        %v1286 = vadd.f32 %v964, %v1285
        %v1287 = vpop.f32.mrf.mxu0
        %1288 = vdwg.mxu0
        %v1290 = vsel %vm1231, %v1170, 0
        %v1293 = vsel %vm1231, %v1198, 0
        %1295 = vmatpush.bf16.xpose.msra.mxu0 0
        %1296 = vmatpush.bf16.xpose.msra.mxu0 0
        %1297 = vmatpush.bf16.xpose.msra.mxu0 0
        %1298 = vmatpush.bf16.xpose.msra.mxu0 0
        %1299 = vmatpush.bf16.xpose.msra.mxu0 0
        %1300 = vmatpush.bf16.xpose.msra.mxu0 0
        %1301 = vmatpush.bf16.xpose.msra.mxu0 0
        %1302 = vmatpush.bf16.xpose.msra.mxu0 %v1293
        %1303 = vmatmul.bf16.gmra.mxu0 %v1290
        %v1304 = vpop.f32.mrf.mxu0
        %v1305 = vadd.f32 %v964, %v1304
        %v1306 = vpop.f32.mrf.mxu0
        %1307 = vdwg.mxu0
        %v1309 = vsel %vm1231, %v1171, 0
        %v1312 = vsel %vm1231, %v1199, 0
        %1314 = vmatpush.bf16.xpose.msra.mxu0 0
        %1315 = vmatpush.bf16.xpose.msra.mxu0 0
        %1316 = vmatpush.bf16.xpose.msra.mxu0 0
        %1317 = vmatpush.bf16.xpose.msra.mxu0 0
        %1318 = vmatpush.bf16.xpose.msra.mxu0 0
        %1319 = vmatpush.bf16.xpose.msra.mxu0 0
        %1320 = vmatpush.bf16.xpose.msra.mxu0 0
        %1321 = vmatpush.bf16.xpose.msra.mxu0 %v1312
        %1322 = vmatmul.bf16.gmra.mxu0 %v1309
        %v1323 = vpop.f32.mrf.mxu0
        %v1324 = vadd.f32 %v964, %v1323
        %v1325 = vpop.f32.mrf.mxu0
        %1326 = vdwg.mxu0
        %v1328 = vsel %vm1231, %v1172, 0
        %v1331 = vsel %vm1231, %v1200, 0
        %1333 = vmatpush.bf16.xpose.msra.mxu0 0
        %1334 = vmatpush.bf16.xpose.msra.mxu0 0
        %1335 = vmatpush.bf16.xpose.msra.mxu0 0
        %1336 = vmatpush.bf16.xpose.msra.mxu0 0
        %1337 = vmatpush.bf16.xpose.msra.mxu0 0
        %1338 = vmatpush.bf16.xpose.msra.mxu0 0
        %1339 = vmatpush.bf16.xpose.msra.mxu0 0
        %1340 = vmatpush.bf16.xpose.msra.mxu0 %v1331
        %1341 = vmatmul.bf16.gmra.mxu0 %v1328
        %v1342 = vpop.f32.mrf.mxu0
        %v1343 = vadd.f32 %v964, %v1342
        %v1344 = vpop.f32.mrf.mxu0
        %1345 = vdwg.mxu0
        %v1347 = vsel %vm1231, %v1173, 0
        %v1350 = vsel %vm1231, %v1201, 0
        %1352 = vmatpush.bf16.xpose.msra.mxu0 0
        %1353 = vmatpush.bf16.xpose.msra.mxu0 0
        %1354 = vmatpush.bf16.xpose.msra.mxu0 0
        %1355 = vmatpush.bf16.xpose.msra.mxu0 0
        %1356 = vmatpush.bf16.xpose.msra.mxu0 0
        %1357 = vmatpush.bf16.xpose.msra.mxu0 0
        %1358 = vmatpush.bf16.xpose.msra.mxu0 0
        %1359 = vmatpush.bf16.xpose.msra.mxu0 %v1350
        %1360 = vmatmul.bf16.gmra.mxu0 %v1347
        %v1361 = vpop.f32.mrf.mxu0
        %v1362 = vadd.f32 %v964, %v1361
        %v1363 = vpop.f32.mrf.mxu0
        %1364 = vdwg.mxu0
        %v1366 = vsel %vm1231, %v1174, 0
        %v1369 = vsel %vm1231, %v1202, 0
        %1371 = vmatpush.bf16.xpose.msra.mxu0 0
        %1372 = vmatpush.bf16.xpose.msra.mxu0 0
        %1373 = vmatpush.bf16.xpose.msra.mxu0 0
        %1374 = vmatpush.bf16.xpose.msra.mxu0 0
        %1375 = vmatpush.bf16.xpose.msra.mxu0 0
        %1376 = vmatpush.bf16.xpose.msra.mxu0 0
        %1377 = vmatpush.bf16.xpose.msra.mxu0 0
        %1378 = vmatpush.bf16.xpose.msra.mxu0 %v1369
        %1379 = vmatmul.bf16.gmra.mxu0 %v1366
        %v1380 = vpop.f32.mrf.mxu0
        %v1381 = vadd.f32 %v964, %v1380
        %v1382 = vpop.f32.mrf.mxu0
        %1383 = vdwg.mxu0
        %vm1384 = vcmask 64512
        %v1385 = vsel %vm1384, %v1248, -inf
        %1386 = vmax.xlane.f32.xlu0 %v1385
        %v1387 = vpop.xlane.xlu0 %1386
        %v1388 = vsel %vm1384, %v1267, -inf
        %1389 = vmax.xlane.f32.xlu0 %v1388
        %v1390 = vpop.xlane.xlu0 %1389
        %v1391 = vsel %vm1384, %v1286, -inf
        %1392 = vmax.xlane.f32.xlu0 %v1391
        %v1393 = vpop.xlane.xlu0 %1392
        %v1394 = vsel %vm1384, %v1305, -inf
        %1395 = vmax.xlane.f32.xlu0 %v1394
        %v1396 = vpop.xlane.xlu0 %1395
        %v1397 = vsel %vm1384, %v1324, -inf
        %1398 = vmax.xlane.f32.xlu0 %v1397
        %v1399 = vpop.xlane.xlu0 %1398
        %v1400 = vsel %vm1384, %v1343, -inf
        %1401 = vmax.xlane.f32.xlu0 %v1400
        %v1402 = vpop.xlane.xlu0 %1401
        %v1403 = vsel %vm1384, %v1362, -inf
        %1404 = vmax.xlane.f32.xlu0 %v1403
        %v1405 = vpop.xlane.xlu0 %1404
        %v1406 = vsel %vm1384, %v1381, -inf
        %1407 = vmax.xlane.f32.xlu0 %v1406
        %v1408 = vpop.xlane.xlu0 %1407
        %v1409 = vsub.f32 %v1248, %v1387
        %v1410 = vsub.f32 %v1267, %v1390
        %v1411 = vsub.f32 %v1286, %v1393
        %v1412 = vsub.f32 %v1305, %v1396
        %v1413 = vsub.f32 %v1324, %v1399
        %v1414 = vsub.f32 %v1343, %v1402
        %v1415 = vsub.f32 %v1362, %v1405
        %v1416 = vsub.f32 %v1381, %v1408
        %v1417 = vmul.f32 %v1409, 1.442695
        %v1418 = vpow.pop %v1417
        %v1419 = vmul.f32 %v1410, 1.442695
        %v1420 = vpow.pop %v1419
        %v1421 = vmul.f32 %v1411, 1.442695
        %v1422 = vpow.pop %v1421
        %v1423 = vmul.f32 %v1412, 1.442695
        %v1424 = vpow.pop %v1423
        %v1425 = vmul.f32 %v1413, 1.442695
        %v1426 = vpow.pop %v1425
        %v1427 = vmul.f32 %v1414, 1.442695
        %v1428 = vpow.pop %v1427
        %v1429 = vmul.f32 %v1415, 1.442695
        %v1430 = vpow.pop %v1429
        %v1431 = vmul.f32 %v1416, 1.442695
        %v1432 = vpow.pop %v1431
        %v1433 = vsel %vm1384, %v1418, 0.0
        %1434 = vadd.xlane.f32.xlu0 %v1433
        %v1435 = vpop.xlane.xlu0 %1434
        %v1436 = vsel %vm1384, %v1420, 0.0
        %1437 = vadd.xlane.f32.xlu0 %v1436
        %v1438 = vpop.xlane.xlu0 %1437
        %v1439 = vsel %vm1384, %v1422, 0.0
        %1440 = vadd.xlane.f32.xlu0 %v1439
        %v1441 = vpop.xlane.xlu0 %1440
        %v1442 = vsel %vm1384, %v1424, 0.0
        %1443 = vadd.xlane.f32.xlu0 %v1442
        %v1444 = vpop.xlane.xlu0 %1443
        %v1445 = vsel %vm1384, %v1426, 0.0
        %1446 = vadd.xlane.f32.xlu0 %v1445
        %v1447 = vpop.xlane.xlu0 %1446
        %v1448 = vsel %vm1384, %v1428, 0.0
        %1449 = vadd.xlane.f32.xlu0 %v1448
        %v1450 = vpop.xlane.xlu0 %1449
        %v1451 = vsel %vm1384, %v1430, 0.0
        %1452 = vadd.xlane.f32.xlu0 %v1451
        %v1453 = vpop.xlane.xlu0 %1452
        %v1454 = vsel %vm1384, %v1432, 0.0
        %1455 = vadd.xlane.f32.xlu0 %v1454
        %v1456 = vpop.xlane.xlu0 %1455
        %v1457 = vrcp.pop %v1435
        %v1458 = vrcp.pop %v1438
        %v1459 = vrcp.pop %v1441
        %v1460 = vrcp.pop %v1444
        %v1461 = vrcp.pop %v1447
        %v1462 = vrcp.pop %v1450
        %v1463 = vrcp.pop %v1453
        %v1464 = vrcp.pop %v1456
        %v1465 = vmul.f32 %v1418, %v1457
        %v1466 = vmul.f32 %v1420, %v1458
        %v1467 = vmul.f32 %v1422, %v1459
        %v1468 = vmul.f32 %v1424, %v1460
        %v1469 = vmul.f32 %v1426, %v1461
        %v1470 = vmul.f32 %v1428, %v1462
        %v1471 = vmul.f32 %v1430, %v1463
        %v1472 = vmul.f32 %v1432, %v1464
        %v1473 = vpack.c.bf16 %v1465, %v1465
        %v1474 = vpack.c.bf16 %v1466, %v1466
        %v1475 = vpack.c.bf16 %v1467, %v1467
        %v1476 = vpack.c.bf16 %v1468, %v1468
        %v1477 = vpack.c.bf16 %v1469, %v1469
        %v1478 = vpack.c.bf16 %v1470, %v1470
        %v1479 = vpack.c.bf16 %v1471, %v1471
        %v1480 = vpack.c.bf16 %v1472, %v1472
        %v1482 = vsel %vm1384, %v1473, 0
        %vm1484 = vcmask 1043456
        %v1486 = vsel %vm1484, %v1223, 0
        %1488 = vmatpush.bf16.msra.mxu0 0
        %1489 = vmatpush.bf16.msra.mxu0 0
        %1490 = vmatpush.bf16.msra.mxu0 0
        %1491 = vmatpush.bf16.msra.mxu0 0
        %1492 = vmatpush.bf16.msra.mxu0 0
        %1493 = vmatpush.bf16.msra.mxu0 0
        %1494 = vmatpush.bf16.msra.mxu0 0
        %1495 = vmatpush.bf16.msra.mxu0 %v1486
        %1496 = vmatmul.bf16.gmra.mxu0 %v1482
        %v1497 = vpop.f32.mrf.mxu0
        %v1498 = vadd.f32 0.0, %v1497
        %v1499 = vpop.f32.mrf.mxu0
        %1500 = vdwg.mxu0
        %v1502 = vsel %vm1384, %v1474, 0
        %v1505 = vsel %vm1484, %v1224, 0
        %1507 = vmatpush.bf16.msra.mxu0 0
        %1508 = vmatpush.bf16.msra.mxu0 0
        %1509 = vmatpush.bf16.msra.mxu0 0
        %1510 = vmatpush.bf16.msra.mxu0 0
        %1511 = vmatpush.bf16.msra.mxu0 0
        %1512 = vmatpush.bf16.msra.mxu0 0
        %1513 = vmatpush.bf16.msra.mxu0 0
        %1514 = vmatpush.bf16.msra.mxu0 %v1505
        %1515 = vmatmul.bf16.gmra.mxu0 %v1502
        %v1516 = vpop.f32.mrf.mxu0
        %v1517 = vadd.f32 0.0, %v1516
        %v1518 = vpop.f32.mrf.mxu0
        %1519 = vdwg.mxu0
        %v1521 = vsel %vm1384, %v1475, 0
        %v1524 = vsel %vm1484, %v1225, 0
        %1526 = vmatpush.bf16.msra.mxu0 0
        %1527 = vmatpush.bf16.msra.mxu0 0
        %1528 = vmatpush.bf16.msra.mxu0 0
        %1529 = vmatpush.bf16.msra.mxu0 0
        %1530 = vmatpush.bf16.msra.mxu0 0
        %1531 = vmatpush.bf16.msra.mxu0 0
        %1532 = vmatpush.bf16.msra.mxu0 0
        %1533 = vmatpush.bf16.msra.mxu0 %v1524
        %1534 = vmatmul.bf16.gmra.mxu0 %v1521
        %v1535 = vpop.f32.mrf.mxu0
        %v1536 = vadd.f32 0.0, %v1535
        %v1537 = vpop.f32.mrf.mxu0
        %1538 = vdwg.mxu0
        %v1540 = vsel %vm1384, %v1476, 0
        %v1543 = vsel %vm1484, %v1226, 0
        %1545 = vmatpush.bf16.msra.mxu0 0
        %1546 = vmatpush.bf16.msra.mxu0 0
        %1547 = vmatpush.bf16.msra.mxu0 0
        %1548 = vmatpush.bf16.msra.mxu0 0
        %1549 = vmatpush.bf16.msra.mxu0 0
        %1550 = vmatpush.bf16.msra.mxu0 0
        %1551 = vmatpush.bf16.msra.mxu0 0
        %1552 = vmatpush.bf16.msra.mxu0 %v1543
        %1553 = vmatmul.bf16.gmra.mxu0 %v1540
        %v1554 = vpop.f32.mrf.mxu0
        %v1555 = vadd.f32 0.0, %v1554
        %v1556 = vpop.f32.mrf.mxu0
        %1557 = vdwg.mxu0
        %v1559 = vsel %vm1384, %v1477, 0
        %v1562 = vsel %vm1484, %v1227, 0
        %1564 = vmatpush.bf16.msra.mxu0 0
        %1565 = vmatpush.bf16.msra.mxu0 0
        %1566 = vmatpush.bf16.msra.mxu0 0
        %1567 = vmatpush.bf16.msra.mxu0 0
        %1568 = vmatpush.bf16.msra.mxu0 0
        %1569 = vmatpush.bf16.msra.mxu0 0
        %1570 = vmatpush.bf16.msra.mxu0 0
        %1571 = vmatpush.bf16.msra.mxu0 %v1562
        %1572 = vmatmul.bf16.gmra.mxu0 %v1559
        %v1573 = vpop.f32.mrf.mxu0
        %v1574 = vadd.f32 0.0, %v1573
        %v1575 = vpop.f32.mrf.mxu0
        %1576 = vdwg.mxu0
        %v1578 = vsel %vm1384, %v1478, 0
        %v1581 = vsel %vm1484, %v1228, 0
        %1583 = vmatpush.bf16.msra.mxu0 0
        %1584 = vmatpush.bf16.msra.mxu0 0
        %1585 = vmatpush.bf16.msra.mxu0 0
        %1586 = vmatpush.bf16.msra.mxu0 0
        %1587 = vmatpush.bf16.msra.mxu0 0
        %1588 = vmatpush.bf16.msra.mxu0 0
        %1589 = vmatpush.bf16.msra.mxu0 0
        %1590 = vmatpush.bf16.msra.mxu0 %v1581
        %1591 = vmatmul.bf16.gmra.mxu0 %v1578
        %v1592 = vpop.f32.mrf.mxu0
        %v1593 = vadd.f32 0.0, %v1592
        %v1594 = vpop.f32.mrf.mxu0
        %1595 = vdwg.mxu0
        %v1597 = vsel %vm1384, %v1479, 0
        %v1600 = vsel %vm1484, %v1229, 0
        %1602 = vmatpush.bf16.msra.mxu0 0
        %1603 = vmatpush.bf16.msra.mxu0 0
        %1604 = vmatpush.bf16.msra.mxu0 0
        %1605 = vmatpush.bf16.msra.mxu0 0
        %1606 = vmatpush.bf16.msra.mxu0 0
        %1607 = vmatpush.bf16.msra.mxu0 0
        %1608 = vmatpush.bf16.msra.mxu0 0
        %1609 = vmatpush.bf16.msra.mxu0 %v1600
        %1610 = vmatmul.bf16.gmra.mxu0 %v1597
        %v1611 = vpop.f32.mrf.mxu0
        %v1612 = vadd.f32 0.0, %v1611
        %v1613 = vpop.f32.mrf.mxu0
        %1614 = vdwg.mxu0
        %v1616 = vsel %vm1384, %v1480, 0
        %v1619 = vsel %vm1484, %v1230, 0
        %1621 = vmatpush.bf16.msra.mxu0 0
        %1622 = vmatpush.bf16.msra.mxu0 0
        %1623 = vmatpush.bf16.msra.mxu0 0
        %1624 = vmatpush.bf16.msra.mxu0 0
        %1625 = vmatpush.bf16.msra.mxu0 0
        %1626 = vmatpush.bf16.msra.mxu0 0
        %1627 = vmatpush.bf16.msra.mxu0 0
        %1628 = vmatpush.bf16.msra.mxu0 %v1619
        %1629 = vmatmul.bf16.gmra.mxu0 %v1616
        %v1630 = vpop.f32.mrf.mxu0
        %v1631 = vadd.f32 0.0, %v1630
        %v1632 = vpop.f32.mrf.mxu0
        %1633 = vdwg.mxu0
        %1636 = vrot.lane.b32.xlu0 %v1517, 32
        %v1637 = vpop.permute.xlu0 %1636
        %1638 = vrot.lane.b32.xlu0 %v1593, 32
        %v1639 = vpop.permute.xlu0 %1638
        %1644 = vrot.lane.b32.xlu0 %v1536, 64
        %v1645 = vpop.permute.xlu0 %1644
        %1646 = vrot.lane.b32.xlu0 %v1612, 64
        %v1647 = vpop.permute.xlu0 %1646
        %1652 = vrot.lane.b32.xlu0 %v1555, 96
        %v1653 = vpop.permute.xlu0 %1652
        %1654 = vrot.lane.b32.xlu0 %v1631, 96
        %v1655 = vpop.permute.xlu0 %1654
        %v1658 = vsel %vm1231, %v1498, %v1637
        %v1659 = vsel %vm1231, %v1574, %v1639
        %vm1660 = vcmask 523264
        %v1661 = vsel %vm1660, %v1658, %v1645
        %v1662 = vsel %vm1660, %v1659, %v1647
        %vm1663 = vcmask 785408
        %v1664 = vsel %vm1663, %v1661, %v1653
        %v1665 = vsel %vm1663, %v1662, %v1655
        %v1666 = vpack.c.bf16 %v1665, %v1664
        %v1667 = vperm.slane %v950, 0
        %v1684 = vunpack.c.l.b16 %v838
        %v1685 = vunpack.c.l.b16 %v839
        %v1686 = vunpack.c.l.b16 %v840
        %v1687 = vunpack.c.l.b16 %v841
        %v1688 = vunpack.c.l.b16 %v842
        %v1689 = vunpack.c.l.b16 %v843
        %v1690 = vunpack.c.l.b16 %v844
        %v1691 = vunpack.c.l.b16 %v845
        %v1692 = vunpack.c.l.b16 %v846
        %v1693 = vunpack.c.l.b16 %v847
        %v1694 = vunpack.c.l.b16 %v848
        %v1695 = vunpack.c.l.b16 %v849
        %v1696 = vunpack.c.l.b16 %v850
        %v1697 = vunpack.c.l.b16 %v851
        %v1698 = vunpack.c.l.b16 %v852
        %v1699 = vunpack.c.l.b16 %v853
        %v1700 = vpack.c.b16 %v1685, %v1684
        %v1701 = vpack.c.b16 %v1687, %v1686
        %v1702 = vpack.c.b16 %v1689, %v1688
        %v1703 = vpack.c.b16 %v1691, %v1690
        %v1704 = vpack.c.b16 %v1693, %v1692
        %v1705 = vpack.c.b16 %v1695, %v1694
        %v1706 = vpack.c.b16 %v1697, %v1696
        %v1707 = vpack.c.b16 %v1699, %v1698
        %1716 = vmatpush.bf16.msra.mxu0 %v1707
        %1717 = vmatpush.bf16.msra.mxu0 %v1706
        %1718 = vmatpush.bf16.msra.mxu0 %v1705
        %1719 = vmatpush.bf16.msra.mxu0 %v1704
        %1720 = vmatpush.bf16.msra.mxu0 %v1703
        %1721 = vmatpush.bf16.msra.mxu0 %v1702
        %1722 = vmatpush.bf16.msra.mxu0 %v1701
        %1723 = vmatpush.bf16.msra.mxu0 %v1700
        %1724 = vmatmul.bf16.gmra.mxu0 %v1666
        %v1725 = vpop.f32.mrf.mxu0
        %v1726 = vadd.f32 %v1667, %v1725
        %v1727 = vpop.f32.mrf.mxu0
        %v1728 = vadd.f32 %v1667, %v1727
        %1729 = vdwg.mxu0
        %v1730 = vadd.f32 %v804, %v1726
        %v1731 = vadd.f32 %v805, %v1728
        %1732 = vadd.xlane.f32.xlu0 %v1730
        %v1733 = vpop.xlane.xlu0 %1732
        %1734 = vadd.xlane.f32.xlu0 %v1731
        %v1735 = vpop.xlane.xlu0 %1734
        %v1736 = vrcp.pop 128.0
        %v1737 = vmul.f32 128.0, %v1736
        %v1738 = vsub.f32 1.0, %v1737
        %v1739 = vmul.f32 %v1736, %v1738
        %v1740 = vadd.f32 %v1736, %v1739
        %vm1741 = vweird.f32 %v1736
        %v1742 = vsel %vm1741, %v1736, %v1740
        %v1743 = vmul.f32 %v1733, %v1742
        %v1744 = vmul.f32 %v1735, %v1742
        %v1745 = vsub.f32 %v1730, %v1743
        %v1746 = vsub.f32 %v1731, %v1744
        %v1747 = vmul.f32 %v1745, %v1745
        %v1748 = vmul.f32 %v1746, %v1746
        %1749 = vadd.xlane.f32.xlu0 %v1747
        %v1750 = vpop.xlane.xlu0 %1749
        %1751 = vadd.xlane.f32.xlu0 %v1748
        %v1752 = vpop.xlane.xlu0 %1751
        %v1753 = vmul.f32 %v1750, %v1742
        %v1754 = vmul.f32 %v1752, %v1742
        %v1755 = vadd.f32 %v1753, 1e-05
        %v1756 = vadd.f32 %v1754, 1e-05
        %v1757 = vrsqrt.pop %v1755
        %v1758 = vmul.f32 %v1757, %v1755
        %v1759 = vmul.f32 %v1758, %v1757
        %v1760 = vmul.f32 0.5, %v1759
        %v1761 = vsub.f32 1.5, %v1760
        %v1762 = vmul.f32 %v1757, %v1761
        %vm1763 = vweird.f32 %v1755
        %vm1764 = vweird.f32 %v1757
        %vm1765 = vmor %vm1763, %vm1764
        %v1766 = vsel %vm1765, %v1757, %v1762
        %v1767 = vrsqrt.pop %v1756
        %v1768 = vmul.f32 %v1767, %v1756
        %v1769 = vmul.f32 %v1768, %v1767
        %v1770 = vmul.f32 0.5, %v1769
        %v1771 = vsub.f32 1.5, %v1770
        %v1772 = vmul.f32 %v1767, %v1771
        %vm1773 = vweird.f32 %v1756
        %vm1774 = vweird.f32 %v1767
        %vm1775 = vmor %vm1773, %vm1774
        %v1776 = vsel %vm1775, %v1767, %v1772
        %v1777 = vmul.f32 %v1745, %v1766
        %v1778 = vmul.f32 %v1746, %v1776
        %v1779 = vperm.slane %v950, 1
        %v1780 = vmul.f32 %v1777, %v1779
        %v1781 = vmul.f32 %v1778, %v1779
        %v1782 = vperm.slane %v950, 2
        %v1783 = vadd.f32 %v1780, %v1782
        %v1784 = vadd.f32 %v1781, %v1782
        %v1785 = vpack.c.bf16 %v1784, %v1783
        %v1786 = vperm.slane %v950, 3
        %v1803 = vunpack.c.l.b16 %v854
        %v1804 = vunpack.c.l.b16 %v855
        %v1805 = vunpack.c.l.b16 %v856
        %v1806 = vunpack.c.l.b16 %v857
        %v1807 = vunpack.c.l.b16 %v858
        %v1808 = vunpack.c.l.b16 %v859
        %v1809 = vunpack.c.l.b16 %v860
        %v1810 = vunpack.c.l.b16 %v861
        %v1811 = vunpack.c.l.b16 %v862
        %v1812 = vunpack.c.l.b16 %v863
        %v1813 = vunpack.c.l.b16 %v864
        %v1814 = vunpack.c.l.b16 %v865
        %v1815 = vunpack.c.l.b16 %v866
        %v1816 = vunpack.c.l.b16 %v867
        %v1817 = vunpack.c.l.b16 %v868
        %v1818 = vunpack.c.l.b16 %v869
        %v1819 = vpack.c.b16 %v1804, %v1803
        %v1820 = vpack.c.b16 %v1806, %v1805
        %v1821 = vpack.c.b16 %v1808, %v1807
        %v1822 = vpack.c.b16 %v1810, %v1809
        %v1823 = vpack.c.b16 %v1812, %v1811
        %v1824 = vpack.c.b16 %v1814, %v1813
        %v1825 = vpack.c.b16 %v1816, %v1815
        %v1826 = vpack.c.b16 %v1818, %v1817
        %1835 = vmatpush.bf16.msra.mxu0 %v1826
        %1836 = vmatpush.bf16.msra.mxu0 %v1825
        %1837 = vmatpush.bf16.msra.mxu0 %v1824
        %1838 = vmatpush.bf16.msra.mxu0 %v1823
        %1839 = vmatpush.bf16.msra.mxu0 %v1822
        %1840 = vmatpush.bf16.msra.mxu0 %v1821
        %1841 = vmatpush.bf16.msra.mxu0 %v1820
        %1842 = vmatpush.bf16.msra.mxu0 %v1819
        %1843 = vmatmul.bf16.gmra.mxu0 %v1785
        %v1844 = vpop.f32.mrf.mxu0
        %v1845 = vadd.f32 %v1786, %v1844
        %v1846 = vpop.f32.mrf.mxu0
        %v1847 = vadd.f32 %v1786, %v1846
        %1848 = vdwg.mxu0
        %v1849 = vperm.slane %v952, 1
        %v1850 = vperm.slane %v952, 5
        %v1853 = vperm.slane %v1849, 1
        %v1854 = vperm.slane %v1850, 1
        %v1857 = vunpack.c.l.b16 %v954
        %v1858 = vunpack.c.l.b16 %v955
        %v1859 = vpack.c.b16 %v1858, %v1857
        %v1877 = vunpack.c.l.b16 %v870
        %v1878 = vunpack.c.h.b16 %v870
        %v1879 = vunpack.c.l.b16 %v871
        %v1880 = vunpack.c.h.b16 %v871
        %v1881 = vunpack.c.l.b16 %v872
        %v1882 = vunpack.c.h.b16 %v872
        %v1883 = vunpack.c.l.b16 %v873
        %v1884 = vunpack.c.h.b16 %v873
        %v1885 = vunpack.c.l.b16 %v874
        %v1886 = vunpack.c.h.b16 %v874
        %v1887 = vunpack.c.l.b16 %v875
        %v1888 = vunpack.c.h.b16 %v875
        %v1889 = vunpack.c.l.b16 %v876
        %v1890 = vunpack.c.h.b16 %v876
        %v1891 = vunpack.c.l.b16 %v877
        %v1892 = vunpack.c.h.b16 %v877
        %v1893 = vunpack.c.l.b16 %v878
        %v1894 = vunpack.c.h.b16 %v878
        %v1895 = vunpack.c.l.b16 %v879
        %v1896 = vunpack.c.h.b16 %v879
        %v1897 = vunpack.c.l.b16 %v880
        %v1898 = vunpack.c.h.b16 %v880
        %v1899 = vunpack.c.l.b16 %v881
        %v1900 = vunpack.c.h.b16 %v881
        %v1901 = vunpack.c.l.b16 %v882
        %v1902 = vunpack.c.h.b16 %v882
        %v1903 = vunpack.c.l.b16 %v883
        %v1904 = vunpack.c.h.b16 %v883
        %v1905 = vunpack.c.l.b16 %v884
        %v1906 = vunpack.c.h.b16 %v884
        %v1907 = vunpack.c.l.b16 %v885
        %v1908 = vunpack.c.h.b16 %v885
        %v1909 = vpack.c.b16 %v1879, %v1877
        %v1910 = vpack.c.b16 %v1880, %v1878
        %v1911 = vpack.c.b16 %v1883, %v1881
        %v1912 = vpack.c.b16 %v1884, %v1882
        %v1913 = vpack.c.b16 %v1887, %v1885
        %v1914 = vpack.c.b16 %v1888, %v1886
        %v1915 = vpack.c.b16 %v1891, %v1889
        %v1916 = vpack.c.b16 %v1892, %v1890
        %v1917 = vpack.c.b16 %v1895, %v1893
        %v1918 = vpack.c.b16 %v1896, %v1894
        %v1919 = vpack.c.b16 %v1899, %v1897
        %v1920 = vpack.c.b16 %v1900, %v1898
        %v1921 = vpack.c.b16 %v1903, %v1901
        %v1922 = vpack.c.b16 %v1904, %v1902
        %v1923 = vpack.c.b16 %v1907, %v1905
        %v1924 = vpack.c.b16 %v1908, %v1906
        %1941 = vmatpush.bf16.msra.mxu0 %v1923
        %1942 = vmatpush.bf16.msra.mxu0 %v1921
        %1943 = vmatpush.bf16.msra.mxu0 %v1919
        %1944 = vmatpush.bf16.msra.mxu0 %v1917
        %1945 = vmatpush.bf16.msra.mxu0 %v1915
        %1946 = vmatpush.bf16.msra.mxu0 %v1913
        %1947 = vmatpush.bf16.msra.mxu0 %v1911
        %1948 = vmatpush.bf16.msra.mxu0 %v1909
        %1949 = vmatmul.bf16.gmra.mxu0 %v1859
        %v1950 = vpop.f32.mrf.mxu0
        %v1951 = vadd.f32 %v1853, %v1950
        %v1952 = vpop.f32.mrf.mxu0
        %v1953 = vadd.f32 %v1853, %v1952
        %1954 = vdwg.mxu0
        %1955 = vmatpush.bf16.msra.mxu0 %v1924
        %1956 = vmatpush.bf16.msra.mxu0 %v1922
        %1957 = vmatpush.bf16.msra.mxu0 %v1920
        %1958 = vmatpush.bf16.msra.mxu0 %v1918
        %1959 = vmatpush.bf16.msra.mxu0 %v1916
        %1960 = vmatpush.bf16.msra.mxu0 %v1914
        %1961 = vmatpush.bf16.msra.mxu0 %v1912
        %1962 = vmatpush.bf16.msra.mxu0 %v1910
        %1963 = vmatmul.bf16.gmra.mxu0 %v1859
        %v1964 = vpop.f32.mrf.mxu0
        %v1965 = vadd.f32 %v1854, %v1964
        %v1966 = vpop.f32.mrf.mxu0
        %v1967 = vadd.f32 %v1854, %v1966
        %1968 = vdwg.mxu0
        %1971 = vrot.lane.b32.xlu0 %v1845, 96
        %v1972 = vpop.permute.xlu0 %1971
        %1973 = vrot.lane.b32.xlu0 %v1847, 96
        %v1974 = vpop.permute.xlu0 %1973
        %1977 = vrot.lane.b32.xlu0 %v1845, 64
        %v1978 = vpop.permute.xlu0 %1977
        %1979 = vrot.lane.b32.xlu0 %v1847, 64
        %v1980 = vpop.permute.xlu0 %1979
        %1983 = vrot.lane.b32.xlu0 %v1845, 32
        %v1984 = vpop.permute.xlu0 %1983
        %1985 = vrot.lane.b32.xlu0 %v1847, 32
        %v1986 = vpop.permute.xlu0 %1985
        %v1989 = vpack.c.bf16 %v1845, %v1845
        %v1990 = vpack.c.bf16 %v1972, %v1972
        %v1991 = vpack.c.bf16 %v1978, %v1978
        %v1992 = vpack.c.bf16 %v1984, %v1984
        %v1993 = vpack.c.bf16 %v1847, %v1847
        %v1994 = vpack.c.bf16 %v1974, %v1974
        %v1995 = vpack.c.bf16 %v1980, %v1980
        %v1996 = vpack.c.bf16 %v1986, %v1986
        %1999 = vrot.lane.b32.xlu0 %v1951, 96
        %v2000 = vpop.permute.xlu0 %1999
        %2001 = vrot.lane.b32.xlu0 %v1953, 96
        %v2002 = vpop.permute.xlu0 %2001
        %2005 = vrot.lane.b32.xlu0 %v1951, 64
        %v2006 = vpop.permute.xlu0 %2005
        %2007 = vrot.lane.b32.xlu0 %v1953, 64
        %v2008 = vpop.permute.xlu0 %2007
        %2011 = vrot.lane.b32.xlu0 %v1951, 32
        %v2012 = vpop.permute.xlu0 %2011
        %2013 = vrot.lane.b32.xlu0 %v1953, 32
        %v2014 = vpop.permute.xlu0 %2013
        %v2017 = vpack.c.bf16 %v1951, %v1951
        %v2018 = vpack.c.bf16 %v2000, %v2000
        %v2019 = vpack.c.bf16 %v2006, %v2006
        %v2020 = vpack.c.bf16 %v2012, %v2012
        %v2021 = vpack.c.bf16 %v1953, %v1953
        %v2022 = vpack.c.bf16 %v2002, %v2002
        %v2023 = vpack.c.bf16 %v2008, %v2008
        %v2024 = vpack.c.bf16 %v2014, %v2014
        %2027 = vrot.lane.b32.xlu0 %v1965, 96
        %v2028 = vpop.permute.xlu0 %2027
        %2029 = vrot.lane.b32.xlu0 %v1967, 96
        %v2030 = vpop.permute.xlu0 %2029
        %2033 = vrot.lane.b32.xlu0 %v1965, 64
        %v2034 = vpop.permute.xlu0 %2033
        %2035 = vrot.lane.b32.xlu0 %v1967, 64
        %v2036 = vpop.permute.xlu0 %2035
        %2039 = vrot.lane.b32.xlu0 %v1965, 32
        %v2040 = vpop.permute.xlu0 %2039
        %2041 = vrot.lane.b32.xlu0 %v1967, 32
        %v2042 = vpop.permute.xlu0 %2041
        %v2045 = vpack.c.bf16 %v1965, %v1965
        %v2046 = vpack.c.bf16 %v2028, %v2028
        %v2047 = vpack.c.bf16 %v2034, %v2034
        %v2048 = vpack.c.bf16 %v2040, %v2040
        %v2049 = vpack.c.bf16 %v1967, %v1967
        %v2050 = vpack.c.bf16 %v2030, %v2030
        %v2051 = vpack.c.bf16 %v2036, %v2036
        %v2052 = vpack.c.bf16 %v2042, %v2042
        %v2061 = vperm.slane %v956, 0
        %v2062 = vperm.slane %v957, 0
        %v2063 = vperm.slane %v958, 0
        %v2064 = vperm.slane %v959, 0
        %v2065 = vperm.slane %v960, 0
        %v2066 = vperm.slane %v961, 0
        %v2067 = vperm.slane %v962, 0
        %v2068 = vperm.slane %v963, 0
        %v2078 = vsel %vm1231, %v1989, 0
        %v2081 = vsel %vm1231, %v2017, 0
        %2083 = vmatpush.bf16.xpose.msra.mxu0 0
        %2084 = vmatpush.bf16.xpose.msra.mxu0 0
        %2085 = vmatpush.bf16.xpose.msra.mxu0 0
        %2086 = vmatpush.bf16.xpose.msra.mxu0 0
        %2087 = vmatpush.bf16.xpose.msra.mxu0 0
        %2088 = vmatpush.bf16.xpose.msra.mxu0 0
        %2089 = vmatpush.bf16.xpose.msra.mxu0 0
        %2090 = vmatpush.bf16.xpose.msra.mxu0 %v2081
        %2091 = vmatmul.bf16.gmra.mxu0 %v2078
        %v2092 = vpop.f32.mrf.mxu0
        %v2093 = vadd.f32 %v2061, %v2092
        %v2094 = vpop.f32.mrf.mxu0
        %2095 = vdwg.mxu0
        %v2097 = vsel %vm1231, %v1990, 0
        %v2100 = vsel %vm1231, %v2018, 0
        %2102 = vmatpush.bf16.xpose.msra.mxu0 0
        %2103 = vmatpush.bf16.xpose.msra.mxu0 0
        %2104 = vmatpush.bf16.xpose.msra.mxu0 0
        %2105 = vmatpush.bf16.xpose.msra.mxu0 0
        %2106 = vmatpush.bf16.xpose.msra.mxu0 0
        %2107 = vmatpush.bf16.xpose.msra.mxu0 0
        %2108 = vmatpush.bf16.xpose.msra.mxu0 0
        %2109 = vmatpush.bf16.xpose.msra.mxu0 %v2100
        %2110 = vmatmul.bf16.gmra.mxu0 %v2097
        %v2111 = vpop.f32.mrf.mxu0
        %v2112 = vadd.f32 %v2062, %v2111
        %v2113 = vpop.f32.mrf.mxu0
        %2114 = vdwg.mxu0
        %v2116 = vsel %vm1231, %v1991, 0
        %v2119 = vsel %vm1231, %v2019, 0
        %2121 = vmatpush.bf16.xpose.msra.mxu0 0
        %2122 = vmatpush.bf16.xpose.msra.mxu0 0
        %2123 = vmatpush.bf16.xpose.msra.mxu0 0
        %2124 = vmatpush.bf16.xpose.msra.mxu0 0
        %2125 = vmatpush.bf16.xpose.msra.mxu0 0
        %2126 = vmatpush.bf16.xpose.msra.mxu0 0
        %2127 = vmatpush.bf16.xpose.msra.mxu0 0
        %2128 = vmatpush.bf16.xpose.msra.mxu0 %v2119
        %2129 = vmatmul.bf16.gmra.mxu0 %v2116
        %v2130 = vpop.f32.mrf.mxu0
        %v2131 = vadd.f32 %v2063, %v2130
        %v2132 = vpop.f32.mrf.mxu0
        %2133 = vdwg.mxu0
        %v2135 = vsel %vm1231, %v1992, 0
        %v2138 = vsel %vm1231, %v2020, 0
        %2140 = vmatpush.bf16.xpose.msra.mxu0 0
        %2141 = vmatpush.bf16.xpose.msra.mxu0 0
        %2142 = vmatpush.bf16.xpose.msra.mxu0 0
        %2143 = vmatpush.bf16.xpose.msra.mxu0 0
        %2144 = vmatpush.bf16.xpose.msra.mxu0 0
        %2145 = vmatpush.bf16.xpose.msra.mxu0 0
        %2146 = vmatpush.bf16.xpose.msra.mxu0 0
        %2147 = vmatpush.bf16.xpose.msra.mxu0 %v2138
        %2148 = vmatmul.bf16.gmra.mxu0 %v2135
        %v2149 = vpop.f32.mrf.mxu0
        %v2150 = vadd.f32 %v2064, %v2149
        %v2151 = vpop.f32.mrf.mxu0
        %2152 = vdwg.mxu0
        %v2154 = vsel %vm1231, %v1993, 0
        %v2157 = vsel %vm1231, %v2021, 0
        %2159 = vmatpush.bf16.xpose.msra.mxu0 0
        %2160 = vmatpush.bf16.xpose.msra.mxu0 0
        %2161 = vmatpush.bf16.xpose.msra.mxu0 0
        %2162 = vmatpush.bf16.xpose.msra.mxu0 0
        %2163 = vmatpush.bf16.xpose.msra.mxu0 0
        %2164 = vmatpush.bf16.xpose.msra.mxu0 0
        %2165 = vmatpush.bf16.xpose.msra.mxu0 0
        %2166 = vmatpush.bf16.xpose.msra.mxu0 %v2157
        %2167 = vmatmul.bf16.gmra.mxu0 %v2154
        %v2168 = vpop.f32.mrf.mxu0
        %v2169 = vadd.f32 %v2065, %v2168
        %v2170 = vpop.f32.mrf.mxu0
        %2171 = vdwg.mxu0
        %v2173 = vsel %vm1231, %v1994, 0
        %v2176 = vsel %vm1231, %v2022, 0
        %2178 = vmatpush.bf16.xpose.msra.mxu0 0
        %2179 = vmatpush.bf16.xpose.msra.mxu0 0
        %2180 = vmatpush.bf16.xpose.msra.mxu0 0
        %2181 = vmatpush.bf16.xpose.msra.mxu0 0
        %2182 = vmatpush.bf16.xpose.msra.mxu0 0
        %2183 = vmatpush.bf16.xpose.msra.mxu0 0
        %2184 = vmatpush.bf16.xpose.msra.mxu0 0
        %2185 = vmatpush.bf16.xpose.msra.mxu0 %v2176
        %2186 = vmatmul.bf16.gmra.mxu0 %v2173
        %v2187 = vpop.f32.mrf.mxu0
        %v2188 = vadd.f32 %v2066, %v2187
        %v2189 = vpop.f32.mrf.mxu0
        %2190 = vdwg.mxu0
        %v2192 = vsel %vm1231, %v1995, 0
        %v2195 = vsel %vm1231, %v2023, 0
        %2197 = vmatpush.bf16.xpose.msra.mxu0 0
        %2198 = vmatpush.bf16.xpose.msra.mxu0 0
        %2199 = vmatpush.bf16.xpose.msra.mxu0 0
        %2200 = vmatpush.bf16.xpose.msra.mxu0 0
        %2201 = vmatpush.bf16.xpose.msra.mxu0 0
        %2202 = vmatpush.bf16.xpose.msra.mxu0 0
        %2203 = vmatpush.bf16.xpose.msra.mxu0 0
        %2204 = vmatpush.bf16.xpose.msra.mxu0 %v2195
        %2205 = vmatmul.bf16.gmra.mxu0 %v2192
        %v2206 = vpop.f32.mrf.mxu0
        %v2207 = vadd.f32 %v2067, %v2206
        %v2208 = vpop.f32.mrf.mxu0
        %2209 = vdwg.mxu0
        %v2211 = vsel %vm1231, %v1996, 0
        %v2214 = vsel %vm1231, %v2024, 0
        %2216 = vmatpush.bf16.xpose.msra.mxu0 0
        %2217 = vmatpush.bf16.xpose.msra.mxu0 0
        %2218 = vmatpush.bf16.xpose.msra.mxu0 0
        %2219 = vmatpush.bf16.xpose.msra.mxu0 0
        %2220 = vmatpush.bf16.xpose.msra.mxu0 0
        %2221 = vmatpush.bf16.xpose.msra.mxu0 0
        %2222 = vmatpush.bf16.xpose.msra.mxu0 0
        %2223 = vmatpush.bf16.xpose.msra.mxu0 %v2214
        %2224 = vmatmul.bf16.gmra.mxu0 %v2211
        %v2225 = vpop.f32.mrf.mxu0
        %v2226 = vadd.f32 %v2068, %v2225
        %v2227 = vpop.f32.mrf.mxu0
        %2228 = vdwg.mxu0
        %v2229 = vsel %vm1384, %v2093, -inf
        %2230 = vmax.xlane.f32.xlu0 %v2229
        %v2231 = vpop.xlane.xlu0 %2230
        %v2232 = vsel %vm1384, %v2112, -inf
        %2233 = vmax.xlane.f32.xlu0 %v2232
        %v2234 = vpop.xlane.xlu0 %2233
        %v2235 = vsel %vm1384, %v2131, -inf
        %2236 = vmax.xlane.f32.xlu0 %v2235
        %v2237 = vpop.xlane.xlu0 %2236
        %v2238 = vsel %vm1384, %v2150, -inf
        %2239 = vmax.xlane.f32.xlu0 %v2238
        %v2240 = vpop.xlane.xlu0 %2239
        %v2241 = vsel %vm1384, %v2169, -inf
        %2242 = vmax.xlane.f32.xlu0 %v2241
        %v2243 = vpop.xlane.xlu0 %2242
        %v2244 = vsel %vm1384, %v2188, -inf
        %2245 = vmax.xlane.f32.xlu0 %v2244
        %v2246 = vpop.xlane.xlu0 %2245
        %v2247 = vsel %vm1384, %v2207, -inf
        %2248 = vmax.xlane.f32.xlu0 %v2247
        %v2249 = vpop.xlane.xlu0 %2248
        %v2250 = vsel %vm1384, %v2226, -inf
        %2251 = vmax.xlane.f32.xlu0 %v2250
        %v2252 = vpop.xlane.xlu0 %2251
        %v2253 = vsub.f32 %v2093, %v2231
        %v2254 = vsub.f32 %v2112, %v2234
        %v2255 = vsub.f32 %v2131, %v2237
        %v2256 = vsub.f32 %v2150, %v2240
        %v2257 = vsub.f32 %v2169, %v2243
        %v2258 = vsub.f32 %v2188, %v2246
        %v2259 = vsub.f32 %v2207, %v2249
        %v2260 = vsub.f32 %v2226, %v2252
        %v2261 = vmul.f32 %v2253, 1.442695
        %v2262 = vpow.pop %v2261
        %v2263 = vmul.f32 %v2254, 1.442695
        %v2264 = vpow.pop %v2263
        %v2265 = vmul.f32 %v2255, 1.442695
        %v2266 = vpow.pop %v2265
        %v2267 = vmul.f32 %v2256, 1.442695
        %v2268 = vpow.pop %v2267
        %v2269 = vmul.f32 %v2257, 1.442695
        %v2270 = vpow.pop %v2269
        %v2271 = vmul.f32 %v2258, 1.442695
        %v2272 = vpow.pop %v2271
        %v2273 = vmul.f32 %v2259, 1.442695
        %v2274 = vpow.pop %v2273
        %v2275 = vmul.f32 %v2260, 1.442695
        %v2276 = vpow.pop %v2275
        %v2277 = vsel %vm1384, %v2262, 0.0
        %2278 = vadd.xlane.f32.xlu0 %v2277
        %v2279 = vpop.xlane.xlu0 %2278
        %v2280 = vsel %vm1384, %v2264, 0.0
        %2281 = vadd.xlane.f32.xlu0 %v2280
        %v2282 = vpop.xlane.xlu0 %2281
        %v2283 = vsel %vm1384, %v2266, 0.0
        %2284 = vadd.xlane.f32.xlu0 %v2283
        %v2285 = vpop.xlane.xlu0 %2284
        %v2286 = vsel %vm1384, %v2268, 0.0
        %2287 = vadd.xlane.f32.xlu0 %v2286
        %v2288 = vpop.xlane.xlu0 %2287
        %v2289 = vsel %vm1384, %v2270, 0.0
        %2290 = vadd.xlane.f32.xlu0 %v2289
        %v2291 = vpop.xlane.xlu0 %2290
        %v2292 = vsel %vm1384, %v2272, 0.0
        %2293 = vadd.xlane.f32.xlu0 %v2292
        %v2294 = vpop.xlane.xlu0 %2293
        %v2295 = vsel %vm1384, %v2274, 0.0
        %2296 = vadd.xlane.f32.xlu0 %v2295
        %v2297 = vpop.xlane.xlu0 %2296
        %v2298 = vsel %vm1384, %v2276, 0.0
        %2299 = vadd.xlane.f32.xlu0 %v2298
        %v2300 = vpop.xlane.xlu0 %2299
        %v2301 = vrcp.pop %v2279
        %v2302 = vrcp.pop %v2282
        %v2303 = vrcp.pop %v2285
        %v2304 = vrcp.pop %v2288
        %v2305 = vrcp.pop %v2291
        %v2306 = vrcp.pop %v2294
        %v2307 = vrcp.pop %v2297
        %v2308 = vrcp.pop %v2300
        %v2309 = vmul.f32 %v2262, %v2301
        %v2310 = vmul.f32 %v2264, %v2302
        %v2311 = vmul.f32 %v2266, %v2303
        %v2312 = vmul.f32 %v2268, %v2304
        %v2313 = vmul.f32 %v2270, %v2305
        %v2314 = vmul.f32 %v2272, %v2306
        %v2315 = vmul.f32 %v2274, %v2307
        %v2316 = vmul.f32 %v2276, %v2308
        %v2317 = vpack.c.bf16 %v2309, %v2309
        %v2318 = vpack.c.bf16 %v2310, %v2310
        %v2319 = vpack.c.bf16 %v2311, %v2311
        %v2320 = vpack.c.bf16 %v2312, %v2312
        %v2321 = vpack.c.bf16 %v2313, %v2313
        %v2322 = vpack.c.bf16 %v2314, %v2314
        %v2323 = vpack.c.bf16 %v2315, %v2315
        %v2324 = vpack.c.bf16 %v2316, %v2316
        %v2326 = vsel %vm1384, %v2317, 0
        %v2329 = vsel %vm1484, %v2045, 0
        %2331 = vmatpush.bf16.msra.mxu0 0
        %2332 = vmatpush.bf16.msra.mxu0 0
        %2333 = vmatpush.bf16.msra.mxu0 0
        %2334 = vmatpush.bf16.msra.mxu0 0
        %2335 = vmatpush.bf16.msra.mxu0 0
        %2336 = vmatpush.bf16.msra.mxu0 0
        %2337 = vmatpush.bf16.msra.mxu0 0
        %2338 = vmatpush.bf16.msra.mxu0 %v2329
        %2339 = vmatmul.bf16.gmra.mxu0 %v2326
        %v2340 = vpop.f32.mrf.mxu0
        %v2341 = vadd.f32 0.0, %v2340
        %v2342 = vpop.f32.mrf.mxu0
        %2343 = vdwg.mxu0
        %v2345 = vsel %vm1384, %v2318, 0
        %v2348 = vsel %vm1484, %v2046, 0
        %2350 = vmatpush.bf16.msra.mxu0 0
        %2351 = vmatpush.bf16.msra.mxu0 0
        %2352 = vmatpush.bf16.msra.mxu0 0
        %2353 = vmatpush.bf16.msra.mxu0 0
        %2354 = vmatpush.bf16.msra.mxu0 0
        %2355 = vmatpush.bf16.msra.mxu0 0
        %2356 = vmatpush.bf16.msra.mxu0 0
        %2357 = vmatpush.bf16.msra.mxu0 %v2348
        %2358 = vmatmul.bf16.gmra.mxu0 %v2345
        %v2359 = vpop.f32.mrf.mxu0
        %v2360 = vadd.f32 0.0, %v2359
        %v2361 = vpop.f32.mrf.mxu0
        %2362 = vdwg.mxu0
        %v2364 = vsel %vm1384, %v2319, 0
        %v2367 = vsel %vm1484, %v2047, 0
        %2369 = vmatpush.bf16.msra.mxu0 0
        %2370 = vmatpush.bf16.msra.mxu0 0
        %2371 = vmatpush.bf16.msra.mxu0 0
        %2372 = vmatpush.bf16.msra.mxu0 0
        %2373 = vmatpush.bf16.msra.mxu0 0
        %2374 = vmatpush.bf16.msra.mxu0 0
        %2375 = vmatpush.bf16.msra.mxu0 0
        %2376 = vmatpush.bf16.msra.mxu0 %v2367
        %2377 = vmatmul.bf16.gmra.mxu0 %v2364
        %v2378 = vpop.f32.mrf.mxu0
        %v2379 = vadd.f32 0.0, %v2378
        %v2380 = vpop.f32.mrf.mxu0
        %2381 = vdwg.mxu0
        %v2383 = vsel %vm1384, %v2320, 0
        %v2386 = vsel %vm1484, %v2048, 0
        %2388 = vmatpush.bf16.msra.mxu0 0
        %2389 = vmatpush.bf16.msra.mxu0 0
        %2390 = vmatpush.bf16.msra.mxu0 0
        %2391 = vmatpush.bf16.msra.mxu0 0
        %2392 = vmatpush.bf16.msra.mxu0 0
        %2393 = vmatpush.bf16.msra.mxu0 0
        %2394 = vmatpush.bf16.msra.mxu0 0
        %2395 = vmatpush.bf16.msra.mxu0 %v2386
        %2396 = vmatmul.bf16.gmra.mxu0 %v2383
        %v2397 = vpop.f32.mrf.mxu0
        %v2398 = vadd.f32 0.0, %v2397
        %v2399 = vpop.f32.mrf.mxu0
        %2400 = vdwg.mxu0
        %v2402 = vsel %vm1384, %v2321, 0
        %v2405 = vsel %vm1484, %v2049, 0
        %2407 = vmatpush.bf16.msra.mxu0 0
        %2408 = vmatpush.bf16.msra.mxu0 0
        %2409 = vmatpush.bf16.msra.mxu0 0
        %2410 = vmatpush.bf16.msra.mxu0 0
        %2411 = vmatpush.bf16.msra.mxu0 0
        %2412 = vmatpush.bf16.msra.mxu0 0
        %2413 = vmatpush.bf16.msra.mxu0 0
        %2414 = vmatpush.bf16.msra.mxu0 %v2405
        %2415 = vmatmul.bf16.gmra.mxu0 %v2402
        %v2416 = vpop.f32.mrf.mxu0
        %v2417 = vadd.f32 0.0, %v2416
        %v2418 = vpop.f32.mrf.mxu0
        %2419 = vdwg.mxu0
        %v2421 = vsel %vm1384, %v2322, 0
        %v2424 = vsel %vm1484, %v2050, 0
        %2426 = vmatpush.bf16.msra.mxu0 0
        %2427 = vmatpush.bf16.msra.mxu0 0
        %2428 = vmatpush.bf16.msra.mxu0 0
        %2429 = vmatpush.bf16.msra.mxu0 0
        %2430 = vmatpush.bf16.msra.mxu0 0
        %2431 = vmatpush.bf16.msra.mxu0 0
        %2432 = vmatpush.bf16.msra.mxu0 0
        %2433 = vmatpush.bf16.msra.mxu0 %v2424
        %2434 = vmatmul.bf16.gmra.mxu0 %v2421
        %v2435 = vpop.f32.mrf.mxu0
        %v2436 = vadd.f32 0.0, %v2435
        %v2437 = vpop.f32.mrf.mxu0
        %2438 = vdwg.mxu0
        %v2440 = vsel %vm1384, %v2323, 0
        %v2443 = vsel %vm1484, %v2051, 0
        %2445 = vmatpush.bf16.msra.mxu0 0
        %2446 = vmatpush.bf16.msra.mxu0 0
        %2447 = vmatpush.bf16.msra.mxu0 0
        %2448 = vmatpush.bf16.msra.mxu0 0
        %2449 = vmatpush.bf16.msra.mxu0 0
        %2450 = vmatpush.bf16.msra.mxu0 0
        %2451 = vmatpush.bf16.msra.mxu0 0
        %2452 = vmatpush.bf16.msra.mxu0 %v2443
        %2453 = vmatmul.bf16.gmra.mxu0 %v2440
        %v2454 = vpop.f32.mrf.mxu0
        %v2455 = vadd.f32 0.0, %v2454
        %v2456 = vpop.f32.mrf.mxu0
        %2457 = vdwg.mxu0
        %v2459 = vsel %vm1384, %v2324, 0
        %v2462 = vsel %vm1484, %v2052, 0
        %2464 = vmatpush.bf16.msra.mxu0 0
        %2465 = vmatpush.bf16.msra.mxu0 0
        %2466 = vmatpush.bf16.msra.mxu0 0
        %2467 = vmatpush.bf16.msra.mxu0 0
        %2468 = vmatpush.bf16.msra.mxu0 0
        %2469 = vmatpush.bf16.msra.mxu0 0
        %2470 = vmatpush.bf16.msra.mxu0 0
        %2471 = vmatpush.bf16.msra.mxu0 %v2462
        %2472 = vmatmul.bf16.gmra.mxu0 %v2459
        %v2473 = vpop.f32.mrf.mxu0
        %v2474 = vadd.f32 0.0, %v2473
        %v2475 = vpop.f32.mrf.mxu0
        %2476 = vdwg.mxu0
        %2479 = vrot.lane.b32.xlu0 %v2360, 32
        %v2480 = vpop.permute.xlu0 %2479
        %2481 = vrot.lane.b32.xlu0 %v2436, 32
        %v2482 = vpop.permute.xlu0 %2481
        %2487 = vrot.lane.b32.xlu0 %v2379, 64
        %v2488 = vpop.permute.xlu0 %2487
        %2489 = vrot.lane.b32.xlu0 %v2455, 64
        %v2490 = vpop.permute.xlu0 %2489
        %2495 = vrot.lane.b32.xlu0 %v2398, 96
        %v2496 = vpop.permute.xlu0 %2495
        %2497 = vrot.lane.b32.xlu0 %v2474, 96
        %v2498 = vpop.permute.xlu0 %2497
        %v2501 = vsel %vm1231, %v2341, %v2480
        %v2502 = vsel %vm1231, %v2417, %v2482
        %v2503 = vsel %vm1660, %v2501, %v2488
        %v2504 = vsel %vm1660, %v2502, %v2490
        %v2505 = vsel %vm1663, %v2503, %v2496
        %v2506 = vsel %vm1663, %v2504, %v2498
        %v2507 = vpack.c.bf16 %v2506, %v2505
        %v2508 = vperm.slane %v950, 4
        %v2525 = vunpack.c.l.b16 %v886
        %v2526 = vunpack.c.l.b16 %v887
        %v2527 = vunpack.c.l.b16 %v888
        %v2528 = vunpack.c.l.b16 %v889
        %v2529 = vunpack.c.l.b16 %v890
        %v2530 = vunpack.c.l.b16 %v891
        %v2531 = vunpack.c.l.b16 %v892
        %v2532 = vunpack.c.l.b16 %v893
        %v2533 = vunpack.c.l.b16 %v894
        %v2534 = vunpack.c.l.b16 %v895
        %v2535 = vunpack.c.l.b16 %v896
        %v2536 = vunpack.c.l.b16 %v897
        %v2537 = vunpack.c.l.b16 %v898
        %v2538 = vunpack.c.l.b16 %v899
        %v2539 = vunpack.c.l.b16 %v900
        %v2540 = vunpack.c.l.b16 %v901
        %v2541 = vpack.c.b16 %v2526, %v2525
        %v2542 = vpack.c.b16 %v2528, %v2527
        %v2543 = vpack.c.b16 %v2530, %v2529
        %v2544 = vpack.c.b16 %v2532, %v2531
        %v2545 = vpack.c.b16 %v2534, %v2533
        %v2546 = vpack.c.b16 %v2536, %v2535
        %v2547 = vpack.c.b16 %v2538, %v2537
        %v2548 = vpack.c.b16 %v2540, %v2539
        %2557 = vmatpush.bf16.msra.mxu0 %v2548
        %2558 = vmatpush.bf16.msra.mxu0 %v2547
        %2559 = vmatpush.bf16.msra.mxu0 %v2546
        %2560 = vmatpush.bf16.msra.mxu0 %v2545
        %2561 = vmatpush.bf16.msra.mxu0 %v2544
        %2562 = vmatpush.bf16.msra.mxu0 %v2543
        %2563 = vmatpush.bf16.msra.mxu0 %v2542
        %2564 = vmatpush.bf16.msra.mxu0 %v2541
        %2565 = vmatmul.bf16.gmra.mxu0 %v2507
        %v2566 = vpop.f32.mrf.mxu0
        %v2567 = vadd.f32 %v2508, %v2566
        %v2568 = vpop.f32.mrf.mxu0
        %v2569 = vadd.f32 %v2508, %v2568
        %2570 = vdwg.mxu0
        %v2571 = vadd.f32 %v1783, %v2567
        %v2572 = vadd.f32 %v1784, %v2569
        %2573 = vadd.xlane.f32.xlu0 %v2571
        %v2574 = vpop.xlane.xlu0 %2573
        %2575 = vadd.xlane.f32.xlu0 %v2572
        %v2576 = vpop.xlane.xlu0 %2575
        %v2577 = vmul.f32 %v2574, %v1742
        %v2578 = vmul.f32 %v2576, %v1742
        %v2579 = vsub.f32 %v2571, %v2577
        %v2580 = vsub.f32 %v2572, %v2578
        %v2581 = vmul.f32 %v2579, %v2579
        %v2582 = vmul.f32 %v2580, %v2580
        %2583 = vadd.xlane.f32.xlu0 %v2581
        %v2584 = vpop.xlane.xlu0 %2583
        %2585 = vadd.xlane.f32.xlu0 %v2582
        %v2586 = vpop.xlane.xlu0 %2585
        %v2587 = vmul.f32 %v2584, %v1742
        %v2588 = vmul.f32 %v2586, %v1742
        %v2589 = vadd.f32 %v2587, 1e-05
        %v2590 = vadd.f32 %v2588, 1e-05
        %v2591 = vrsqrt.pop %v2589
        %v2592 = vmul.f32 %v2591, %v2589
        %v2593 = vmul.f32 %v2592, %v2591
        %v2594 = vmul.f32 0.5, %v2593
        %v2595 = vsub.f32 1.5, %v2594
        %v2596 = vmul.f32 %v2591, %v2595
        %vm2597 = vweird.f32 %v2589
        %vm2598 = vweird.f32 %v2591
        %vm2599 = vmor %vm2597, %vm2598
        %v2600 = vsel %vm2599, %v2591, %v2596
        %v2601 = vrsqrt.pop %v2590
        %v2602 = vmul.f32 %v2601, %v2590
        %v2603 = vmul.f32 %v2602, %v2601
        %v2604 = vmul.f32 0.5, %v2603
        %v2605 = vsub.f32 1.5, %v2604
        %v2606 = vmul.f32 %v2601, %v2605
        %vm2607 = vweird.f32 %v2590
        %vm2608 = vweird.f32 %v2601
        %vm2609 = vmor %vm2607, %vm2608
        %v2610 = vsel %vm2609, %v2601, %v2606
        %v2611 = vmul.f32 %v2579, %v2600
        %v2612 = vmul.f32 %v2580, %v2610
        %v2613 = vperm.slane %v950, 5
        %v2614 = vmul.f32 %v2611, %v2613
        %v2615 = vmul.f32 %v2612, %v2613
        %v2616 = vperm.slane %v950, 6
        %v2617 = vadd.f32 %v2614, %v2616
        %v2618 = vadd.f32 %v2615, %v2616
        %v2619 = vpack.c.bf16 %v2618, %v2617
        %v2620 = vperm.slane %v952, 2
        %v2621 = vperm.slane %v952, 6
        %v2624 = vperm.slane %v2620, 2
        %v2625 = vperm.slane %v2621, 2
        %v2642 = vunpack.c.l.b16 %v902
        %v2643 = vunpack.c.h.b16 %v902
        %v2644 = vunpack.c.l.b16 %v903
        %v2645 = vunpack.c.h.b16 %v903
        %v2646 = vunpack.c.l.b16 %v904
        %v2647 = vunpack.c.h.b16 %v904
        %v2648 = vunpack.c.l.b16 %v905
        %v2649 = vunpack.c.h.b16 %v905
        %v2650 = vunpack.c.l.b16 %v906
        %v2651 = vunpack.c.h.b16 %v906
        %v2652 = vunpack.c.l.b16 %v907
        %v2653 = vunpack.c.h.b16 %v907
        %v2654 = vunpack.c.l.b16 %v908
        %v2655 = vunpack.c.h.b16 %v908
        %v2656 = vunpack.c.l.b16 %v909
        %v2657 = vunpack.c.h.b16 %v909
        %v2658 = vunpack.c.l.b16 %v910
        %v2659 = vunpack.c.h.b16 %v910
        %v2660 = vunpack.c.l.b16 %v911
        %v2661 = vunpack.c.h.b16 %v911
        %v2662 = vunpack.c.l.b16 %v912
        %v2663 = vunpack.c.h.b16 %v912
        %v2664 = vunpack.c.l.b16 %v913
        %v2665 = vunpack.c.h.b16 %v913
        %v2666 = vunpack.c.l.b16 %v914
        %v2667 = vunpack.c.h.b16 %v914
        %v2668 = vunpack.c.l.b16 %v915
        %v2669 = vunpack.c.h.b16 %v915
        %v2670 = vunpack.c.l.b16 %v916
        %v2671 = vunpack.c.h.b16 %v916
        %v2672 = vunpack.c.l.b16 %v917
        %v2673 = vunpack.c.h.b16 %v917
        %v2674 = vpack.c.b16 %v2644, %v2642
        %v2675 = vpack.c.b16 %v2645, %v2643
        %v2676 = vpack.c.b16 %v2648, %v2646
        %v2677 = vpack.c.b16 %v2649, %v2647
        %v2678 = vpack.c.b16 %v2652, %v2650
        %v2679 = vpack.c.b16 %v2653, %v2651
        %v2680 = vpack.c.b16 %v2656, %v2654
        %v2681 = vpack.c.b16 %v2657, %v2655
        %v2682 = vpack.c.b16 %v2660, %v2658
        %v2683 = vpack.c.b16 %v2661, %v2659
        %v2684 = vpack.c.b16 %v2664, %v2662
        %v2685 = vpack.c.b16 %v2665, %v2663
        %v2686 = vpack.c.b16 %v2668, %v2666
        %v2687 = vpack.c.b16 %v2669, %v2667
        %v2688 = vpack.c.b16 %v2672, %v2670
        %v2689 = vpack.c.b16 %v2673, %v2671
        %2706 = vmatpush.bf16.msra.mxu0 %v2688
        %2707 = vmatpush.bf16.msra.mxu0 %v2686
        %2708 = vmatpush.bf16.msra.mxu0 %v2684
        %2709 = vmatpush.bf16.msra.mxu0 %v2682
        %2710 = vmatpush.bf16.msra.mxu0 %v2680
        %2711 = vmatpush.bf16.msra.mxu0 %v2678
        %2712 = vmatpush.bf16.msra.mxu0 %v2676
        %2713 = vmatpush.bf16.msra.mxu0 %v2674
        %2714 = vmatmul.bf16.gmra.mxu0 %v2619
        %v2715 = vpop.f32.mrf.mxu0
        %v2716 = vadd.f32 %v2624, %v2715
        %v2717 = vpop.f32.mrf.mxu0
        %v2718 = vadd.f32 %v2624, %v2717
        %2719 = vdwg.mxu0
        %2720 = vmatpush.bf16.msra.mxu0 %v2689
        %2721 = vmatpush.bf16.msra.mxu0 %v2687
        %2722 = vmatpush.bf16.msra.mxu0 %v2685
        %2723 = vmatpush.bf16.msra.mxu0 %v2683
        %2724 = vmatpush.bf16.msra.mxu0 %v2681
        %2725 = vmatpush.bf16.msra.mxu0 %v2679
        %2726 = vmatpush.bf16.msra.mxu0 %v2677
        %2727 = vmatpush.bf16.msra.mxu0 %v2675
        %2728 = vmatmul.bf16.gmra.mxu0 %v2619
        %v2729 = vpop.f32.mrf.mxu0
        %v2730 = vadd.f32 %v2625, %v2729
        %v2731 = vpop.f32.mrf.mxu0
        %v2732 = vadd.f32 %v2625, %v2731
        %2733 = vdwg.mxu0
        %v2734 = vmax.f32 %v2716, 0.0
        %v2735 = vmax.f32 %v2730, 0.0
        %v2736 = vmax.f32 %v2718, 0.0
        %v2737 = vmax.f32 %v2732, 0.0
        %v2738 = vpack.c.bf16 %v2736, %v2734
        %v2739 = vpack.c.bf16 %v2737, %v2735
        %v2740 = vperm.slane %v950, 7
        %v2773 = vunpack.c.l.b16 %v918
        %v2774 = vunpack.c.l.b16 %v919
        %v2775 = vunpack.c.l.b16 %v920
        %v2776 = vunpack.c.l.b16 %v921
        %v2777 = vunpack.c.l.b16 %v922
        %v2778 = vunpack.c.l.b16 %v923
        %v2779 = vunpack.c.l.b16 %v924
        %v2780 = vunpack.c.l.b16 %v925
        %v2781 = vunpack.c.l.b16 %v926
        %v2782 = vunpack.c.l.b16 %v927
        %v2783 = vunpack.c.l.b16 %v928
        %v2784 = vunpack.c.l.b16 %v929
        %v2785 = vunpack.c.l.b16 %v930
        %v2786 = vunpack.c.l.b16 %v931
        %v2787 = vunpack.c.l.b16 %v932
        %v2788 = vunpack.c.l.b16 %v933
        %v2789 = vunpack.c.l.b16 %v934
        %v2790 = vunpack.c.l.b16 %v935
        %v2791 = vunpack.c.l.b16 %v936
        %v2792 = vunpack.c.l.b16 %v937
        %v2793 = vunpack.c.l.b16 %v938
        %v2794 = vunpack.c.l.b16 %v939
        %v2795 = vunpack.c.l.b16 %v940
        %v2796 = vunpack.c.l.b16 %v941
        %v2797 = vunpack.c.l.b16 %v942
        %v2798 = vunpack.c.l.b16 %v943
        %v2799 = vunpack.c.l.b16 %v944
        %v2800 = vunpack.c.l.b16 %v945
        %v2801 = vunpack.c.l.b16 %v946
        %v2802 = vunpack.c.l.b16 %v947
        %v2803 = vunpack.c.l.b16 %v948
        %v2804 = vunpack.c.l.b16 %v949
        %v2805 = vpack.c.b16 %v2774, %v2773
        %v2806 = vpack.c.b16 %v2776, %v2775
        %v2807 = vpack.c.b16 %v2778, %v2777
        %v2808 = vpack.c.b16 %v2780, %v2779
        %v2809 = vpack.c.b16 %v2782, %v2781
        %v2810 = vpack.c.b16 %v2784, %v2783
        %v2811 = vpack.c.b16 %v2786, %v2785
        %v2812 = vpack.c.b16 %v2788, %v2787
        %v2813 = vpack.c.b16 %v2790, %v2789
        %v2814 = vpack.c.b16 %v2792, %v2791
        %v2815 = vpack.c.b16 %v2794, %v2793
        %v2816 = vpack.c.b16 %v2796, %v2795
        %v2817 = vpack.c.b16 %v2798, %v2797
        %v2818 = vpack.c.b16 %v2800, %v2799
        %v2819 = vpack.c.b16 %v2802, %v2801
        %v2820 = vpack.c.b16 %v2804, %v2803
        %2837 = vmatpush.bf16.msra.mxu0 %v2812
        %2838 = vmatpush.bf16.msra.mxu0 %v2811
        %2839 = vmatpush.bf16.msra.mxu0 %v2810
        %2840 = vmatpush.bf16.msra.mxu0 %v2809
        %2841 = vmatpush.bf16.msra.mxu0 %v2808
        %2842 = vmatpush.bf16.msra.mxu0 %v2807
        %2843 = vmatpush.bf16.msra.mxu0 %v2806
        %2844 = vmatpush.bf16.msra.mxu0 %v2805
        %2845 = vmatmul.bf16.gmra.mxu0 %v2738
        %v2846 = vpop.f32.mrf.mxu0
        %v2847 = vadd.f32 %v2740, %v2846
        %v2848 = vpop.f32.mrf.mxu0
        %v2849 = vadd.f32 %v2740, %v2848
        %2850 = vdwg.mxu0
        %2851 = vmatpush.bf16.msra.mxu0 %v2820
        %2852 = vmatpush.bf16.msra.mxu0 %v2819
        %2853 = vmatpush.bf16.msra.mxu0 %v2818
        %2854 = vmatpush.bf16.msra.mxu0 %v2817
        %2855 = vmatpush.bf16.msra.mxu0 %v2816
        %2856 = vmatpush.bf16.msra.mxu0 %v2815
        %2857 = vmatpush.bf16.msra.mxu0 %v2814
        %2858 = vmatpush.bf16.msra.mxu0 %v2813
        %2859 = vmatmul.bf16.gmra.mxu0 %v2739
        %v2860 = vpop.f32.mrf.mxu0
        %v2861 = vadd.f32 %v2847, %v2860
        %v2862 = vpop.f32.mrf.mxu0
        %v2863 = vadd.f32 %v2849, %v2862
        %2864 = vdwg.mxu0
        %v2865 = vadd.f32 %v2617, %v2861
        %v2866 = vadd.f32 %v2618, %v2863
        %2867 = vadd.xlane.f32.xlu0 %v2865
        %v2868 = vpop.xlane.xlu0 %2867
        %2869 = vadd.xlane.f32.xlu0 %v2866
        %v2870 = vpop.xlane.xlu0 %2869
        %v2871 = vmul.f32 %v2868, %v1742
        %v2872 = vmul.f32 %v2870, %v1742
        %v2873 = vsub.f32 %v2865, %v2871
        %v2874 = vsub.f32 %v2866, %v2872
        %v2875 = vmul.f32 %v2873, %v2873
        %v2876 = vmul.f32 %v2874, %v2874
        %2877 = vadd.xlane.f32.xlu0 %v2875
        %v2878 = vpop.xlane.xlu0 %2877
        %2879 = vadd.xlane.f32.xlu0 %v2876
        %v2880 = vpop.xlane.xlu0 %2879
        %v2881 = vmul.f32 %v2878, %v1742
        %v2882 = vmul.f32 %v2880, %v1742
        %v2883 = vadd.f32 %v2881, 1e-05
        %v2884 = vadd.f32 %v2882, 1e-05
        %v2885 = vrsqrt.pop %v2883
        %v2886 = vmul.f32 %v2885, %v2883
        %v2887 = vmul.f32 %v2886, %v2885
        %v2888 = vmul.f32 0.5, %v2887
        %v2889 = vsub.f32 1.5, %v2888
        %v2890 = vmul.f32 %v2885, %v2889
        %vm2891 = vweird.f32 %v2883
        %vm2892 = vweird.f32 %v2885
        %vm2893 = vmor %vm2891, %vm2892
        %v2894 = vsel %vm2893, %v2885, %v2890
        %v2895 = vrsqrt.pop %v2884
        %v2896 = vmul.f32 %v2895, %v2884
        %v2897 = vmul.f32 %v2896, %v2895
        %v2898 = vmul.f32 0.5, %v2897
        %v2899 = vsub.f32 1.5, %v2898
        %v2900 = vmul.f32 %v2895, %v2899
        %vm2901 = vweird.f32 %v2884
        %vm2902 = vweird.f32 %v2895
        %vm2903 = vmor %vm2901, %vm2902
        %v2904 = vsel %vm2903, %v2895, %v2900
        %v2905 = vmul.f32 %v2873, %v2894
        %v2906 = vmul.f32 %v2874, %v2904
        %v2907 = vperm.slane %v951, 0
        %v2908 = vmul.f32 %v2905, %v2907
        %v2909 = vmul.f32 %v2906, %v2907
        %v2910 = vperm.slane %v951, 1
        %v2911 = vadd.f32 %v2908, %v2910
        %v2912 = vadd.f32 %v2909, %v2910
        %2913 = vst [vmem:[#allocation14] sm:$0xff] %v2911
        %2914 = vst [vmem:[#allocation14 + $0x8] sm:$0xff] %v2912
        // Predicated region
        $region105: #{transformer_decoder_forward.1} parent=71 // pred_check
          %p2915 = pneg %p398
        $region106: #{transformer_decoder_forward.1} parent=71 // pred_check_branch
          %2917 = sbr.rel (%p2915) target = $region108
        $region107: #{transformer_decoder_forward.1} parent=71 // pred_region
          %s2918 = smul.u32 2, %s39
          %2920 = vsyncadd [#allocation4], 0
          %s2921 = smul.addr %s2918, 8
          %s2922 = scalar_lea.hbm %s13, %s2921
          %s2923 = sshll.u32 [#allocation14], 4
          %s2924 = int_to_ptr.vmem [resolvable:$true] %s2923
          %s2925 = sshll.u32 %s2922, 4
          %s2926 = int_to_ptr.hbm [resolvable:$true] %s2925
          %2931 = dma.vmem_to_hbm [thread:$0]  %s2924, 256, %s2926, [#allocation4], 128, 128, 8
        $region108: #{transformer_decoder_forward.1} parent=71 // pred_fallthru
          _
        // Predicated region
        $region109: #{transformer_decoder_forward.1} parent=71 // pred_check
          %p2932 = pneg %p398
        $region110: #{transformer_decoder_forward.1} parent=71 // pred_check_branch
          %2934 = sbr.rel (%p2932) target = $region112
        $region111: #{transformer_decoder_forward.1} parent=71 // pred_region
          %2936 = dma.done [#allocation4], 256
        $region112: #{transformer_decoder_forward.1} parent=71 // pred_fallthru
          _
      $region72: #{transformer_decoder_forward.1} parent=5 // pred_fallthru
        _
      %p2937 = scmp.le.s32.totalorder 2, %s30
      // Predicated region
      $region113: #{transformer_decoder_forward.1} parent=5 // pred_check
        %p2938 = pneg %p2937
      $region114: #{transformer_decoder_forward.1} parent=5 // pred_check_branch
        %2940 = sbr.rel (%p2938) target = $region116
      $region115: #{transformer_decoder_forward.1} parent=5 // pred_region
        %s2941 = ssub.s32 %s30, 2
      $region116: #{transformer_decoder_forward.1} parent=5 // pred_fallthru
        _
    $region6: #{transformer_decoder_forward.1} parent=1 // loop_footer
      %s34 = sadd.s32 1, %s30
    $region7: #{transformer_decoder_forward.1} parent=1 // loop_footer_branch
      %29 = sbr.rel target = $region3
    $region8: #{transformer_decoder_forward.1} parent=1 // loop_exit
      _
    %2942 = vsyncpa [#allocation3], 1
    %s2943 = scalar_lea.sflag [#allocation3], 1
    %2944 = vsyncpa %s2943, 1
    %2945 = vsyncpa [#allocation6], 1
    %s2946 = scalar_lea.sflag [#allocation6], 1
    %2947 = vsyncpa %s2946, 1
    %2948 = vsyncpa [#allocation9], 1
    %s2949 = scalar_lea.sflag [#allocation9], 1
    %2950 = vsyncpa %s2949, 1
    %2951 = vsyncpa [#allocation12], 1
    %s2952 = scalar_lea.sflag [#allocation12], 1
    %2953 = vsyncpa %s2952, 1
    %2954 = vsyncpa [#allocation4], 1
    %s2955 = scalar_lea.sflag [#allocation4], 1
    %2956 = vsyncpa %s2955, 1

</llo_original>
